<compile_context>
chip_gen: v5e
topology: v5e:2x2
jax: 0.10.0
libtpu: 0.0.40
codegen_flags: <defaults>
</compile_context>

<pallas_src>
import functools

import numpy as np
import jax
import jax.numpy as jnp
from jax.experimental import pallas as pl
from jax.experimental.pallas import tpu as pltpu


def _round_up(x: int, m: int) -> int:
    return ((x + m - 1) // m) * m


def _tpu_defaults():
    """(tn_max, vmem_limit_bytes) per TPU generation (conservative fallback)."""
    try:
        kind = jax.devices()[0].device_kind.lower()
    except Exception:
        return 128, None
    if "v7" in kind:          # 2x256^2 MXU, 64 MiB VMEM -> keep headroom
        return 256, 48 * 1024 * 1024
    if "v6" in kind:          # 2x256^2 MXU, 128 MiB VMEM
        return 256, 100 * 1024 * 1024
    if "v5" in kind:          # 4x128^2 MXU, 128 MiB VMEM; single vst slot -> stay 128
        return 128, 100 * 1024 * 1024
    return 128, 64 * 1024 * 1024


def _conv_bn_relu_kernel(x_ref, w_ref, bias_ref, *rest,
                         KH: int, KW: int, OH: int, OW: int,
                         stride: int, num_k: int, residual: bool):
    i = 0
    if residual:
        res_ref = rest[i]; i += 1
    out_ref = rest[i]; i += 1
    col_ref = rest[i]; i += 1
    acc_ref = rest[i] if num_k > 1 else None

    c = pl.program_id(2)          # Cin-tile (K-reduction) axis, last / "arbitrary"
    tc = x_ref.shape[-1]

    def _win(start, size):
        return pl.ds(start, size) if stride == 1 else pl.ds(start, size, stride)

    # Stage the KH*KW shifted windows into one im2col slab (K ordering (kh, kw, cin),
    # matching the weight tile layout built in the glue), then a single deep MXU
    # contraction with K = KH*KW*tc and f32 accumulation.
    for kh in range(KH):
        for kw in range(KW):
            slab = x_ref[0, _win(kh, OH), _win(kw, OW), :]          # (OH, OW, tc)
            col_ref[:, (kh * KW + kw) * tc:(kh * KW + kw + 1) * tc] = (
                slab.reshape(OH * OW, tc))
    psum = jnp.dot(col_ref[...], w_ref[0],
                   preferred_element_type=jnp.float32)              # (OH*OW, tn)

    if num_k > 1:
        @pl.when(c == 0)
        def _first():
            acc_ref[...] = psum                                     # no zero-init pass

        @pl.when(jnp.logical_and(c > 0, c < num_k - 1))
        def _mid():
            acc_ref[...] += psum

    @pl.when(c == num_k - 1)
    def _finalize():
        out = psum + bias_ref[...]                                  # folded BN bias
        if num_k > 1:
            out = out + acc_ref[...]                                # no extra acc roundtrip
        if residual:
            out = out + res_ref[0].astype(jnp.float32)
        out_ref[0] = jnp.maximum(out, 0.0).astype(out_ref.dtype)


def conv2d_bn_relu(x, weight, conv_bias, gamma, beta, running_mean, running_var,
                   *, stride: int, padding: int, residual: bool = False,
                   eps: float = 1e-5, compute_dtype=jnp.bfloat16, out_dtype=None,
                   layout: str = "NCHW", tn=None, vmem_limit_bytes=None):
    """Pallas TPU forward of the PyTorch `Conv2d` module (eval-mode BN)."""
    if layout == "NCHW":
        N, Cin, H, W = x.shape
    elif layout == "NHWC":
        N, H, W, Cin = x.shape
    else:
        raise ValueError(f"unknown layout {layout!r}")
    Cout, Cin_w, KH, KW = weight.shape
    assert Cin == Cin_w
    OH = (H + 2 * padding - KH) // stride + 1
    OW = (W + 2 * padding - KW) // stride + 1
    Hp, Wp = H + 2 * padding, W + 2 * padding
    # Chained conv consumers should pass out_dtype=jnp.bfloat16 to halve writeback.
    out_dtype = x.dtype if out_dtype is None else out_dtype

    # --- generation-aware tile / VMEM defaults.
    tn_max, auto_vmem = _tpu_defaults()
    if vmem_limit_bytes is None:
        vmem_limit_bytes = auto_vmem
    if tn is None:
        tn = tn_max

    # Cout: lane-dense multiple of 128, but no wider than needed.
    Coutp = _round_up(Cout, 128)
    if Coutp <= tn:
        tn = Coutp
    else:
        Coutp = _round_up(Cout, tn)

    # Cin: single tile when it fits the generation's MXU-native depth, else 128/256 tiles.
    sub_q = 8 * (4 // np.dtype(compute_dtype).itemsize)  # sublane quantum: 8 f32 / 16 bf16
    if Cin <= tn_max:
        Cp = tc = _round_up(Cin, sub_q)
    else:
        tc = tn_max
        Cp = _round_up(Cin, tc)
    num_k = Cp // tc

    # --- glue: padded NHWC activations in compute dtype (single fused pad).
    x_nhwc = x if layout == "NHWC" else x.transpose(0, 2, 3, 1)
    x_pad = jnp.pad(x_nhwc.astype(compute_dtype),
                    ((0, 0), (padding, padding), (padding, padding), (0, Cp - Cin)))

    # --- glue: fold BN scale into conv weights; single per-channel f32 bias.
    scale = (gamma / jnp.sqrt(running_var + eps)).astype(jnp.float32)          # (Cout,)
    w_f = weight.astype(jnp.float32) * scale[:, None, None, None]              # (Cout,Cin,KH,KW)
    w_f = w_f.transpose(2, 3, 1, 0)                                            # (KH,KW,Cin,Cout)
    w_f = jnp.pad(w_f, ((0, 0), (0, 0), (0, Cp - Cin), (0, Coutp - Cout)))
    # Cin-tile-major layout whose K rows are ordered (kh, kw, cin-in-tile), matching
    # the in-kernel im2col slab: (num_k, KH*KW*tc, Coutp).
    w_f = (w_f.reshape(KH, KW, num_k, tc, Coutp)
              .transpose(2, 0, 1, 3, 4)
              .reshape(num_k, KH * KW * tc, Coutp)
              .astype(compute_dtype))
    bias = beta.astype(jnp.float32) + (conv_bias.astype(jnp.float32) - running_mean) * scale
    bias_p = jnp.pad(bias, (0, Coutp - Cout)).reshape(1, Coutp).astype(jnp.float32)

    in_specs = [
        pl.BlockSpec((1, Hp, Wp, tc), lambda j, n, c: (n, 0, 0, c)),       # padded input
        pl.BlockSpec((1, KH * KW * tc, tn), lambda j, n, c: (c, 0, j)),    # folded weights
        pl.BlockSpec((1, tn), lambda j, n, c: (0, j)),                     # folded BN bias
    ]
    args = [x_pad, w_f, bias_p]
    if residual:
        assert Cin == Cout and OH == H and OW == W, "residual requires matching shapes"
        res = x_nhwc.reshape(N, H * W, Cin).astype(compute_dtype)          # bf16 DMA
        res = jnp.pad(res, ((0, 0), (0, 0), (0, Coutp - Cin)))
        in_specs.append(pl.BlockSpec((1, OH * OW, tn), lambda j, n, c: (n, 0, j)))
        args.append(res)

    scratch_shapes = [pltpu.VMEM((OH * OW, KH * KW * tc), compute_dtype)]  # im2col slab
    if num_k > 1:
        scratch_shapes.append(pltpu.VMEM((OH * OW, tn), jnp.float32))      # K-reduction acc

    itemsize_c = np.dtype(compute_dtype).itemsize
    flops = 2 * N * OH * OW * Cout * Cin * KH * KW
    bytes_accessed = (
        N * Hp * Wp * Cp * itemsize_c * (Coutp // tn)                        # input (re-read per Cout tile)
        + KH * KW * Cp * Coutp * itemsize_c * (1 if num_k == 1 else N)       # weights
        + Coutp * 4                                                          # bias
        + N * OH * OW * Coutp * np.dtype(out_dtype).itemsize                 # output
        + (N * OH * OW * Coutp * itemsize_c if residual else 0))             # residual

    out3 = pl.pallas_call(
        functools.partial(_conv_bn_relu_kernel, KH=KH, KW=KW, OH=OH, OW=OW,
                          stride=stride, num_k=num_k, residual=residual),
        out_shape=jax.ShapeDtypeStruct((N, OH * OW, Coutp), out_dtype),      # lane-dense
        grid=(Coutp // tn, N, num_k),
        in_specs=in_specs,
        out_specs=pl.BlockSpec((1, OH * OW, tn), lambda j, n, c: (n, 0, j)),
        scratch_shapes=scratch_shapes,
        compiler_params=pltpu.CompilerParams(
            dimension_semantics=("parallel", "parallel", "arbitrary"),
            vmem_limit_bytes=vmem_limit_bytes),
        cost_estimate=pl.CostEstimate(flops=flops, transcendentals=0,
                                      bytes_accessed=bytes_accessed),
    )(*args)

    out = out3[:, :, :Cout].reshape(N, OH, OW, Cout)
    if layout == "NCHW":
        # A chained NHWC consumer should pass layout="NHWC" and skip this transpose.
        out = out.transpose(0, 3, 1, 2)
    return out


def _reference(x, weight, conv_bias, gamma, beta, running_mean, running_var,
               *, stride, padding, residual, eps=1e-5, compute_dtype=jnp.float32):
    """Plain-JAX reference; operands optionally rounded to the kernel's MXU dtype."""
    scale = gamma / jnp.sqrt(running_var + eps)
    w_f = weight * scale[:, None, None, None]
    xq = x.astype(compute_dtype).astype(jnp.float32)
    wq = w_f.astype(compute_dtype).astype(jnp.float32)
    y = jax.lax.conv_general_dilated(
        xq, wq, window_strides=(stride, stride),
        padding=[(padding, padding), (padding, padding)],
        dimension_numbers=("NCHW", "OIHW", "NCHW"))
    bias = beta + (conv_bias - running_mean) * scale
    y = y + bias.reshape(1, -1, 1, 1)
    if residual:
        y = y + xq            # the kernel DMAs the residual in compute_dtype too
    return jnp.maximum(y, 0.0)


if __name__ == "__main__":
    key = jax.random.PRNGKey(0)
    k_x, k_w, k_b, k_g, k_bt, k_rm, k_rv = jax.random.split(key, 7)

    # Module config: Conv2d(cin=4, cout=4, kernel_size=3, stride=1, padding=1, residual=True)
    N, Cin, H, W = 2, 4, 16, 16
    Cout, KH, KW = 4, 3, 3
    stride, padding, residual = 1, 1, True

    x = jax.random.normal(k_x, (N, Cin, H, W), dtype=jnp.float32)
    weight = jax.random.normal(k_w, (Cout, Cin, KH, KW), dtype=jnp.float32) * 0.1
    conv_bias = jax.random.normal(k_b, (Cout,), dtype=jnp.float32) * 0.1
    gamma = 1.0 + 0.1 * jax.random.normal(k_g, (Cout,), dtype=jnp.float32)
    beta = 0.1 * jax.random.normal(k_bt, (Cout,), dtype=jnp.float32)
    running_mean = 0.1 * jax.random.normal(k_rm, (Cout,), dtype=jnp.float32)
    running_var = 0.5 + jnp.abs(jax.random.normal(k_rv, (Cout,), dtype=jnp.float32))

    fwd = jax.jit(functools.partial(conv2d_bn_relu, stride=stride, padding=padding,
                                    residual=residual))
    out = jax.block_until_ready(
        fwd(x, weight, conv_bias, gamma, beta, running_mean, running_var))
    assert out.shape == (N, Cout, H, W), out.shape

    # Tight check against a reference using the same bf16-rounded MXU operands
    # (difference = f32 accumulation order only).
    ref_bf16 = _reference(x, weight, conv_bias, gamma, beta, running_mean, running_var,
                          stride=stride, padding=padding, residual=residual,
                          compute_dtype=jnp.bfloat16)
    err = float(jnp.max(jnp.abs(out - ref_bf16)))
    assert jnp.allclose(out, ref_bf16, atol=1e-3, rtol=1e-3), err

    # Loose sanity check against pure-f32 math (bf16 operands => ~1e-2-level error).
    ref_f32 = _reference(x, weight, conv_bias, gamma, beta, running_mean, running_var,
                         stride=stride, padding=padding, residual=residual,
                         compute_dtype=jnp.float32)
    assert jnp.allclose(out, ref_f32, atol=1e-1, rtol=1e-1)

    # NHWC fast path (no NCHW<->NHWC HBM glue) must match the NCHW result exactly.
    fwd_nhwc = jax.jit(functools.partial(conv2d_bn_relu, stride=stride, padding=padding,
                                         residual=residual, layout="NHWC"))
    out_nhwc = jax.block_until_ready(
        fwd_nhwc(x.transpose(0, 2, 3, 1), weight, conv_bias, gamma, beta,
                 running_mean, running_var))
    assert jnp.allclose(out_nhwc, out.transpose(0, 2, 3, 1), atol=1e-6, rtol=1e-6)

    # Deeper-Cin config exercising the multi-Cin-tile K-reduction (accumulator) path
    # and Cout padding (num_k >= 2 on all generations since Cin=512 > 256).
    N4, Cin4, H4, W4, Cout4 = 1, 512, 8, 8, 8
    k4 = jax.random.split(key, 7)
    x4 = jax.random.normal(k4[0], (N4, Cin4, H4, W4), dtype=jnp.float32)
    w4 = jax.random.normal(k4[1], (Cout4, Cin4, 3, 3), dtype=jnp.float32) * 0.05
    b4 = jax.random.normal(k4[2], (Cout4,), dtype=jnp.float32) * 0.1
    g4 = 1.0 + 0.1 * jax.random.normal(k4[3], (Cout4,), dtype=jnp.float32)
    bt4 = 0.1 * jax.random.normal(k4[4], (Cout4,), dtype=jnp.float32)
    rm4 = 0.1 * jax.random.normal(k4[5], (Cout4,), dtype=jnp.float32)
    rv4 = 0.5 + jnp.abs(jax.random.normal(k4[6], (Cout4,), dtype=jnp.float32))
    fwd4 = jax.jit(functools.partial(conv2d_bn_relu, stride=1, padding=1, residual=False))
    out4 = jax.block_until_ready(fwd4(x4, w4, b4, g4, bt4, rm4, rv4))
    assert out4.shape == (N4, Cout4, H4, W4), out4.shape
    ref4 = _reference(x4, w4, b4, g4, bt4, rm4, rv4, stride=1, padding=1,
                      residual=False, compute_dtype=jnp.bfloat16)
    err4 = float(jnp.max(jnp.abs(out4 - ref4)))
    assert jnp.allclose(out4, ref4, atol=5e-3, rtol=5e-3), err4

    print("KERNEL_OK")
</pallas_src>

<mosaic_0001>
module attributes {stable_mosaic.version = 11 : i64} {
  func.func @_conv_bn_relu_kernel(%arg0: i32, %arg1: i32, %arg2: i32, %arg3: memref<1x18x18x16xbf16, #tpu.memory_space<vmem>>, %arg4: memref<1x144x128xbf16, #tpu.memory_space<vmem>>, %arg5: memref<1x128xf32, #tpu.memory_space<vmem>>, %arg6: memref<1x256x128xbf16, #tpu.memory_space<vmem>>, %arg7: memref<1x256x128xf32, #tpu.memory_space<vmem>>, %arg8: memref<256x144xbf16, #tpu.memory_space<vmem>>) attributes {dimension_semantics = [#tpu.dimension_semantics<parallel>, #tpu.dimension_semantics<parallel>, #tpu.dimension_semantics<arbitrary>], iteration_bounds = array<i64: 1, 2, 1>, scalar_prefetch = 0 : i64, scratch_operands = 1 : i64, tpu.core_type = #tpu.core_type<tc>, window_params = [{transform_indices = @transform_0, window_bounds = array<i64: 1, 18, 18, 16>}, {transform_indices = @transform_1, window_bounds = array<i64: 1, 144, 128>}, {transform_indices = @transform_2, window_bounds = array<i64: 1, 128>}, {transform_indices = @transform_3, window_bounds = array<i64: 1, 256, 128>}, {transform_indices = @transform_4, window_bounds = array<i64: 1, 256, 128>}]} {
    %c0 = arith.constant 0 : index
    %c0_0 = arith.constant 0 : index
    %c0_1 = arith.constant 0 : index
    %c0_2 = arith.constant 0 : index
    %0 = vector.load %arg3[%c0, %c0_0, %c0_1, %c0_2] : memref<1x18x18x16xbf16, #tpu.memory_space<vmem>>, vector<1x16x16x16xbf16>
    %1 = vector.shape_cast %0 : vector<1x16x16x16xbf16> to vector<16x16x16xbf16>
    %2 = vector.shape_cast %1 : vector<16x16x16xbf16> to vector<256x16xbf16>
    %c0_3 = arith.constant 0 : index
    %c0_4 = arith.constant 0 : index
    %3 = vector.load %arg8[%c0_3, %c0_4] : memref<256x144xbf16, #tpu.memory_space<vmem>>, vector<256x16xbf16>
    tpu.vector_store %arg8[%c0_3, %c0_4], %2 {strides = array<i32>} : memref<256x144xbf16, #tpu.memory_space<vmem>>, vector<256x16xbf16>,
    %c0_5 = arith.constant 0 : index
    %c0_6 = arith.constant 0 : index
    %c1 = arith.constant 1 : index
    %c0_7 = arith.constant 0 : index
    %4 = vector.load %arg3[%c0_5, %c0_6, %c1, %c0_7] : memref<1x18x18x16xbf16, #tpu.memory_space<vmem>>, vector<1x16x16x16xbf16>
    %5 = vector.shape_cast %4 : vector<1x16x16x16xbf16> to vector<16x16x16xbf16>
    %6 = vector.shape_cast %5 : vector<16x16x16xbf16> to vector<256x16xbf16>
    %c0_8 = arith.constant 0 : index
    %c16 = arith.constant 16 : index
    %7 = vector.load %arg8[%c0_8, %c16] : memref<256x144xbf16, #tpu.memory_space<vmem>>, vector<256x16xbf16>
    tpu.vector_store %arg8[%c0_8, %c16], %6 {strides = array<i32>} : memref<256x144xbf16, #tpu.memory_space<vmem>>, vector<256x16xbf16>,
    %c0_9 = arith.constant 0 : index
    %c0_10 = arith.constant 0 : index
    %c2 = arith.constant 2 : index
    %c0_11 = arith.constant 0 : index
    %8 = vector.load %arg3[%c0_9, %c0_10, %c2, %c0_11] : memref<1x18x18x16xbf16, #tpu.memory_space<vmem>>, vector<1x16x16x16xbf16>
    %9 = vector.shape_cast %8 : vector<1x16x16x16xbf16> to vector<16x16x16xbf16>
    %10 = vector.shape_cast %9 : vector<16x16x16xbf16> to vector<256x16xbf16>
    %c0_12 = arith.constant 0 : index
    %c32 = arith.constant 32 : index
    %11 = vector.load %arg8[%c0_12, %c32] : memref<256x144xbf16, #tpu.memory_space<vmem>>, vector<256x16xbf16>
    tpu.vector_store %arg8[%c0_12, %c32], %10 {strides = array<i32>} : memref<256x144xbf16, #tpu.memory_space<vmem>>, vector<256x16xbf16>,
    %c0_13 = arith.constant 0 : index
    %c1_14 = arith.constant 1 : index
    %c0_15 = arith.constant 0 : index
    %c0_16 = arith.constant 0 : index
    %12 = vector.load %arg3[%c0_13, %c1_14, %c0_15, %c0_16] : memref<1x18x18x16xbf16, #tpu.memory_space<vmem>>, vector<1x16x16x16xbf16>
    %13 = vector.shape_cast %12 : vector<1x16x16x16xbf16> to vector<16x16x16xbf16>
    %14 = vector.shape_cast %13 : vector<16x16x16xbf16> to vector<256x16xbf16>
    %c0_17 = arith.constant 0 : index
    %c48 = arith.constant 48 : index
    %15 = vector.load %arg8[%c0_17, %c48] : memref<256x144xbf16, #tpu.memory_space<vmem>>, vector<256x16xbf16>
    tpu.vector_store %arg8[%c0_17, %c48], %14 {strides = array<i32>} : memref<256x144xbf16, #tpu.memory_space<vmem>>, vector<256x16xbf16>,
    %c0_18 = arith.constant 0 : index
    %c1_19 = arith.constant 1 : index
    %c1_20 = arith.constant 1 : index
    %c0_21 = arith.constant 0 : index
    %16 = vector.load %arg3[%c0_18, %c1_19, %c1_20, %c0_21] : memref<1x18x18x16xbf16, #tpu.memory_space<vmem>>, vector<1x16x16x16xbf16>
    %17 = vector.shape_cast %16 : vector<1x16x16x16xbf16> to vector<16x16x16xbf16>
    %18 = vector.shape_cast %17 : vector<16x16x16xbf16> to vector<256x16xbf16>
    %c0_22 = arith.constant 0 : index
    %c64 = arith.constant 64 : index
    %19 = vector.load %arg8[%c0_22, %c64] : memref<256x144xbf16, #tpu.memory_space<vmem>>, vector<256x16xbf16>
    tpu.vector_store %arg8[%c0_22, %c64], %18 {strides = array<i32>} : memref<256x144xbf16, #tpu.memory_space<vmem>>, vector<256x16xbf16>,
    %c0_23 = arith.constant 0 : index
    %c1_24 = arith.constant 1 : index
    %c2_25 = arith.constant 2 : index
    %c0_26 = arith.constant 0 : index
    %20 = vector.load %arg3[%c0_23, %c1_24, %c2_25, %c0_26] : memref<1x18x18x16xbf16, #tpu.memory_space<vmem>>, vector<1x16x16x16xbf16>
    %21 = vector.shape_cast %20 : vector<1x16x16x16xbf16> to vector<16x16x16xbf16>
    %22 = vector.shape_cast %21 : vector<16x16x16xbf16> to vector<256x16xbf16>
    %c0_27 = arith.constant 0 : index
    %c80 = arith.constant 80 : index
    %23 = vector.load %arg8[%c0_27, %c80] : memref<256x144xbf16, #tpu.memory_space<vmem>>, vector<256x16xbf16>
    tpu.vector_store %arg8[%c0_27, %c80], %22 {strides = array<i32>} : memref<256x144xbf16, #tpu.memory_space<vmem>>, vector<256x16xbf16>,
    %c0_28 = arith.constant 0 : index
    %c2_29 = arith.constant 2 : index
    %c0_30 = arith.constant 0 : index
    %c0_31 = arith.constant 0 : index
    %24 = vector.load %arg3[%c0_28, %c2_29, %c0_30, %c0_31] : memref<1x18x18x16xbf16, #tpu.memory_space<vmem>>, vector<1x16x16x16xbf16>
    %25 = vector.shape_cast %24 : vector<1x16x16x16xbf16> to vector<16x16x16xbf16>
    %26 = vector.shape_cast %25 : vector<16x16x16xbf16> to vector<256x16xbf16>
    %c0_32 = arith.constant 0 : index
    %c96 = arith.constant 96 : index
    %27 = vector.load %arg8[%c0_32, %c96] : memref<256x144xbf16, #tpu.memory_space<vmem>>, vector<256x16xbf16>
    tpu.vector_store %arg8[%c0_32, %c96], %26 {strides = array<i32>} : memref<256x144xbf16, #tpu.memory_space<vmem>>, vector<256x16xbf16>,
    %c0_33 = arith.constant 0 : index
    %c2_34 = arith.constant 2 : index
    %c1_35 = arith.constant 1 : index
    %c0_36 = arith.constant 0 : index
    %28 = vector.load %arg3[%c0_33, %c2_34, %c1_35, %c0_36] : memref<1x18x18x16xbf16, #tpu.memory_space<vmem>>, vector<1x16x16x16xbf16>
    %29 = vector.shape_cast %28 : vector<1x16x16x16xbf16> to vector<16x16x16xbf16>
    %30 = vector.shape_cast %29 : vector<16x16x16xbf16> to vector<256x16xbf16>
    %c0_37 = arith.constant 0 : index
    %c112 = arith.constant 112 : index
    %31 = vector.load %arg8[%c0_37, %c112] : memref<256x144xbf16, #tpu.memory_space<vmem>>, vector<256x16xbf16>
    tpu.vector_store %arg8[%c0_37, %c112], %30 {strides = array<i32>} : memref<256x144xbf16, #tpu.memory_space<vmem>>, vector<256x16xbf16>,
    %c0_38 = arith.constant 0 : index
    %c2_39 = arith.constant 2 : index
    %c2_40 = arith.constant 2 : index
    %c0_41 = arith.constant 0 : index
    %32 = vector.load %arg3[%c0_38, %c2_39, %c2_40, %c0_41] : memref<1x18x18x16xbf16, #tpu.memory_space<vmem>>, vector<1x16x16x16xbf16>
    %33 = vector.shape_cast %32 : vector<1x16x16x16xbf16> to vector<16x16x16xbf16>
    %34 = vector.shape_cast %33 : vector<16x16x16xbf16> to vector<256x16xbf16>
    %c0_42 = arith.constant 0 : index
    %c128 = arith.constant 128 : index
    %35 = vector.load %arg8[%c0_42, %c128] : memref<256x144xbf16, #tpu.memory_space<vmem>>, vector<256x16xbf16>
    tpu.vector_store %arg8[%c0_42, %c128], %34 {strides = array<i32>} : memref<256x144xbf16, #tpu.memory_space<vmem>>, vector<256x16xbf16>,
    %c0_43 = arith.constant 0 : index
    %c0_44 = arith.constant 0 : index
    %36 = vector.load %arg8[%c0_43, %c0_44] : memref<256x144xbf16, #tpu.memory_space<vmem>>, vector<256x144xbf16>
    %c0_45 = arith.constant 0 : index
    %c0_46 = arith.constant 0 : index
    %c0_47 = arith.constant 0 : index
    %37 = vector.load %arg4[%c0_45, %c0_46, %c0_47] : memref<1x144x128xbf16, #tpu.memory_space<vmem>>, vector<1x144x128xbf16>
    %38 = vector.shape_cast %37 : vector<1x144x128xbf16> to vector<144x128xbf16>
    %cst = arith.constant dense<0.000000e+00> : vector<256x128xf32>
    %39 = tpu.matmul %36, %38, %cst {dimension_numbers = #tpu.dot_dimension_numbers<[1], [0], [0], [1], [0, 0, 1, 1], [], []>} : vector<256x144xbf16>, vector<144x128xbf16>, vector<256x128xf32> -> vector<256x128xf32>
    %c0_i32 = arith.constant 0 : i32
    %40 = arith.cmpi eq, %arg2, %c0_i32 : i32
    %41 = arith.extui %40 : i1 to i32
    %c0_i32_48 = arith.constant 0 : i32
    %42 = arith.cmpi ne, %41, %c0_i32_48 : i32
    scf.if %42 {
      %c0_49 = arith.constant 0 : index
      %c0_50 = arith.constant 0 : index
      %43 = vector.load %arg5[%c0_49, %c0_50] : memref<1x128xf32, #tpu.memory_space<vmem>>, vector<1x128xf32>
      %44 = vector.broadcast %43 : vector<1x128xf32> to vector<256x128xf32>
      %45 = arith.addf %39, %44 : vector<256x128xf32>
      %c0_51 = arith.constant 0 : index
      %c0_52 = arith.constant 0 : index
      %c0_53 = arith.constant 0 : index
      %46 = vector.load %arg6[%c0_51, %c0_52, %c0_53] : memref<1x256x128xbf16, #tpu.memory_space<vmem>>, vector<1x256x128xbf16>
      %47 = vector.shape_cast %46 : vector<1x256x128xbf16> to vector<256x128xbf16>
      %48 = arith.extf %47 : vector<256x128xbf16> to vector<256x128xf32>
      %49 = arith.addf %45, %48 : vector<256x128xf32>
      %cst_54 = arith.constant 0.000000e+00 : f32
      %50 = vector.broadcast %cst_54 : f32 to vector<256x128xf32>
      %51 = arith.maximumf %49, %50 : vector<256x128xf32>
      %c0_55 = arith.constant 0 : index
      %c0_56 = arith.constant 0 : index
      %c0_57 = arith.constant 0 : index
      %52 = vector.load %arg7[%c0_55, %c0_56, %c0_57] : memref<1x256x128xf32, #tpu.memory_space<vmem>>, vector<1x256x128xf32>
      %53 = vector.shape_cast %52 : vector<1x256x128xf32> to vector<256x128xf32>
      %54 = vector.shape_cast %51 : vector<256x128xf32> to vector<1x256x128xf32>
      tpu.vector_store %arg7[%c0_55, %c0_56, %c0_57], %54 {strides = array<i32>} : memref<1x256x128xf32, #tpu.memory_space<vmem>>, vector<1x256x128xf32>,
    } else {
    }
    return
  }
  func.func @transform_0(%arg0: i32, %arg1: i32, %arg2: i32) -> (i32, i32, i32, i32) {
    %c0_i32 = arith.constant 0 : i32
    %c0_i32_0 = arith.constant 0 : i32
    %c0_i32_1 = arith.constant 0 : i32
    return %arg1, %c0_i32, %c0_i32_0, %arg2 : i32, i32, i32, i32
  }
  func.func @transform_1(%arg0: i32, %arg1: i32, %arg2: i32) -> (i32, i32, i32) {
    %c0_i32 = arith.constant 0 : i32
    %c0_i32_0 = arith.constant 0 : i32
    return %arg2, %c0_i32, %arg0 : i32, i32, i32
  }
  func.func @transform_2(%arg0: i32, %arg1: i32, %arg2: i32) -> (i32, i32) {
    %c0_i32 = arith.constant 0 : i32
    %c0_i32_0 = arith.constant 0 : i32
    return %c0_i32, %arg0 : i32, i32
  }
  func.func @transform_3(%arg0: i32, %arg1: i32, %arg2: i32) -> (i32, i32, i32) {
    %c0_i32 = arith.constant 0 : i32
    %c0_i32_0 = arith.constant 0 : i32
    return %arg1, %c0_i32, %arg0 : i32, i32, i32
  }
  func.func @transform_4(%arg0: i32, %arg1: i32, %arg2: i32) -> (i32, i32, i32) {
    %c0_i32 = arith.constant 0 : i32
    %c0_i32_0 = arith.constant 0 : i32
    return %arg1, %c0_i32, %arg0 : i32, i32, i32
  }
}

</mosaic_0001>

<llo_original>
// kernel: conv2d_bn_relu.1
$region0: #{conv2d_bn_relu.1}
  #allocation0 [shape = 'u32[]', space=smem, size = 0x4, offset = 0x4, fixed_abs, tag = 'smem constant byte address 0x4 - core index']
  #allocation1 [shape = 'u32[72,128]{1,0:T(1,128)}', space=vmem, size = 0x9000, scoped, tag = 'internal scratch']
  #allocation2 [shape = 'bf16[256,144]{1,0:T(8,128)(2,1)}', space=vmem, size = 0x20000, scoped, tag = 'scratch operand']
  %s0 = inlined_call_operand.vmem [shape: bf16[2,18,18,16], index: 0, kind: input, shape index: {}]
  %s1 = inlined_call_operand.vmem [shape: bf16[1,144,128], index: 1, kind: input, shape index: {}]
  %s2 = inlined_call_operand.vmem [shape: f32[1,128], index: 2, kind: input, shape index: {}]
  %s3 = inlined_call_operand.vmem [shape: bf16[2,256,128], index: 3, kind: input, shape index: {}]
  %s4 = inlined_call_operand.vmem [shape: f32[2,256,128], index: 4, kind: output, shape index: {}]
  %s5 = sld [smem:[#allocation0]]
  $region53: #{conv2d_bn_relu.1} parent=0
    _
  %s7 = ssub.s32 1, %s5
  %s8 = scalar_select 0, %s7, %s5
  loop: start=0, step=1, limit=4
  $region2: #{conv2d_bn_relu.1} parent=0 // loop_pre_header
    _
  $region3: #{conv2d_bn_relu.1} parent=0 // loop_header
    %s10 = sphi 0, %s14
    %p11 = scmp.ge.s32.totalorder %s10, 4
    %s17 = sphi 0, %s36
    %s18 = sphi 0, %s32
    %s19 = sphi 0, %s28
    %s20 = sphi 0, %s17
    %s21 = sphi 0, %s18
    %s22 = sphi 0, %s19
    %s23 = sphi 0, %s20
    %s24 = sphi 0, %s21
    %s25 = sphi 0, %s22
    %s41 = sphi 0, %s43
    %s44 = sphi 0, %s41
    %s45 = sphi 0, %s44
    %s61 = sphi 0, %s45
    %s69 = sphi 0, %s71
    %s72 = sphi 0, %s69
    %s73 = sphi 0, %s72
    %s89 = sphi 0, %s73
    %s95 = sphi 0, %s97
    %s98 = sphi 0, %s95
    %s99 = sphi 0, %s98
    %s115 = sphi 0, %s99
    %s123 = sphi 0, %s125
    %s126 = sphi 0, %s123
    %s127 = sphi 0, %s126
    %s143 = sphi 0, %s127
    %s151 = sphi 0, %s153
    %s154 = sphi 0, %s151
    %s155 = sphi 0, %s154
    %s171 = sphi 0, %s155
  $region4: #{conv2d_bn_relu.1} parent=0 // loop_header_branch
    %13 = sbr.rel (%p11) target = $region8
  $region5: #{conv2d_bn_relu.1} parent=0 // loop_body
    %s15 = ssub.s32 %s10, 1
    %s16 = ssub.s32 %s10, 2
    %s26 = sadd.s32 1, %s19
    %p27 = scmp.ge.s32.totalorder %s26, 1
    %s28 = scalar_select %p27, 0, %s26
    %s29 = sadd.s32 1, %s18
    %s30 = scalar_select %p27, %s29, %s18
    %p31 = scmp.ge.s32.totalorder %s30, 2
    %s32 = scalar_select %p31, 0, %s30
    %s33 = sadd.s32 1, %s17
    %s34 = scalar_select %p31, %s33, %s17
    %p35 = scmp.ge.s32.totalorder %s34, 1
    %s36 = scalar_select %p35, 0, %s34
    %s37 = ssub.s32 %s18, %s32
    %s38 = ssub.s32 %s19, %s28
    %s39 = sor.u32 %s37, %s38
    %p40 = scmp.eq.s32.totalorder %s39, 0
    %s42 = sadd.s32 %s41, 1
    %s43 = scalar_select %p40, %s41, %s42
    %p46 = pneg %p40
    %p47 = scmp.eq.s32.totalorder %s10, 1
    %p48 = por %p46, %p47
    %p49 = scmp.ne.s32.totalorder %s41, %s44
    %p50 = scmp.eq.s32.totalorder %s10, 0
    %p51 = por %p49, %p50
    %p52 = scmp.ne.s32.totalorder %s41, %s44
    %p53 = scmp.eq.s32.totalorder %s15, 1
    %p54 = por %p52, %p53
    %p55 = scmp.ne.s32.totalorder %s44, %s45
    %p56 = scmp.eq.s32.totalorder %s15, 0
    %p57 = por %p55, %p56
    %p58 = scmp.ne.s32.totalorder %s44, %s45
    %p59 = scmp.eq.s32.totalorder %s16, 1
    %p60 = por %p58, %p59
    %p62 = scmp.ne.s32.totalorder %s45, %s61
    %p63 = scmp.eq.s32.totalorder %s16, 0
    %p64 = por %p62, %p63
    %s65 = ssub.s32 %s19, %s28
    %s66 = ssub.s32 %s17, %s36
    %s67 = sor.u32 %s65, %s66
    %p68 = scmp.eq.s32.totalorder %s67, 0
    %s70 = sadd.s32 %s69, 1
    %s71 = scalar_select %p68, %s69, %s70
    %p74 = pneg %p68
    %p75 = scmp.eq.s32.totalorder %s10, 1
    %p76 = por %p74, %p75
    %p77 = scmp.ne.s32.totalorder %s69, %s72
    %p78 = scmp.eq.s32.totalorder %s10, 0
    %p79 = por %p77, %p78
    %p80 = scmp.ne.s32.totalorder %s69, %s72
    %p81 = scmp.eq.s32.totalorder %s15, 1
    %p82 = por %p80, %p81
    %p83 = scmp.ne.s32.totalorder %s72, %s73
    %p84 = scmp.eq.s32.totalorder %s15, 0
    %p85 = por %p83, %p84
    %p86 = scmp.ne.s32.totalorder %s72, %s73
    %p87 = scmp.eq.s32.totalorder %s16, 1
    %p88 = por %p86, %p87
    %p90 = scmp.ne.s32.totalorder %s73, %s89
    %p91 = scmp.eq.s32.totalorder %s16, 0
    %p92 = por %p90, %p91
    %s93 = ssub.s32 %s17, %s36
    %p94 = scmp.eq.s32.totalorder %s93, 0
    %s96 = sadd.s32 %s95, 1
    %s97 = scalar_select %p94, %s95, %s96
    %p100 = pneg %p94
    %p101 = scmp.eq.s32.totalorder %s10, 1
    %p102 = por %p100, %p101
    %p103 = scmp.ne.s32.totalorder %s95, %s98
    %p104 = scmp.eq.s32.totalorder %s10, 0
    %p105 = por %p103, %p104
    %p106 = scmp.ne.s32.totalorder %s95, %s98
    %p107 = scmp.eq.s32.totalorder %s15, 1
    %p108 = por %p106, %p107
    %p109 = scmp.ne.s32.totalorder %s98, %s99
    %p110 = scmp.eq.s32.totalorder %s15, 0
    %p111 = por %p109, %p110
    %p112 = scmp.ne.s32.totalorder %s98, %s99
    %p113 = scmp.eq.s32.totalorder %s16, 1
    %p114 = por %p112, %p113
    %p116 = scmp.ne.s32.totalorder %s99, %s115
    %p117 = scmp.eq.s32.totalorder %s16, 0
    %p118 = por %p116, %p117
    %s119 = ssub.s32 %s18, %s32
    %s120 = ssub.s32 %s17, %s36
    %s121 = sor.u32 %s119, %s120
    %p122 = scmp.eq.s32.totalorder %s121, 0
    %s124 = sadd.s32 %s123, 1
    %s125 = scalar_select %p122, %s123, %s124
    %p128 = pneg %p122
    %p129 = scmp.eq.s32.totalorder %s10, 1
    %p130 = por %p128, %p129
    %p131 = scmp.ne.s32.totalorder %s123, %s126
    %p132 = scmp.eq.s32.totalorder %s10, 0
    %p133 = por %p131, %p132
    %p134 = scmp.ne.s32.totalorder %s123, %s126
    %p135 = scmp.eq.s32.totalorder %s15, 1
    %p136 = por %p134, %p135
    %p137 = scmp.ne.s32.totalorder %s126, %s127
    %p138 = scmp.eq.s32.totalorder %s15, 0
    %p139 = por %p137, %p138
    %p140 = scmp.ne.s32.totalorder %s126, %s127
    %p141 = scmp.eq.s32.totalorder %s16, 1
    %p142 = por %p140, %p141
    %p144 = scmp.ne.s32.totalorder %s127, %s143
    %p145 = scmp.eq.s32.totalorder %s16, 0
    %p146 = por %p144, %p145
    %s147 = ssub.s32 %s18, %s32
    %s148 = ssub.s32 %s17, %s36
    %s149 = sor.u32 %s147, %s148
    %p150 = scmp.eq.s32.totalorder %s149, 0
    %s152 = sadd.s32 %s151, 1
    %s153 = scalar_select %p150, %s151, %s152
    %p156 = pneg %p150
    %p157 = scmp.eq.s32.totalorder %s10, 1
    %p158 = por %p156, %p157
    %p159 = scmp.ne.s32.totalorder %s151, %s154
    %p160 = scmp.eq.s32.totalorder %s10, 0
    %p161 = por %p159, %p160
    %p162 = scmp.ne.s32.totalorder %s151, %s154
    %p163 = scmp.eq.s32.totalorder %s15, 1
    %p164 = por %p162, %p163
    %p165 = scmp.ne.s32.totalorder %s154, %s155
    %p166 = scmp.eq.s32.totalorder %s15, 0
    %p167 = por %p165, %p166
    %p168 = scmp.ne.s32.totalorder %s154, %s155
    %p169 = scmp.eq.s32.totalorder %s16, 1
    %p170 = por %p168, %p169
    %p172 = scmp.ne.s32.totalorder %s155, %s171
    %p173 = scmp.eq.s32.totalorder %s16, 0
    %p174 = por %p172, %p173
    %p175 = scmp.le.s32.totalorder 1, %s10
    %p176 = scmp.lt.s32.totalorder %s10, 3
    %p177 = pnand %p175, %p176
    %p178 = pneg %p177
    // Predicated region
    $region9: #{conv2d_bn_relu.1} parent=5 // pred_check
      _
    $region10: #{conv2d_bn_relu.1} parent=5 // pred_check_branch
      %180 = sbr.rel (%p177) target = $region12
    $region11: #{conv2d_bn_relu.1} parent=5 // pred_region
      %s181 = ssub.s32 %s10, 1
      // Predicated region
      $region13: #{conv2d_bn_relu.1} parent=11 // pred_check
        %p182 = pneg %p85
      $region14: #{conv2d_bn_relu.1} parent=11 // pred_check_branch
        %184 = sbr.rel (%p182) target = $region16
      $region15: #{conv2d_bn_relu.1} parent=11 // pred_region
        %p185 = scmp.lt.s32.totalorder %s22, 0
        %s186 = scalar_select %p185, %s22, 0
        %p187 = scmp.lt.s32.totalorder %s20, 0
        %s188 = scalar_select %p187, %s20, 0
        %s189 = smul.addr %s186, 18
        %s190 = sadd.s32 %s188, %s189
        %s191 = smul.addr %s190, 4
        %s192 = scalar_lea.vmem %s1, %s191
      $region16: #{conv2d_bn_relu.1} parent=11 // pred_fallthru
        _
      // Predicated region
      $region17: #{conv2d_bn_relu.1} parent=11 // pred_check
        %p193 = pneg %p111
      $region18: #{conv2d_bn_relu.1} parent=11 // pred_check_branch
        %195 = sbr.rel (%p193) target = $region20
      $region19: #{conv2d_bn_relu.1} parent=11 // pred_region
        %p196 = scmp.lt.s32.totalorder %s20, 0
        %s197 = scalar_select %p196, %s20, 0
        %s198 = scalar_lea.vmem %s2, %s197
      $region20: #{conv2d_bn_relu.1} parent=11 // pred_fallthru
        _
    $region12: #{conv2d_bn_relu.1} parent=5 // pred_fallthru
      _
    %p199 = scmp.lt.s32.totalorder %s10, 2
    // Predicated region
    $region21: #{conv2d_bn_relu.1} parent=5 // pred_check
      %p200 = pneg %p199
    $region22: #{conv2d_bn_relu.1} parent=5 // pred_check_branch
      %202 = sbr.rel (%p200) target = $region24
    $region23: #{conv2d_bn_relu.1} parent=5 // pred_region
      // Predicated region
      $region25: #{conv2d_bn_relu.1} parent=23 // pred_check
        %p203 = pneg %p51
      $region26: #{conv2d_bn_relu.1} parent=23 // pred_check_branch
        %205 = sbr.rel (%p203) target = $region28
      $region27: #{conv2d_bn_relu.1} parent=23 // pred_region
        %p206 = scmp.lt.s32.totalorder %s18, 1
        %s207 = scalar_select %p206, %s18, 1
        %p208 = scmp.lt.s32.totalorder %s19, 0
        %s209 = scalar_select %p208, %s19, 0
        %s210 = smul.addr %s207, 54
        %s211 = sadd.s32 %s209, %s210
        %s212 = smul.addr %s211, 4
        %s213 = scalar_lea.vmem %s0, %s212
      $region28: #{conv2d_bn_relu.1} parent=23 // pred_fallthru
        _
      // Predicated region
      $region29: #{conv2d_bn_relu.1} parent=23 // pred_check
        %p214 = pneg %p133
      $region30: #{conv2d_bn_relu.1} parent=23 // pred_check_branch
        %216 = sbr.rel (%p214) target = $region32
      $region31: #{conv2d_bn_relu.1} parent=23 // pred_region
        %p217 = scmp.lt.s32.totalorder %s18, 1
        %s218 = scalar_select %p217, %s18, 1
        %p219 = scmp.lt.s32.totalorder %s17, 0
        %s220 = scalar_select %p219, %s17, 0
        %s221 = smul.addr %s218, 32
        %s222 = sadd.s32 %s220, %s221
        %s223 = smul.addr %s222, 4
        %s224 = scalar_lea.vmem %s3, %s223
      $region32: #{conv2d_bn_relu.1} parent=23 // pred_fallthru
        _
    $region24: #{conv2d_bn_relu.1} parent=5 // pred_fallthru
      _
    %p225 = scmp.le.s32.totalorder 1, %s10
    %p226 = scmp.lt.s32.totalorder %s10, 3
    %p227 = pnand %p225, %p226
    %p228 = pneg %p227
    // Predicated region
    $region33: #{conv2d_bn_relu.1} parent=5 // pred_check
      _
    $region34: #{conv2d_bn_relu.1} parent=5 // pred_check_branch
      %230 = sbr.rel (%p227) target = $region36
    $region35: #{conv2d_bn_relu.1} parent=5 // pred_region
      %s231 = ssub.s32 %s10, 1
      %p232 = scmp.lt.s32.totalorder %s21, 1
      %s233 = scalar_select %p232, %s21, 1
      %p234 = scmp.lt.s32.totalorder %s22, 0
      %s235 = scalar_select %p234, %s22, 0
      %s236 = smul.addr %s233, 54
      %s237 = sadd.s32 %s235, %s236
      %s238 = smul.addr %s237, 4
      %s239 = scalar_lea.vmem %s0, %s238
      %p240 = pneg %p57
      %p241 = pneg %p54
      %p242 = scmp.lt.s32.totalorder %s22, 0
      %s243 = scalar_select %p242, %s22, 0
      %p244 = scmp.lt.s32.totalorder %s20, 0
      %s245 = scalar_select %p244, %s20, 0
      %s246 = smul.addr %s243, 18
      %s247 = sadd.s32 %s245, %s246
      %s248 = smul.addr %s247, 4
      %s249 = scalar_lea.vmem %s1, %s248
      %p250 = pneg %p85
      %p251 = pneg %p82
      %p252 = scmp.lt.s32.totalorder %s20, 0
      %s253 = scalar_select %p252, %s20, 0
      %s254 = scalar_lea.vmem %s2, %s253
      %p255 = pneg %p111
      %p256 = pneg %p108
      %p257 = scmp.lt.s32.totalorder %s21, 1
      %s258 = scalar_select %p257, %s21, 1
      %p259 = scmp.lt.s32.totalorder %s20, 0
      %s260 = scalar_select %p259, %s20, 0
      %s261 = smul.addr %s258, 32
      %s262 = sadd.s32 %s260, %s261
      %s263 = smul.addr %s262, 4
      %s264 = scalar_lea.vmem %s3, %s263
      %p265 = pneg %p139
      %p266 = pneg %p136
      %p267 = pneg %p167
      %p268 = pneg %p164
      %p269 = scmp.lt.s32.totalorder %s21, 1
      %s270 = scalar_select %p269, %s21, 1
      %p271 = scmp.lt.s32.totalorder %s20, 0
      %s272 = scalar_select %p271, %s20, 0
      %s273 = smul.addr %s270, 32
      %s274 = sadd.s32 %s272, %s273
      %s275 = smul.addr %s274, 8
      %s276 = scalar_lea.vmem %s4, %s275
      %p277 = scmp.lt.s32.totalorder %s21, 1
      %s278 = scalar_select %p277, %s21, 1
      %p279 = scmp.lt.s32.totalorder %s22, 0
      %s280 = scalar_select %p279, %s22, 0
      %s281 = smul.addr %s278, 54
      %s282 = sadd.s32 %s280, %s281
      %s283 = smul.addr %s282, 4
      %s284 = scalar_lea.vmem %s0, %s283
      %p285 = scmp.lt.s32.totalorder %s22, 0
      %s286 = scalar_select %p285, %s22, 0
      %p287 = scmp.lt.s32.totalorder %s20, 0
      %s288 = scalar_select %p287, %s20, 0
      %s289 = smul.addr %s286, 18
      %s290 = sadd.s32 %s288, %s289
      %s291 = smul.addr %s290, 4
      %s292 = scalar_lea.vmem %s1, %s291
      %p293 = scmp.lt.s32.totalorder %s20, 0
      %s294 = scalar_select %p293, %s20, 0
      %s295 = scalar_lea.vmem %s2, %s294
      %p296 = scmp.lt.s32.totalorder %s21, 1
      %s297 = scalar_select %p296, %s21, 1
      %p298 = scmp.lt.s32.totalorder %s20, 0
      %s299 = scalar_select %p298, %s20, 0
      %s300 = smul.addr %s297, 32
      %s301 = sadd.s32 %s299, %s300
      %s302 = smul.addr %s301, 4
      %s303 = scalar_lea.vmem %s3, %s302
      %p304 = scmp.lt.s32.totalorder %s21, 1
      %s305 = scalar_select %p304, %s21, 1
      %p306 = scmp.lt.s32.totalorder %s20, 0
      %s307 = scalar_select %p306, %s20, 0
      %s308 = smul.addr %s305, 32
      %s309 = sadd.s32 %s307, %s308
      %s310 = smul.addr %s309, 8
      %s311 = scalar_lea.vmem %s4, %s310
      %v313 = vld [vmem:[%s284] sm:$0xf]
      %v314 = vld [vmem:[%s284 + $0x4] sm:$0xf]
      %v315 = vld [vmem:[%s284 + $0xc] sm:$0xf]
      %v316 = vld [vmem:[%s284 + $0x10] sm:$0xf]
      %v317 = vld [vmem:[%s284 + $0x18] sm:$0xf]
      %v318 = vld [vmem:[%s284 + $0x1c] sm:$0xf]
      %v319 = vld [vmem:[%s284 + $0x24] sm:$0xf]
      %v320 = vld [vmem:[%s284 + $0x28] sm:$0xf]
      %v321 = vld [vmem:[%s284 + $0x30] sm:$0xf]
      %v322 = vld [vmem:[%s284 + $0x34] sm:$0xf]
      %v323 = vld [vmem:[%s284 + $0x3c] sm:$0xf]
      %v324 = vld [vmem:[%s284 + $0x40] sm:$0xf]
      %v325 = vld [vmem:[%s284 + $0x48] sm:$0xf]
      %v326 = vld [vmem:[%s284 + $0x4c] sm:$0xf]
      %v327 = vld [vmem:[%s284 + $0x54] sm:$0xf]
      %v328 = vld [vmem:[%s284 + $0x58] sm:$0xf]
      %v329 = vld [vmem:[%s284 + $0x60] sm:$0xf]
      %v330 = vld [vmem:[%s284 + $0x64] sm:$0xf]
      %v331 = vld [vmem:[%s284 + $0x6c] sm:$0xf]
      %v332 = vld [vmem:[%s284 + $0x70] sm:$0xf]
      %v333 = vld [vmem:[%s284 + $0x78] sm:$0xf]
      %v334 = vld [vmem:[%s284 + $0x7c] sm:$0xf]
      %v335 = vld [vmem:[%s284 + $0x84] sm:$0xf]
      %v336 = vld [vmem:[%s284 + $0x88] sm:$0xf]
      %v337 = vld [vmem:[%s284 + $0x90] sm:$0xf]
      %v338 = vld [vmem:[%s284 + $0x94] sm:$0xf]
      %v339 = vld [vmem:[%s284 + $0x9c] sm:$0xf]
      %v340 = vld [vmem:[%s284 + $0xa0] sm:$0xf]
      %v341 = vld [vmem:[%s284 + $0xa8] sm:$0xf]
      %v342 = vld [vmem:[%s284 + $0xac] sm:$0xf]
      %v343 = vld [vmem:[%s284 + $0xb4] sm:$0xf]
      %v344 = vld [vmem:[%s284 + $0xb8] sm:$0xf]
      %vm345 = vcmask 125952
      %346 = vst.msk [vmem:[#allocation2] sm:$0xf] %vm345, %v313
      %347 = vst.msk [vmem:[#allocation2 + $0x8] sm:$0xf] %vm345, %v314
      %348 = vst.msk [vmem:[#allocation2 + $0x10] sm:$0xf] %vm345, %v315
      %349 = vst.msk [vmem:[#allocation2 + $0x18] sm:$0xf] %vm345, %v316
      %350 = vst.msk [vmem:[#allocation2 + $0x20] sm:$0xf] %vm345, %v317
      %351 = vst.msk [vmem:[#allocation2 + $0x28] sm:$0xf] %vm345, %v318
      %352 = vst.msk [vmem:[#allocation2 + $0x30] sm:$0xf] %vm345, %v319
      %353 = vst.msk [vmem:[#allocation2 + $0x38] sm:$0xf] %vm345, %v320
      %354 = vst.msk [vmem:[#allocation2 + $0x40] sm:$0xf] %vm345, %v321
      %355 = vst.msk [vmem:[#allocation2 + $0x48] sm:$0xf] %vm345, %v322
      %356 = vst.msk [vmem:[#allocation2 + $0x50] sm:$0xf] %vm345, %v323
      %357 = vst.msk [vmem:[#allocation2 + $0x58] sm:$0xf] %vm345, %v324
      %358 = vst.msk [vmem:[#allocation2 + $0x60] sm:$0xf] %vm345, %v325
      %359 = vst.msk [vmem:[#allocation2 + $0x68] sm:$0xf] %vm345, %v326
      %360 = vst.msk [vmem:[#allocation2 + $0x70] sm:$0xf] %vm345, %v327
      %361 = vst.msk [vmem:[#allocation2 + $0x78] sm:$0xf] %vm345, %v328
      %362 = vst.msk [vmem:[#allocation2 + $0x80] sm:$0xf] %vm345, %v329
      %363 = vst.msk [vmem:[#allocation2 + $0x88] sm:$0xf] %vm345, %v330
      %364 = vst.msk [vmem:[#allocation2 + $0x90] sm:$0xf] %vm345, %v331
      %365 = vst.msk [vmem:[#allocation2 + $0x98] sm:$0xf] %vm345, %v332
      %366 = vst.msk [vmem:[#allocation2 + $0xa0] sm:$0xf] %vm345, %v333
      %367 = vst.msk [vmem:[#allocation2 + $0xa8] sm:$0xf] %vm345, %v334
      %368 = vst.msk [vmem:[#allocation2 + $0xb0] sm:$0xf] %vm345, %v335
      %369 = vst.msk [vmem:[#allocation2 + $0xb8] sm:$0xf] %vm345, %v336
      %370 = vst.msk [vmem:[#allocation2 + $0xc0] sm:$0xf] %vm345, %v337
      %371 = vst.msk [vmem:[#allocation2 + $0xc8] sm:$0xf] %vm345, %v338
      %372 = vst.msk [vmem:[#allocation2 + $0xd0] sm:$0xf] %vm345, %v339
      %373 = vst.msk [vmem:[#allocation2 + $0xd8] sm:$0xf] %vm345, %v340
      %374 = vst.msk [vmem:[#allocation2 + $0xe0] sm:$0xf] %vm345, %v341
      %375 = vst.msk [vmem:[#allocation2 + $0xe8] sm:$0xf] %vm345, %v342
      %376 = vst.msk [vmem:[#allocation2 + $0xf0] sm:$0xf] %vm345, %v343
      %377 = vst.msk [vmem:[#allocation2 + $0xf8] sm:$0xf] %vm345, %v344
      %v378 = vld [vmem:[%s284] sm:$0xf]
      %v379 = vld [vmem:[%s284 + $0x4] sm:$0xf]
      %v380 = vld [vmem:[%s284 + $0x8] sm:$0x1]
      %v381 = vld [vmem:[%s284 + $0xc] sm:$0xf]
      %v382 = vld [vmem:[%s284 + $0x10] sm:$0xf]
      %v383 = vld [vmem:[%s284 + $0x14] sm:$0x1]
      %v384 = vld [vmem:[%s284 + $0x18] sm:$0xf]
      %v385 = vld [vmem:[%s284 + $0x1c] sm:$0xf]
      %v386 = vld [vmem:[%s284 + $0x20] sm:$0x1]
      %v387 = vld [vmem:[%s284 + $0x24] sm:$0xf]
      %v388 = vld [vmem:[%s284 + $0x28] sm:$0xf]
      %v389 = vld [vmem:[%s284 + $0x2c] sm:$0x1]
      %v390 = vld [vmem:[%s284 + $0x30] sm:$0xf]
      %v391 = vld [vmem:[%s284 + $0x34] sm:$0xf]
      %v392 = vld [vmem:[%s284 + $0x38] sm:$0x1]
      %v393 = vld [vmem:[%s284 + $0x3c] sm:$0xf]
      %v394 = vld [vmem:[%s284 + $0x40] sm:$0xf]
      %v395 = vld [vmem:[%s284 + $0x44] sm:$0x1]
      %v396 = vld [vmem:[%s284 + $0x48] sm:$0xf]
      %v397 = vld [vmem:[%s284 + $0x4c] sm:$0xf]
      %v398 = vld [vmem:[%s284 + $0x50] sm:$0x1]
      %v399 = vld [vmem:[%s284 + $0x54] sm:$0xf]
      %v400 = vld [vmem:[%s284 + $0x58] sm:$0xf]
      %v401 = vld [vmem:[%s284 + $0x5c] sm:$0x1]
      %v402 = vld [vmem:[%s284 + $0x60] sm:$0xf]
      %v403 = vld [vmem:[%s284 + $0x64] sm:$0xf]
      %v404 = vld [vmem:[%s284 + $0x68] sm:$0x1]
      %v405 = vld [vmem:[%s284 + $0x6c] sm:$0xf]
      %v406 = vld [vmem:[%s284 + $0x70] sm:$0xf]
      %v407 = vld [vmem:[%s284 + $0x74] sm:$0x1]
      %v408 = vld [vmem:[%s284 + $0x78] sm:$0xf]
      %v409 = vld [vmem:[%s284 + $0x7c] sm:$0xf]
      %v410 = vld [vmem:[%s284 + $0x80] sm:$0x1]
      %v411 = vld [vmem:[%s284 + $0x84] sm:$0xf]
      %v412 = vld [vmem:[%s284 + $0x88] sm:$0xf]
      %v413 = vld [vmem:[%s284 + $0x8c] sm:$0x1]
      %v414 = vld [vmem:[%s284 + $0x90] sm:$0xf]
      %v415 = vld [vmem:[%s284 + $0x94] sm:$0xf]
      %v416 = vld [vmem:[%s284 + $0x98] sm:$0x1]
      %v417 = vld [vmem:[%s284 + $0x9c] sm:$0xf]
      %v418 = vld [vmem:[%s284 + $0xa0] sm:$0xf]
      %v419 = vld [vmem:[%s284 + $0xa4] sm:$0x1]
      %v420 = vld [vmem:[%s284 + $0xa8] sm:$0xf]
      %v421 = vld [vmem:[%s284 + $0xac] sm:$0xf]
      %v422 = vld [vmem:[%s284 + $0xb0] sm:$0x1]
      %v423 = vld [vmem:[%s284 + $0xb4] sm:$0xf]
      %v424 = vld [vmem:[%s284 + $0xb8] sm:$0xf]
      %v425 = vld [vmem:[%s284 + $0xbc] sm:$0x1]
      %vm426 = vsmask.f32 3328
      %vm427 = vsmask.f32 7440
      %vm428 = vmor %vm426, %vm427
      %v430 = vshrl.u32 %v378, 16
      %v432 = vrot.slane %v430, 4
      %v433 = vshll.u32 %v378, 16
      %v435 = vrot.slane %v433, 5
      %v436 = vor.u32 %v432, %v435
      %v437 = vrot.slane %v436, 4
      %v439 = vshll.u32 %v379, 16
      %v441 = vrot.slane %v439, 5
      %v442 = vsel %vm428, %v437, %v441
      %v443 = vshrl.u32 %v379, 16
      %v445 = vrot.slane %v443, 4
      %v446 = vor.u32 %v445, %v441
      %v447 = vrot.slane %v446, 4
      %v449 = vshll.u32 %v380, 16
      %v451 = vrot.slane %v449, 5
      %v452 = vsel %vm428, %v447, %v451
      %v454 = vshrl.u32 %v381, 16
      %v456 = vrot.slane %v454, 4
      %v457 = vshll.u32 %v381, 16
      %v459 = vrot.slane %v457, 5
      %v460 = vor.u32 %v456, %v459
      %v461 = vrot.slane %v460, 4
      %v463 = vshll.u32 %v382, 16
      %v465 = vrot.slane %v463, 5
      %v466 = vsel %vm428, %v461, %v465
      %v467 = vshrl.u32 %v382, 16
      %v469 = vrot.slane %v467, 4
      %v470 = vor.u32 %v469, %v465
      %v471 = vrot.slane %v470, 4
      %v473 = vshll.u32 %v383, 16
      %v475 = vrot.slane %v473, 5
      %v476 = vsel %vm428, %v471, %v475
      %v478 = vshrl.u32 %v384, 16
      %v480 = vrot.slane %v478, 4
      %v481 = vshll.u32 %v384, 16
      %v483 = vrot.slane %v481, 5
      %v484 = vor.u32 %v480, %v483
      %v485 = vrot.slane %v484, 4
      %v487 = vshll.u32 %v385, 16
      %v489 = vrot.slane %v487, 5
      %v490 = vsel %vm428, %v485, %v489
      %v491 = vshrl.u32 %v385, 16
      %v493 = vrot.slane %v491, 4
      %v494 = vor.u32 %v493, %v489
      %v495 = vrot.slane %v494, 4
      %v497 = vshll.u32 %v386, 16
      %v499 = vrot.slane %v497, 5
      %v500 = vsel %vm428, %v495, %v499
      %v502 = vshrl.u32 %v387, 16
      %v504 = vrot.slane %v502, 4
      %v505 = vshll.u32 %v387, 16
      %v507 = vrot.slane %v505, 5
      %v508 = vor.u32 %v504, %v507
      %v509 = vrot.slane %v508, 4
      %v511 = vshll.u32 %v388, 16
      %v513 = vrot.slane %v511, 5
      %v514 = vsel %vm428, %v509, %v513
      %v515 = vshrl.u32 %v388, 16
      %v517 = vrot.slane %v515, 4
      %v518 = vor.u32 %v517, %v513
      %v519 = vrot.slane %v518, 4
      %v521 = vshll.u32 %v389, 16
      %v523 = vrot.slane %v521, 5
      %v524 = vsel %vm428, %v519, %v523
      %v526 = vshrl.u32 %v390, 16
      %v528 = vrot.slane %v526, 4
      %v529 = vshll.u32 %v390, 16
      %v531 = vrot.slane %v529, 5
      %v532 = vor.u32 %v528, %v531
      %v533 = vrot.slane %v532, 4
      %v535 = vshll.u32 %v391, 16
      %v537 = vrot.slane %v535, 5
      %v538 = vsel %vm428, %v533, %v537
      %v539 = vshrl.u32 %v391, 16
      %v541 = vrot.slane %v539, 4
      %v542 = vor.u32 %v541, %v537
      %v543 = vrot.slane %v542, 4
      %v545 = vshll.u32 %v392, 16
      %v547 = vrot.slane %v545, 5
      %v548 = vsel %vm428, %v543, %v547
      %v550 = vshrl.u32 %v393, 16
      %v552 = vrot.slane %v550, 4
      %v553 = vshll.u32 %v393, 16
      %v555 = vrot.slane %v553, 5
      %v556 = vor.u32 %v552, %v555
      %v557 = vrot.slane %v556, 4
      %v559 = vshll.u32 %v394, 16
      %v561 = vrot.slane %v559, 5
      %v562 = vsel %vm428, %v557, %v561
      %v563 = vshrl.u32 %v394, 16
      %v565 = vrot.slane %v563, 4
      %v566 = vor.u32 %v565, %v561
      %v567 = vrot.slane %v566, 4
      %v569 = vshll.u32 %v395, 16
      %v571 = vrot.slane %v569, 5
      %v572 = vsel %vm428, %v567, %v571
      %v574 = vshrl.u32 %v396, 16
      %v576 = vrot.slane %v574, 4
      %v577 = vshll.u32 %v396, 16
      %v579 = vrot.slane %v577, 5
      %v580 = vor.u32 %v576, %v579
      %v581 = vrot.slane %v580, 4
      %v583 = vshll.u32 %v397, 16
      %v585 = vrot.slane %v583, 5
      %v586 = vsel %vm428, %v581, %v585
      %v587 = vshrl.u32 %v397, 16
      %v589 = vrot.slane %v587, 4
      %v590 = vor.u32 %v589, %v585
      %v591 = vrot.slane %v590, 4
      %v593 = vshll.u32 %v398, 16
      %v595 = vrot.slane %v593, 5
      %v596 = vsel %vm428, %v591, %v595
      %v598 = vshrl.u32 %v399, 16
      %v600 = vrot.slane %v598, 4
      %v601 = vshll.u32 %v399, 16
      %v603 = vrot.slane %v601, 5
      %v604 = vor.u32 %v600, %v603
      %v605 = vrot.slane %v604, 4
      %v607 = vshll.u32 %v400, 16
      %v609 = vrot.slane %v607, 5
      %v610 = vsel %vm428, %v605, %v609
      %v611 = vshrl.u32 %v400, 16
      %v613 = vrot.slane %v611, 4
      %v614 = vor.u32 %v613, %v609
      %v615 = vrot.slane %v614, 4
      %v617 = vshll.u32 %v401, 16
      %v619 = vrot.slane %v617, 5
      %v620 = vsel %vm428, %v615, %v619
      %v622 = vshrl.u32 %v402, 16
      %v624 = vrot.slane %v622, 4
      %v625 = vshll.u32 %v402, 16
      %v627 = vrot.slane %v625, 5
      %v628 = vor.u32 %v624, %v627
      %v629 = vrot.slane %v628, 4
      %v631 = vshll.u32 %v403, 16
      %v633 = vrot.slane %v631, 5
      %v634 = vsel %vm428, %v629, %v633
      %v635 = vshrl.u32 %v403, 16
      %v637 = vrot.slane %v635, 4
      %v638 = vor.u32 %v637, %v633
      %v639 = vrot.slane %v638, 4
      %v641 = vshll.u32 %v404, 16
      %v643 = vrot.slane %v641, 5
      %v644 = vsel %vm428, %v639, %v643
      %v646 = vshrl.u32 %v405, 16
      %v648 = vrot.slane %v646, 4
      %v649 = vshll.u32 %v405, 16
      %v651 = vrot.slane %v649, 5
      %v652 = vor.u32 %v648, %v651
      %v653 = vrot.slane %v652, 4
      %v655 = vshll.u32 %v406, 16
      %v657 = vrot.slane %v655, 5
      %v658 = vsel %vm428, %v653, %v657
      %v659 = vshrl.u32 %v406, 16
      %v661 = vrot.slane %v659, 4
      %v662 = vor.u32 %v661, %v657
      %v663 = vrot.slane %v662, 4
      %v665 = vshll.u32 %v407, 16
      %v667 = vrot.slane %v665, 5
      %v668 = vsel %vm428, %v663, %v667
      %v670 = vshrl.u32 %v408, 16
      %v672 = vrot.slane %v670, 4
      %v673 = vshll.u32 %v408, 16
      %v675 = vrot.slane %v673, 5
      %v676 = vor.u32 %v672, %v675
      %v677 = vrot.slane %v676, 4
      %v679 = vshll.u32 %v409, 16
      %v681 = vrot.slane %v679, 5
      %v682 = vsel %vm428, %v677, %v681
      %v683 = vshrl.u32 %v409, 16
      %v685 = vrot.slane %v683, 4
      %v686 = vor.u32 %v685, %v681
      %v687 = vrot.slane %v686, 4
      %v689 = vshll.u32 %v410, 16
      %v691 = vrot.slane %v689, 5
      %v692 = vsel %vm428, %v687, %v691
      %v694 = vshrl.u32 %v411, 16
      %v696 = vrot.slane %v694, 4
      %v697 = vshll.u32 %v411, 16
      %v699 = vrot.slane %v697, 5
      %v700 = vor.u32 %v696, %v699
      %v701 = vrot.slane %v700, 4
      %v703 = vshll.u32 %v412, 16
      %v705 = vrot.slane %v703, 5
      %v706 = vsel %vm428, %v701, %v705
      %v707 = vshrl.u32 %v412, 16
      %v709 = vrot.slane %v707, 4
      %v710 = vor.u32 %v709, %v705
      %v711 = vrot.slane %v710, 4
      %v713 = vshll.u32 %v413, 16
      %v715 = vrot.slane %v713, 5
      %v716 = vsel %vm428, %v711, %v715
      %v718 = vshrl.u32 %v414, 16
      %v720 = vrot.slane %v718, 4
      %v721 = vshll.u32 %v414, 16
      %v723 = vrot.slane %v721, 5
      %v724 = vor.u32 %v720, %v723
      %v725 = vrot.slane %v724, 4
      %v727 = vshll.u32 %v415, 16
      %v729 = vrot.slane %v727, 5
      %v730 = vsel %vm428, %v725, %v729
      %v731 = vshrl.u32 %v415, 16
      %v733 = vrot.slane %v731, 4
      %v734 = vor.u32 %v733, %v729
      %v735 = vrot.slane %v734, 4
      %v737 = vshll.u32 %v416, 16
      %v739 = vrot.slane %v737, 5
      %v740 = vsel %vm428, %v735, %v739
      %v742 = vshrl.u32 %v417, 16
      %v744 = vrot.slane %v742, 4
      %v745 = vshll.u32 %v417, 16
      %v747 = vrot.slane %v745, 5
      %v748 = vor.u32 %v744, %v747
      %v749 = vrot.slane %v748, 4
      %v751 = vshll.u32 %v418, 16
      %v753 = vrot.slane %v751, 5
      %v754 = vsel %vm428, %v749, %v753
      %v755 = vshrl.u32 %v418, 16
      %v757 = vrot.slane %v755, 4
      %v758 = vor.u32 %v757, %v753
      %v759 = vrot.slane %v758, 4
      %v761 = vshll.u32 %v419, 16
      %v763 = vrot.slane %v761, 5
      %v764 = vsel %vm428, %v759, %v763
      %v766 = vshrl.u32 %v420, 16
      %v768 = vrot.slane %v766, 4
      %v769 = vshll.u32 %v420, 16
      %v771 = vrot.slane %v769, 5
      %v772 = vor.u32 %v768, %v771
      %v773 = vrot.slane %v772, 4
      %v775 = vshll.u32 %v421, 16
      %v777 = vrot.slane %v775, 5
      %v778 = vsel %vm428, %v773, %v777
      %v779 = vshrl.u32 %v421, 16
      %v781 = vrot.slane %v779, 4
      %v782 = vor.u32 %v781, %v777
      %v783 = vrot.slane %v782, 4
      %v785 = vshll.u32 %v422, 16
      %v787 = vrot.slane %v785, 5
      %v788 = vsel %vm428, %v783, %v787
      %v790 = vshrl.u32 %v423, 16
      %v792 = vrot.slane %v790, 4
      %v793 = vshll.u32 %v423, 16
      %v795 = vrot.slane %v793, 5
      %v796 = vor.u32 %v792, %v795
      %v797 = vrot.slane %v796, 4
      %v799 = vshll.u32 %v424, 16
      %v801 = vrot.slane %v799, 5
      %v802 = vsel %vm428, %v797, %v801
      %v803 = vshrl.u32 %v424, 16
      %v805 = vrot.slane %v803, 4
      %v806 = vor.u32 %v805, %v801
      %v807 = vrot.slane %v806, 4
      %v809 = vshll.u32 %v425, 16
      %v811 = vrot.slane %v809, 5
      %v812 = vsel %vm428, %v807, %v811
      %813 = vrot.lane.b32.xlu0 %v442, 16
      %v814 = vpop.permute.xlu0 %813
      %815 = vrot.lane.b32.xlu0 %v452, 16
      %v816 = vpop.permute.xlu0 %815
      %817 = vrot.lane.b32.xlu0 %v466, 16
      %v818 = vpop.permute.xlu0 %817
      %819 = vrot.lane.b32.xlu0 %v476, 16
      %v820 = vpop.permute.xlu0 %819
      %821 = vrot.lane.b32.xlu0 %v490, 16
      %v822 = vpop.permute.xlu0 %821
      %823 = vrot.lane.b32.xlu0 %v500, 16
      %v824 = vpop.permute.xlu0 %823
      %825 = vrot.lane.b32.xlu0 %v514, 16
      %v826 = vpop.permute.xlu0 %825
      %827 = vrot.lane.b32.xlu0 %v524, 16
      %v828 = vpop.permute.xlu0 %827
      %829 = vrot.lane.b32.xlu0 %v538, 16
      %v830 = vpop.permute.xlu0 %829
      %831 = vrot.lane.b32.xlu0 %v548, 16
      %v832 = vpop.permute.xlu0 %831
      %833 = vrot.lane.b32.xlu0 %v562, 16
      %v834 = vpop.permute.xlu0 %833
      %835 = vrot.lane.b32.xlu0 %v572, 16
      %v836 = vpop.permute.xlu0 %835
      %837 = vrot.lane.b32.xlu0 %v586, 16
      %v838 = vpop.permute.xlu0 %837
      %839 = vrot.lane.b32.xlu0 %v596, 16
      %v840 = vpop.permute.xlu0 %839
      %841 = vrot.lane.b32.xlu0 %v610, 16
      %v842 = vpop.permute.xlu0 %841
      %843 = vrot.lane.b32.xlu0 %v620, 16
      %v844 = vpop.permute.xlu0 %843
      %845 = vrot.lane.b32.xlu0 %v634, 16
      %v846 = vpop.permute.xlu0 %845
      %847 = vrot.lane.b32.xlu0 %v644, 16
      %v848 = vpop.permute.xlu0 %847
      %849 = vrot.lane.b32.xlu0 %v658, 16
      %v850 = vpop.permute.xlu0 %849
      %851 = vrot.lane.b32.xlu0 %v668, 16
      %v852 = vpop.permute.xlu0 %851
      %853 = vrot.lane.b32.xlu0 %v682, 16
      %v854 = vpop.permute.xlu0 %853
      %855 = vrot.lane.b32.xlu0 %v692, 16
      %v856 = vpop.permute.xlu0 %855
      %857 = vrot.lane.b32.xlu0 %v706, 16
      %v858 = vpop.permute.xlu0 %857
      %859 = vrot.lane.b32.xlu0 %v716, 16
      %v860 = vpop.permute.xlu0 %859
      %861 = vrot.lane.b32.xlu0 %v730, 16
      %v862 = vpop.permute.xlu0 %861
      %863 = vrot.lane.b32.xlu0 %v740, 16
      %v864 = vpop.permute.xlu0 %863
      %865 = vrot.lane.b32.xlu0 %v754, 16
      %v866 = vpop.permute.xlu0 %865
      %867 = vrot.lane.b32.xlu0 %v764, 16
      %v868 = vpop.permute.xlu0 %867
      %869 = vrot.lane.b32.xlu0 %v778, 16
      %v870 = vpop.permute.xlu0 %869
      %871 = vrot.lane.b32.xlu0 %v788, 16
      %v872 = vpop.permute.xlu0 %871
      %873 = vrot.lane.b32.xlu0 %v802, 16
      %v874 = vpop.permute.xlu0 %873
      %875 = vrot.lane.b32.xlu0 %v812, 16
      %v876 = vpop.permute.xlu0 %875
      %vm909 = vcmask 257152
      %910 = vst.msk [vmem:[#allocation2] sm:$0xf] %vm909, %v814
      %911 = vst.msk [vmem:[#allocation2 + $0x8] sm:$0xf] %vm909, %v816
      %912 = vst.msk [vmem:[#allocation2 + $0x10] sm:$0xf] %vm909, %v818
      %913 = vst.msk [vmem:[#allocation2 + $0x18] sm:$0xf] %vm909, %v820
      %914 = vst.msk [vmem:[#allocation2 + $0x20] sm:$0xf] %vm909, %v822
      %915 = vst.msk [vmem:[#allocation2 + $0x28] sm:$0xf] %vm909, %v824
      %916 = vst.msk [vmem:[#allocation2 + $0x30] sm:$0xf] %vm909, %v826
      %917 = vst.msk [vmem:[#allocation2 + $0x38] sm:$0xf] %vm909, %v828
      %918 = vst.msk [vmem:[#allocation2 + $0x40] sm:$0xf] %vm909, %v830
      %919 = vst.msk [vmem:[#allocation2 + $0x48] sm:$0xf] %vm909, %v832
      %920 = vst.msk [vmem:[#allocation2 + $0x50] sm:$0xf] %vm909, %v834
      %921 = vst.msk [vmem:[#allocation2 + $0x58] sm:$0xf] %vm909, %v836
      %922 = vst.msk [vmem:[#allocation2 + $0x60] sm:$0xf] %vm909, %v838
      %923 = vst.msk [vmem:[#allocation2 + $0x68] sm:$0xf] %vm909, %v840
      %924 = vst.msk [vmem:[#allocation2 + $0x70] sm:$0xf] %vm909, %v842
      %925 = vst.msk [vmem:[#allocation2 + $0x78] sm:$0xf] %vm909, %v844
      %926 = vst.msk [vmem:[#allocation2 + $0x80] sm:$0xf] %vm909, %v846
      %927 = vst.msk [vmem:[#allocation2 + $0x88] sm:$0xf] %vm909, %v848
      %928 = vst.msk [vmem:[#allocation2 + $0x90] sm:$0xf] %vm909, %v850
      %929 = vst.msk [vmem:[#allocation2 + $0x98] sm:$0xf] %vm909, %v852
      %930 = vst.msk [vmem:[#allocation2 + $0xa0] sm:$0xf] %vm909, %v854
      %931 = vst.msk [vmem:[#allocation2 + $0xa8] sm:$0xf] %vm909, %v856
      %932 = vst.msk [vmem:[#allocation2 + $0xb0] sm:$0xf] %vm909, %v858
      %933 = vst.msk [vmem:[#allocation2 + $0xb8] sm:$0xf] %vm909, %v860
      %934 = vst.msk [vmem:[#allocation2 + $0xc0] sm:$0xf] %vm909, %v862
      %935 = vst.msk [vmem:[#allocation2 + $0xc8] sm:$0xf] %vm909, %v864
      %936 = vst.msk [vmem:[#allocation2 + $0xd0] sm:$0xf] %vm909, %v866
      %937 = vst.msk [vmem:[#allocation2 + $0xd8] sm:$0xf] %vm909, %v868
      %938 = vst.msk [vmem:[#allocation2 + $0xe0] sm:$0xf] %vm909, %v870
      %939 = vst.msk [vmem:[#allocation2 + $0xe8] sm:$0xf] %vm909, %v872
      %940 = vst.msk [vmem:[#allocation2 + $0xf0] sm:$0xf] %vm909, %v874
      %941 = vst.msk [vmem:[#allocation2 + $0xf8] sm:$0xf] %vm909, %v876
      %v942 = vld [vmem:[%s284] sm:$0xe]
      %v943 = vld [vmem:[%s284 + $0x4] sm:$0xf]
      %v944 = vld [vmem:[%s284 + $0x8] sm:$0x1]
      %v945 = vld [vmem:[%s284 + $0xc] sm:$0xe]
      %v946 = vld [vmem:[%s284 + $0x10] sm:$0xf]
      %v947 = vld [vmem:[%s284 + $0x14] sm:$0x1]
      %v948 = vld [vmem:[%s284 + $0x18] sm:$0xe]
      %v949 = vld [vmem:[%s284 + $0x1c] sm:$0xf]
      %v950 = vld [vmem:[%s284 + $0x20] sm:$0x1]
      %v951 = vld [vmem:[%s284 + $0x24] sm:$0xe]
      %v952 = vld [vmem:[%s284 + $0x28] sm:$0xf]
      %v953 = vld [vmem:[%s284 + $0x2c] sm:$0x1]
      %v954 = vld [vmem:[%s284 + $0x30] sm:$0xe]
      %v955 = vld [vmem:[%s284 + $0x34] sm:$0xf]
      %v956 = vld [vmem:[%s284 + $0x38] sm:$0x1]
      %v957 = vld [vmem:[%s284 + $0x3c] sm:$0xe]
      %v958 = vld [vmem:[%s284 + $0x40] sm:$0xf]
      %v959 = vld [vmem:[%s284 + $0x44] sm:$0x1]
      %v960 = vld [vmem:[%s284 + $0x48] sm:$0xe]
      %v961 = vld [vmem:[%s284 + $0x4c] sm:$0xf]
      %v962 = vld [vmem:[%s284 + $0x50] sm:$0x1]
      %v963 = vld [vmem:[%s284 + $0x54] sm:$0xe]
      %v964 = vld [vmem:[%s284 + $0x58] sm:$0xf]
      %v965 = vld [vmem:[%s284 + $0x5c] sm:$0x1]
      %v966 = vld [vmem:[%s284 + $0x60] sm:$0xe]
      %v967 = vld [vmem:[%s284 + $0x64] sm:$0xf]
      %v968 = vld [vmem:[%s284 + $0x68] sm:$0x1]
      %v969 = vld [vmem:[%s284 + $0x6c] sm:$0xe]
      %v970 = vld [vmem:[%s284 + $0x70] sm:$0xf]
      %v971 = vld [vmem:[%s284 + $0x74] sm:$0x1]
      %v972 = vld [vmem:[%s284 + $0x78] sm:$0xe]
      %v973 = vld [vmem:[%s284 + $0x7c] sm:$0xf]
      %v974 = vld [vmem:[%s284 + $0x80] sm:$0x1]
      %v975 = vld [vmem:[%s284 + $0x84] sm:$0xe]
      %v976 = vld [vmem:[%s284 + $0x88] sm:$0xf]
      %v977 = vld [vmem:[%s284 + $0x8c] sm:$0x1]
      %v978 = vld [vmem:[%s284 + $0x90] sm:$0xe]
      %v979 = vld [vmem:[%s284 + $0x94] sm:$0xf]
      %v980 = vld [vmem:[%s284 + $0x98] sm:$0x1]
      %v981 = vld [vmem:[%s284 + $0x9c] sm:$0xe]
      %v982 = vld [vmem:[%s284 + $0xa0] sm:$0xf]
      %v983 = vld [vmem:[%s284 + $0xa4] sm:$0x1]
      %v984 = vld [vmem:[%s284 + $0xa8] sm:$0xe]
      %v985 = vld [vmem:[%s284 + $0xac] sm:$0xf]
      %v986 = vld [vmem:[%s284 + $0xb0] sm:$0x1]
      %v987 = vld [vmem:[%s284 + $0xb4] sm:$0xe]
      %v988 = vld [vmem:[%s284 + $0xb8] sm:$0xf]
      %v989 = vld [vmem:[%s284 + $0xbc] sm:$0x1]
      %vm1038 = vcmask 1042432
      %vm1039 = vcmask 1046532
      %vm1040 = vmor %vm1038, %vm1039
      %v1041 = vrot.slane %v942, 5
      %v1042 = vrot.slane %v1041, 4
      %v1043 = vrot.slane %v943, 5
      %v1044 = vsel %vm1040, %v1042, %v1043
      %v1045 = vrot.slane %v1043, 4
      %v1046 = vrot.slane %v944, 5
      %v1047 = vsel %vm1040, %v1045, %v1046
      %v1048 = vrot.slane %v945, 5
      %v1049 = vrot.slane %v1048, 4
      %v1050 = vrot.slane %v946, 5
      %v1051 = vsel %vm1040, %v1049, %v1050
      %v1052 = vrot.slane %v1050, 4
      %v1053 = vrot.slane %v947, 5
      %v1054 = vsel %vm1040, %v1052, %v1053
      %v1055 = vrot.slane %v948, 5
      %v1056 = vrot.slane %v1055, 4
      %v1057 = vrot.slane %v949, 5
      %v1058 = vsel %vm1040, %v1056, %v1057
      %v1059 = vrot.slane %v1057, 4
      %v1060 = vrot.slane %v950, 5
      %v1061 = vsel %vm1040, %v1059, %v1060
      %v1062 = vrot.slane %v951, 5
      %v1063 = vrot.slane %v1062, 4
      %v1064 = vrot.slane %v952, 5
      %v1065 = vsel %vm1040, %v1063, %v1064
      %v1066 = vrot.slane %v1064, 4
      %v1067 = vrot.slane %v953, 5
      %v1068 = vsel %vm1040, %v1066, %v1067
      %v1069 = vrot.slane %v954, 5
      %v1070 = vrot.slane %v1069, 4
      %v1071 = vrot.slane %v955, 5
      %v1072 = vsel %vm1040, %v1070, %v1071
      %v1073 = vrot.slane %v1071, 4
      %v1074 = vrot.slane %v956, 5
      %v1075 = vsel %vm1040, %v1073, %v1074
      %v1076 = vrot.slane %v957, 5
      %v1077 = vrot.slane %v1076, 4
      %v1078 = vrot.slane %v958, 5
      %v1079 = vsel %vm1040, %v1077, %v1078
      %v1080 = vrot.slane %v1078, 4
      %v1081 = vrot.slane %v959, 5
      %v1082 = vsel %vm1040, %v1080, %v1081
      %v1083 = vrot.slane %v960, 5
      %v1084 = vrot.slane %v1083, 4
      %v1085 = vrot.slane %v961, 5
      %v1086 = vsel %vm1040, %v1084, %v1085
      %v1087 = vrot.slane %v1085, 4
      %v1088 = vrot.slane %v962, 5
      %v1089 = vsel %vm1040, %v1087, %v1088
      %v1090 = vrot.slane %v963, 5
      %v1091 = vrot.slane %v1090, 4
      %v1092 = vrot.slane %v964, 5
      %v1093 = vsel %vm1040, %v1091, %v1092
      %v1094 = vrot.slane %v1092, 4
      %v1095 = vrot.slane %v965, 5
      %v1096 = vsel %vm1040, %v1094, %v1095
      %v1097 = vrot.slane %v966, 5
      %v1098 = vrot.slane %v1097, 4
      %v1099 = vrot.slane %v967, 5
      %v1100 = vsel %vm1040, %v1098, %v1099
      %v1101 = vrot.slane %v1099, 4
      %v1102 = vrot.slane %v968, 5
      %v1103 = vsel %vm1040, %v1101, %v1102
      %v1104 = vrot.slane %v969, 5
      %v1105 = vrot.slane %v1104, 4
      %v1106 = vrot.slane %v970, 5
      %v1107 = vsel %vm1040, %v1105, %v1106
      %v1108 = vrot.slane %v1106, 4
      %v1109 = vrot.slane %v971, 5
      %v1110 = vsel %vm1040, %v1108, %v1109
      %v1111 = vrot.slane %v972, 5
      %v1112 = vrot.slane %v1111, 4
      %v1113 = vrot.slane %v973, 5
      %v1114 = vsel %vm1040, %v1112, %v1113
      %v1115 = vrot.slane %v1113, 4
      %v1116 = vrot.slane %v974, 5
      %v1117 = vsel %vm1040, %v1115, %v1116
      %v1118 = vrot.slane %v975, 5
      %v1119 = vrot.slane %v1118, 4
      %v1120 = vrot.slane %v976, 5
      %v1121 = vsel %vm1040, %v1119, %v1120
      %v1122 = vrot.slane %v1120, 4
      %v1123 = vrot.slane %v977, 5
      %v1124 = vsel %vm1040, %v1122, %v1123
      %v1125 = vrot.slane %v978, 5
      %v1126 = vrot.slane %v1125, 4
      %v1127 = vrot.slane %v979, 5
      %v1128 = vsel %vm1040, %v1126, %v1127
      %v1129 = vrot.slane %v1127, 4
      %v1130 = vrot.slane %v980, 5
      %v1131 = vsel %vm1040, %v1129, %v1130
      %v1132 = vrot.slane %v981, 5
      %v1133 = vrot.slane %v1132, 4
      %v1134 = vrot.slane %v982, 5
      %v1135 = vsel %vm1040, %v1133, %v1134
      %v1136 = vrot.slane %v1134, 4
      %v1137 = vrot.slane %v983, 5
      %v1138 = vsel %vm1040, %v1136, %v1137
      %v1139 = vrot.slane %v984, 5
      %v1140 = vrot.slane %v1139, 4
      %v1141 = vrot.slane %v985, 5
      %v1142 = vsel %vm1040, %v1140, %v1141
      %v1143 = vrot.slane %v1141, 4
      %v1144 = vrot.slane %v986, 5
      %v1145 = vsel %vm1040, %v1143, %v1144
      %v1146 = vrot.slane %v987, 5
      %v1147 = vrot.slane %v1146, 4
      %v1148 = vrot.slane %v988, 5
      %v1149 = vsel %vm1040, %v1147, %v1148
      %v1150 = vrot.slane %v1148, 4
      %v1151 = vrot.slane %v989, 5
      %v1152 = vsel %vm1040, %v1150, %v1151
      %1153 = vrot.lane.b32.xlu0 %v1044, 32
      %v1154 = vpop.permute.xlu0 %1153
      %1155 = vrot.lane.b32.xlu0 %v1047, 32
      %v1156 = vpop.permute.xlu0 %1155
      %1157 = vrot.lane.b32.xlu0 %v1051, 32
      %v1158 = vpop.permute.xlu0 %1157
      %1159 = vrot.lane.b32.xlu0 %v1054, 32
      %v1160 = vpop.permute.xlu0 %1159
      %1161 = vrot.lane.b32.xlu0 %v1058, 32
      %v1162 = vpop.permute.xlu0 %1161
      %1163 = vrot.lane.b32.xlu0 %v1061, 32
      %v1164 = vpop.permute.xlu0 %1163
      %1165 = vrot.lane.b32.xlu0 %v1065, 32
      %v1166 = vpop.permute.xlu0 %1165
      %1167 = vrot.lane.b32.xlu0 %v1068, 32
      %v1168 = vpop.permute.xlu0 %1167
      %1169 = vrot.lane.b32.xlu0 %v1072, 32
      %v1170 = vpop.permute.xlu0 %1169
      %1171 = vrot.lane.b32.xlu0 %v1075, 32
      %v1172 = vpop.permute.xlu0 %1171
      %1173 = vrot.lane.b32.xlu0 %v1079, 32
      %v1174 = vpop.permute.xlu0 %1173
      %1175 = vrot.lane.b32.xlu0 %v1082, 32
      %v1176 = vpop.permute.xlu0 %1175
      %1177 = vrot.lane.b32.xlu0 %v1086, 32
      %v1178 = vpop.permute.xlu0 %1177
      %1179 = vrot.lane.b32.xlu0 %v1089, 32
      %v1180 = vpop.permute.xlu0 %1179
      %1181 = vrot.lane.b32.xlu0 %v1093, 32
      %v1182 = vpop.permute.xlu0 %1181
      %1183 = vrot.lane.b32.xlu0 %v1096, 32
      %v1184 = vpop.permute.xlu0 %1183
      %1185 = vrot.lane.b32.xlu0 %v1100, 32
      %v1186 = vpop.permute.xlu0 %1185
      %1187 = vrot.lane.b32.xlu0 %v1103, 32
      %v1188 = vpop.permute.xlu0 %1187
      %1189 = vrot.lane.b32.xlu0 %v1107, 32
      %v1190 = vpop.permute.xlu0 %1189
      %1191 = vrot.lane.b32.xlu0 %v1110, 32
      %v1192 = vpop.permute.xlu0 %1191
      %1193 = vrot.lane.b32.xlu0 %v1114, 32
      %v1194 = vpop.permute.xlu0 %1193
      %1195 = vrot.lane.b32.xlu0 %v1117, 32
      %v1196 = vpop.permute.xlu0 %1195
      %1197 = vrot.lane.b32.xlu0 %v1121, 32
      %v1198 = vpop.permute.xlu0 %1197
      %1199 = vrot.lane.b32.xlu0 %v1124, 32
      %v1200 = vpop.permute.xlu0 %1199
      %1201 = vrot.lane.b32.xlu0 %v1128, 32
      %v1202 = vpop.permute.xlu0 %1201
      %1203 = vrot.lane.b32.xlu0 %v1131, 32
      %v1204 = vpop.permute.xlu0 %1203
      %1205 = vrot.lane.b32.xlu0 %v1135, 32
      %v1206 = vpop.permute.xlu0 %1205
      %1207 = vrot.lane.b32.xlu0 %v1138, 32
      %v1208 = vpop.permute.xlu0 %1207
      %1209 = vrot.lane.b32.xlu0 %v1142, 32
      %v1210 = vpop.permute.xlu0 %1209
      %1211 = vrot.lane.b32.xlu0 %v1145, 32
      %v1212 = vpop.permute.xlu0 %1211
      %1213 = vrot.lane.b32.xlu0 %v1149, 32
      %v1214 = vpop.permute.xlu0 %1213
      %1215 = vrot.lane.b32.xlu0 %v1152, 32
      %v1216 = vpop.permute.xlu0 %1215
      %vm1249 = vcmask 388352
      %1250 = vst.msk [vmem:[#allocation2] sm:$0xf] %vm1249, %v1154
      %1251 = vst.msk [vmem:[#allocation2 + $0x8] sm:$0xf] %vm1249, %v1156
      %1252 = vst.msk [vmem:[#allocation2 + $0x10] sm:$0xf] %vm1249, %v1158
      %1253 = vst.msk [vmem:[#allocation2 + $0x18] sm:$0xf] %vm1249, %v1160
      %1254 = vst.msk [vmem:[#allocation2 + $0x20] sm:$0xf] %vm1249, %v1162
      %1255 = vst.msk [vmem:[#allocation2 + $0x28] sm:$0xf] %vm1249, %v1164
      %1256 = vst.msk [vmem:[#allocation2 + $0x30] sm:$0xf] %vm1249, %v1166
      %1257 = vst.msk [vmem:[#allocation2 + $0x38] sm:$0xf] %vm1249, %v1168
      %1258 = vst.msk [vmem:[#allocation2 + $0x40] sm:$0xf] %vm1249, %v1170
      %1259 = vst.msk [vmem:[#allocation2 + $0x48] sm:$0xf] %vm1249, %v1172
      %1260 = vst.msk [vmem:[#allocation2 + $0x50] sm:$0xf] %vm1249, %v1174
      %1261 = vst.msk [vmem:[#allocation2 + $0x58] sm:$0xf] %vm1249, %v1176
      %1262 = vst.msk [vmem:[#allocation2 + $0x60] sm:$0xf] %vm1249, %v1178
      %1263 = vst.msk [vmem:[#allocation2 + $0x68] sm:$0xf] %vm1249, %v1180
      %1264 = vst.msk [vmem:[#allocation2 + $0x70] sm:$0xf] %vm1249, %v1182
      %1265 = vst.msk [vmem:[#allocation2 + $0x78] sm:$0xf] %vm1249, %v1184
      %1266 = vst.msk [vmem:[#allocation2 + $0x80] sm:$0xf] %vm1249, %v1186
      %1267 = vst.msk [vmem:[#allocation2 + $0x88] sm:$0xf] %vm1249, %v1188
      %1268 = vst.msk [vmem:[#allocation2 + $0x90] sm:$0xf] %vm1249, %v1190
      %1269 = vst.msk [vmem:[#allocation2 + $0x98] sm:$0xf] %vm1249, %v1192
      %1270 = vst.msk [vmem:[#allocation2 + $0xa0] sm:$0xf] %vm1249, %v1194
      %1271 = vst.msk [vmem:[#allocation2 + $0xa8] sm:$0xf] %vm1249, %v1196
      %1272 = vst.msk [vmem:[#allocation2 + $0xb0] sm:$0xf] %vm1249, %v1198
      %1273 = vst.msk [vmem:[#allocation2 + $0xb8] sm:$0xf] %vm1249, %v1200
      %1274 = vst.msk [vmem:[#allocation2 + $0xc0] sm:$0xf] %vm1249, %v1202
      %1275 = vst.msk [vmem:[#allocation2 + $0xc8] sm:$0xf] %vm1249, %v1204
      %1276 = vst.msk [vmem:[#allocation2 + $0xd0] sm:$0xf] %vm1249, %v1206
      %1277 = vst.msk [vmem:[#allocation2 + $0xd8] sm:$0xf] %vm1249, %v1208
      %1278 = vst.msk [vmem:[#allocation2 + $0xe0] sm:$0xf] %vm1249, %v1210
      %1279 = vst.msk [vmem:[#allocation2 + $0xe8] sm:$0xf] %vm1249, %v1212
      %1280 = vst.msk [vmem:[#allocation2 + $0xf0] sm:$0xf] %vm1249, %v1214
      %1281 = vst.msk [vmem:[#allocation2 + $0xf8] sm:$0xf] %vm1249, %v1216
      %s1282 = scalar_lea.vmem %s284, 12
      %v1283 = vld [vmem:[%s1282] sm:$0xf]
      %v1284 = vld [vmem:[%s1282 + $0x4] sm:$0xf]
      %v1285 = vld [vmem:[%s1282 + $0xc] sm:$0xf]
      %v1286 = vld [vmem:[%s1282 + $0x10] sm:$0xf]
      %v1287 = vld [vmem:[%s1282 + $0x18] sm:$0xf]
      %v1288 = vld [vmem:[%s1282 + $0x1c] sm:$0xf]
      %v1289 = vld [vmem:[%s1282 + $0x24] sm:$0xf]
      %v1290 = vld [vmem:[%s1282 + $0x28] sm:$0xf]
      %v1291 = vld [vmem:[%s1282 + $0x30] sm:$0xf]
      %v1292 = vld [vmem:[%s1282 + $0x34] sm:$0xf]
      %v1293 = vld [vmem:[%s1282 + $0x3c] sm:$0xf]
      %v1294 = vld [vmem:[%s1282 + $0x40] sm:$0xf]
      %v1295 = vld [vmem:[%s1282 + $0x48] sm:$0xf]
      %v1296 = vld [vmem:[%s1282 + $0x4c] sm:$0xf]
      %v1297 = vld [vmem:[%s1282 + $0x54] sm:$0xf]
      %v1298 = vld [vmem:[%s1282 + $0x58] sm:$0xf]
      %v1299 = vld [vmem:[%s1282 + $0x60] sm:$0xf]
      %v1300 = vld [vmem:[%s1282 + $0x64] sm:$0xf]
      %v1301 = vld [vmem:[%s1282 + $0x6c] sm:$0xf]
      %v1302 = vld [vmem:[%s1282 + $0x70] sm:$0xf]
      %v1303 = vld [vmem:[%s1282 + $0x78] sm:$0xf]
      %v1304 = vld [vmem:[%s1282 + $0x7c] sm:$0xf]
      %v1305 = vld [vmem:[%s1282 + $0x84] sm:$0xf]
      %v1306 = vld [vmem:[%s1282 + $0x88] sm:$0xf]
      %v1307 = vld [vmem:[%s1282 + $0x90] sm:$0xf]
      %v1308 = vld [vmem:[%s1282 + $0x94] sm:$0xf]
      %v1309 = vld [vmem:[%s1282 + $0x9c] sm:$0xf]
      %v1310 = vld [vmem:[%s1282 + $0xa0] sm:$0xf]
      %v1311 = vld [vmem:[%s1282 + $0xa8] sm:$0xf]
      %v1312 = vld [vmem:[%s1282 + $0xac] sm:$0xf]
      %v1313 = vld [vmem:[%s1282 + $0xb4] sm:$0xf]
      %v1314 = vld [vmem:[%s1282 + $0xb8] sm:$0xf]
      %1347 = vrot.lane.b32.xlu0 %v1283, 48
      %v1348 = vpop.permute.xlu0 %1347
      %1349 = vrot.lane.b32.xlu0 %v1284, 48
      %v1350 = vpop.permute.xlu0 %1349
      %1351 = vrot.lane.b32.xlu0 %v1285, 48
      %v1352 = vpop.permute.xlu0 %1351
      %1353 = vrot.lane.b32.xlu0 %v1286, 48
      %v1354 = vpop.permute.xlu0 %1353
      %1355 = vrot.lane.b32.xlu0 %v1287, 48
      %v1356 = vpop.permute.xlu0 %1355
      %1357 = vrot.lane.b32.xlu0 %v1288, 48
      %v1358 = vpop.permute.xlu0 %1357
      %1359 = vrot.lane.b32.xlu0 %v1289, 48
      %v1360 = vpop.permute.xlu0 %1359
      %1361 = vrot.lane.b32.xlu0 %v1290, 48
      %v1362 = vpop.permute.xlu0 %1361
      %1363 = vrot.lane.b32.xlu0 %v1291, 48
      %v1364 = vpop.permute.xlu0 %1363
      %1365 = vrot.lane.b32.xlu0 %v1292, 48
      %v1366 = vpop.permute.xlu0 %1365
      %1367 = vrot.lane.b32.xlu0 %v1293, 48
      %v1368 = vpop.permute.xlu0 %1367
      %1369 = vrot.lane.b32.xlu0 %v1294, 48
      %v1370 = vpop.permute.xlu0 %1369
      %1371 = vrot.lane.b32.xlu0 %v1295, 48
      %v1372 = vpop.permute.xlu0 %1371
      %1373 = vrot.lane.b32.xlu0 %v1296, 48
      %v1374 = vpop.permute.xlu0 %1373
      %1375 = vrot.lane.b32.xlu0 %v1297, 48
      %v1376 = vpop.permute.xlu0 %1375
      %1377 = vrot.lane.b32.xlu0 %v1298, 48
      %v1378 = vpop.permute.xlu0 %1377
      %1379 = vrot.lane.b32.xlu0 %v1299, 48
      %v1380 = vpop.permute.xlu0 %1379
      %1381 = vrot.lane.b32.xlu0 %v1300, 48
      %v1382 = vpop.permute.xlu0 %1381
      %1383 = vrot.lane.b32.xlu0 %v1301, 48
      %v1384 = vpop.permute.xlu0 %1383
      %1385 = vrot.lane.b32.xlu0 %v1302, 48
      %v1386 = vpop.permute.xlu0 %1385
      %1387 = vrot.lane.b32.xlu0 %v1303, 48
      %v1388 = vpop.permute.xlu0 %1387
      %1389 = vrot.lane.b32.xlu0 %v1304, 48
      %v1390 = vpop.permute.xlu0 %1389
      %1391 = vrot.lane.b32.xlu0 %v1305, 48
      %v1392 = vpop.permute.xlu0 %1391
      %1393 = vrot.lane.b32.xlu0 %v1306, 48
      %v1394 = vpop.permute.xlu0 %1393
      %1395 = vrot.lane.b32.xlu0 %v1307, 48
      %v1396 = vpop.permute.xlu0 %1395
      %1397 = vrot.lane.b32.xlu0 %v1308, 48
      %v1398 = vpop.permute.xlu0 %1397
      %1399 = vrot.lane.b32.xlu0 %v1309, 48
      %v1400 = vpop.permute.xlu0 %1399
      %1401 = vrot.lane.b32.xlu0 %v1310, 48
      %v1402 = vpop.permute.xlu0 %1401
      %1403 = vrot.lane.b32.xlu0 %v1311, 48
      %v1404 = vpop.permute.xlu0 %1403
      %1405 = vrot.lane.b32.xlu0 %v1312, 48
      %v1406 = vpop.permute.xlu0 %1405
      %1407 = vrot.lane.b32.xlu0 %v1313, 48
      %v1408 = vpop.permute.xlu0 %1407
      %1409 = vrot.lane.b32.xlu0 %v1314, 48
      %v1410 = vpop.permute.xlu0 %1409
      %vm1443 = vcmask 519552
      %1444 = vst.msk [vmem:[#allocation2] sm:$0xf] %vm1443, %v1348
      %1445 = vst.msk [vmem:[#allocation2 + $0x8] sm:$0xf] %vm1443, %v1350
      %1446 = vst.msk [vmem:[#allocation2 + $0x10] sm:$0xf] %vm1443, %v1352
      %1447 = vst.msk [vmem:[#allocation2 + $0x18] sm:$0xf] %vm1443, %v1354
      %1448 = vst.msk [vmem:[#allocation2 + $0x20] sm:$0xf] %vm1443, %v1356
      %1449 = vst.msk [vmem:[#allocation2 + $0x28] sm:$0xf] %vm1443, %v1358
      %1450 = vst.msk [vmem:[#allocation2 + $0x30] sm:$0xf] %vm1443, %v1360
      %1451 = vst.msk [vmem:[#allocation2 + $0x38] sm:$0xf] %vm1443, %v1362
      %1452 = vst.msk [vmem:[#allocation2 + $0x40] sm:$0xf] %vm1443, %v1364
      %1453 = vst.msk [vmem:[#allocation2 + $0x48] sm:$0xf] %vm1443, %v1366
      %1454 = vst.msk [vmem:[#allocation2 + $0x50] sm:$0xf] %vm1443, %v1368
      %1455 = vst.msk [vmem:[#allocation2 + $0x58] sm:$0xf] %vm1443, %v1370
      %1456 = vst.msk [vmem:[#allocation2 + $0x60] sm:$0xf] %vm1443, %v1372
      %1457 = vst.msk [vmem:[#allocation2 + $0x68] sm:$0xf] %vm1443, %v1374
      %1458 = vst.msk [vmem:[#allocation2 + $0x70] sm:$0xf] %vm1443, %v1376
      %1459 = vst.msk [vmem:[#allocation2 + $0x78] sm:$0xf] %vm1443, %v1378
      %1460 = vst.msk [vmem:[#allocation2 + $0x80] sm:$0xf] %vm1443, %v1380
      %1461 = vst.msk [vmem:[#allocation2 + $0x88] sm:$0xf] %vm1443, %v1382
      %1462 = vst.msk [vmem:[#allocation2 + $0x90] sm:$0xf] %vm1443, %v1384
      %1463 = vst.msk [vmem:[#allocation2 + $0x98] sm:$0xf] %vm1443, %v1386
      %1464 = vst.msk [vmem:[#allocation2 + $0xa0] sm:$0xf] %vm1443, %v1388
      %1465 = vst.msk [vmem:[#allocation2 + $0xa8] sm:$0xf] %vm1443, %v1390
      %1466 = vst.msk [vmem:[#allocation2 + $0xb0] sm:$0xf] %vm1443, %v1392
      %1467 = vst.msk [vmem:[#allocation2 + $0xb8] sm:$0xf] %vm1443, %v1394
      %1468 = vst.msk [vmem:[#allocation2 + $0xc0] sm:$0xf] %vm1443, %v1396
      %1469 = vst.msk [vmem:[#allocation2 + $0xc8] sm:$0xf] %vm1443, %v1398
      %1470 = vst.msk [vmem:[#allocation2 + $0xd0] sm:$0xf] %vm1443, %v1400
      %1471 = vst.msk [vmem:[#allocation2 + $0xd8] sm:$0xf] %vm1443, %v1402
      %1472 = vst.msk [vmem:[#allocation2 + $0xe0] sm:$0xf] %vm1443, %v1404
      %1473 = vst.msk [vmem:[#allocation2 + $0xe8] sm:$0xf] %vm1443, %v1406
      %1474 = vst.msk [vmem:[#allocation2 + $0xf0] sm:$0xf] %vm1443, %v1408
      %1475 = vst.msk [vmem:[#allocation2 + $0xf8] sm:$0xf] %vm1443, %v1410
      %v1476 = vld [vmem:[%s1282] sm:$0xf]
      %v1477 = vld [vmem:[%s1282 + $0x4] sm:$0xf]
      %v1478 = vld [vmem:[%s1282 + $0x8] sm:$0x1]
      %v1479 = vld [vmem:[%s1282 + $0xc] sm:$0xf]
      %v1480 = vld [vmem:[%s1282 + $0x10] sm:$0xf]
      %v1481 = vld [vmem:[%s1282 + $0x14] sm:$0x1]
      %v1482 = vld [vmem:[%s1282 + $0x18] sm:$0xf]
      %v1483 = vld [vmem:[%s1282 + $0x1c] sm:$0xf]
      %v1484 = vld [vmem:[%s1282 + $0x20] sm:$0x1]
      %v1485 = vld [vmem:[%s1282 + $0x24] sm:$0xf]
      %v1486 = vld [vmem:[%s1282 + $0x28] sm:$0xf]
      %v1487 = vld [vmem:[%s1282 + $0x2c] sm:$0x1]
      %v1488 = vld [vmem:[%s1282 + $0x30] sm:$0xf]
      %v1489 = vld [vmem:[%s1282 + $0x34] sm:$0xf]
      %v1490 = vld [vmem:[%s1282 + $0x38] sm:$0x1]
      %v1491 = vld [vmem:[%s1282 + $0x3c] sm:$0xf]
      %v1492 = vld [vmem:[%s1282 + $0x40] sm:$0xf]
      %v1493 = vld [vmem:[%s1282 + $0x44] sm:$0x1]
      %v1494 = vld [vmem:[%s1282 + $0x48] sm:$0xf]
      %v1495 = vld [vmem:[%s1282 + $0x4c] sm:$0xf]
      %v1496 = vld [vmem:[%s1282 + $0x50] sm:$0x1]
      %v1497 = vld [vmem:[%s1282 + $0x54] sm:$0xf]
      %v1498 = vld [vmem:[%s1282 + $0x58] sm:$0xf]
      %v1499 = vld [vmem:[%s1282 + $0x5c] sm:$0x1]
      %v1500 = vld [vmem:[%s1282 + $0x60] sm:$0xf]
      %v1501 = vld [vmem:[%s1282 + $0x64] sm:$0xf]
      %v1502 = vld [vmem:[%s1282 + $0x68] sm:$0x1]
      %v1503 = vld [vmem:[%s1282 + $0x6c] sm:$0xf]
      %v1504 = vld [vmem:[%s1282 + $0x70] sm:$0xf]
      %v1505 = vld [vmem:[%s1282 + $0x74] sm:$0x1]
      %v1506 = vld [vmem:[%s1282 + $0x78] sm:$0xf]
      %v1507 = vld [vmem:[%s1282 + $0x7c] sm:$0xf]
      %v1508 = vld [vmem:[%s1282 + $0x80] sm:$0x1]
      %v1509 = vld [vmem:[%s1282 + $0x84] sm:$0xf]
      %v1510 = vld [vmem:[%s1282 + $0x88] sm:$0xf]
      %v1511 = vld [vmem:[%s1282 + $0x8c] sm:$0x1]
      %v1512 = vld [vmem:[%s1282 + $0x90] sm:$0xf]
      %v1513 = vld [vmem:[%s1282 + $0x94] sm:$0xf]
      %v1514 = vld [vmem:[%s1282 + $0x98] sm:$0x1]
      %v1515 = vld [vmem:[%s1282 + $0x9c] sm:$0xf]
      %v1516 = vld [vmem:[%s1282 + $0xa0] sm:$0xf]
      %v1517 = vld [vmem:[%s1282 + $0xa4] sm:$0x1]
      %v1518 = vld [vmem:[%s1282 + $0xa8] sm:$0xf]
      %v1519 = vld [vmem:[%s1282 + $0xac] sm:$0xf]
      %v1520 = vld [vmem:[%s1282 + $0xb0] sm:$0x1]
      %v1521 = vld [vmem:[%s1282 + $0xb4] sm:$0xf]
      %v1522 = vld [vmem:[%s1282 + $0xb8] sm:$0xf]
      %v1523 = vld [vmem:[%s1282 + $0xbc] sm:$0x1]
      %v1525 = vshrl.u32 %v1476, 16
      %v1527 = vrot.slane %v1525, 4
      %v1528 = vshll.u32 %v1476, 16
      %v1530 = vrot.slane %v1528, 5
      %v1531 = vor.u32 %v1527, %v1530
      %v1532 = vrot.slane %v1531, 4
      %v1534 = vshll.u32 %v1477, 16
      %v1536 = vrot.slane %v1534, 5
      %v1537 = vsel %vm428, %v1532, %v1536
      %v1538 = vshrl.u32 %v1477, 16
      %v1540 = vrot.slane %v1538, 4
      %v1541 = vor.u32 %v1540, %v1536
      %v1542 = vrot.slane %v1541, 4
      %v1544 = vshll.u32 %v1478, 16
      %v1546 = vrot.slane %v1544, 5
      %v1547 = vsel %vm428, %v1542, %v1546
      %v1549 = vshrl.u32 %v1479, 16
      %v1551 = vrot.slane %v1549, 4
      %v1552 = vshll.u32 %v1479, 16
      %v1554 = vrot.slane %v1552, 5
      %v1555 = vor.u32 %v1551, %v1554
      %v1556 = vrot.slane %v1555, 4
      %v1558 = vshll.u32 %v1480, 16
      %v1560 = vrot.slane %v1558, 5
      %v1561 = vsel %vm428, %v1556, %v1560
      %v1562 = vshrl.u32 %v1480, 16
      %v1564 = vrot.slane %v1562, 4
      %v1565 = vor.u32 %v1564, %v1560
      %v1566 = vrot.slane %v1565, 4
      %v1568 = vshll.u32 %v1481, 16
      %v1570 = vrot.slane %v1568, 5
      %v1571 = vsel %vm428, %v1566, %v1570
      %v1573 = vshrl.u32 %v1482, 16
      %v1575 = vrot.slane %v1573, 4
      %v1576 = vshll.u32 %v1482, 16
      %v1578 = vrot.slane %v1576, 5
      %v1579 = vor.u32 %v1575, %v1578
      %v1580 = vrot.slane %v1579, 4
      %v1582 = vshll.u32 %v1483, 16
      %v1584 = vrot.slane %v1582, 5
      %v1585 = vsel %vm428, %v1580, %v1584
      %v1586 = vshrl.u32 %v1483, 16
      %v1588 = vrot.slane %v1586, 4
      %v1589 = vor.u32 %v1588, %v1584
      %v1590 = vrot.slane %v1589, 4
      %v1592 = vshll.u32 %v1484, 16
      %v1594 = vrot.slane %v1592, 5
      %v1595 = vsel %vm428, %v1590, %v1594
      %v1597 = vshrl.u32 %v1485, 16
      %v1599 = vrot.slane %v1597, 4
      %v1600 = vshll.u32 %v1485, 16
      %v1602 = vrot.slane %v1600, 5
      %v1603 = vor.u32 %v1599, %v1602
      %v1604 = vrot.slane %v1603, 4
      %v1606 = vshll.u32 %v1486, 16
      %v1608 = vrot.slane %v1606, 5
      %v1609 = vsel %vm428, %v1604, %v1608
      %v1610 = vshrl.u32 %v1486, 16
      %v1612 = vrot.slane %v1610, 4
      %v1613 = vor.u32 %v1612, %v1608
      %v1614 = vrot.slane %v1613, 4
      %v1616 = vshll.u32 %v1487, 16
      %v1618 = vrot.slane %v1616, 5
      %v1619 = vsel %vm428, %v1614, %v1618
      %v1621 = vshrl.u32 %v1488, 16
      %v1623 = vrot.slane %v1621, 4
      %v1624 = vshll.u32 %v1488, 16
      %v1626 = vrot.slane %v1624, 5
      %v1627 = vor.u32 %v1623, %v1626
      %v1628 = vrot.slane %v1627, 4
      %v1630 = vshll.u32 %v1489, 16
      %v1632 = vrot.slane %v1630, 5
      %v1633 = vsel %vm428, %v1628, %v1632
      %v1634 = vshrl.u32 %v1489, 16
      %v1636 = vrot.slane %v1634, 4
      %v1637 = vor.u32 %v1636, %v1632
      %v1638 = vrot.slane %v1637, 4
      %v1640 = vshll.u32 %v1490, 16
      %v1642 = vrot.slane %v1640, 5
      %v1643 = vsel %vm428, %v1638, %v1642
      %v1645 = vshrl.u32 %v1491, 16
      %v1647 = vrot.slane %v1645, 4
      %v1648 = vshll.u32 %v1491, 16
      %v1650 = vrot.slane %v1648, 5
      %v1651 = vor.u32 %v1647, %v1650
      %v1652 = vrot.slane %v1651, 4
      %v1654 = vshll.u32 %v1492, 16
      %v1656 = vrot.slane %v1654, 5
      %v1657 = vsel %vm428, %v1652, %v1656
      %v1658 = vshrl.u32 %v1492, 16
      %v1660 = vrot.slane %v1658, 4
      %v1661 = vor.u32 %v1660, %v1656
      %v1662 = vrot.slane %v1661, 4
      %v1664 = vshll.u32 %v1493, 16
      %v1666 = vrot.slane %v1664, 5
      %v1667 = vsel %vm428, %v1662, %v1666
      %v1669 = vshrl.u32 %v1494, 16
      %v1671 = vrot.slane %v1669, 4
      %v1672 = vshll.u32 %v1494, 16
      %v1674 = vrot.slane %v1672, 5
      %v1675 = vor.u32 %v1671, %v1674
      %v1676 = vrot.slane %v1675, 4
      %v1678 = vshll.u32 %v1495, 16
      %v1680 = vrot.slane %v1678, 5
      %v1681 = vsel %vm428, %v1676, %v1680
      %v1682 = vshrl.u32 %v1495, 16
      %v1684 = vrot.slane %v1682, 4
      %v1685 = vor.u32 %v1684, %v1680
      %v1686 = vrot.slane %v1685, 4
      %v1688 = vshll.u32 %v1496, 16
      %v1690 = vrot.slane %v1688, 5
      %v1691 = vsel %vm428, %v1686, %v1690
      %v1693 = vshrl.u32 %v1497, 16
      %v1695 = vrot.slane %v1693, 4
      %v1696 = vshll.u32 %v1497, 16
      %v1698 = vrot.slane %v1696, 5
      %v1699 = vor.u32 %v1695, %v1698
      %v1700 = vrot.slane %v1699, 4
      %v1702 = vshll.u32 %v1498, 16
      %v1704 = vrot.slane %v1702, 5
      %v1705 = vsel %vm428, %v1700, %v1704
      %v1706 = vshrl.u32 %v1498, 16
      %v1708 = vrot.slane %v1706, 4
      %v1709 = vor.u32 %v1708, %v1704
      %v1710 = vrot.slane %v1709, 4
      %v1712 = vshll.u32 %v1499, 16
      %v1714 = vrot.slane %v1712, 5
      %v1715 = vsel %vm428, %v1710, %v1714
      %v1717 = vshrl.u32 %v1500, 16
      %v1719 = vrot.slane %v1717, 4
      %v1720 = vshll.u32 %v1500, 16
      %v1722 = vrot.slane %v1720, 5
      %v1723 = vor.u32 %v1719, %v1722
      %v1724 = vrot.slane %v1723, 4
      %v1726 = vshll.u32 %v1501, 16
      %v1728 = vrot.slane %v1726, 5
      %v1729 = vsel %vm428, %v1724, %v1728
      %v1730 = vshrl.u32 %v1501, 16
      %v1732 = vrot.slane %v1730, 4
      %v1733 = vor.u32 %v1732, %v1728
      %v1734 = vrot.slane %v1733, 4
      %v1736 = vshll.u32 %v1502, 16
      %v1738 = vrot.slane %v1736, 5
      %v1739 = vsel %vm428, %v1734, %v1738
      %v1741 = vshrl.u32 %v1503, 16
      %v1743 = vrot.slane %v1741, 4
      %v1744 = vshll.u32 %v1503, 16
      %v1746 = vrot.slane %v1744, 5
      %v1747 = vor.u32 %v1743, %v1746
      %v1748 = vrot.slane %v1747, 4
      %v1750 = vshll.u32 %v1504, 16
      %v1752 = vrot.slane %v1750, 5
      %v1753 = vsel %vm428, %v1748, %v1752
      %v1754 = vshrl.u32 %v1504, 16
      %v1756 = vrot.slane %v1754, 4
      %v1757 = vor.u32 %v1756, %v1752
      %v1758 = vrot.slane %v1757, 4
      %v1760 = vshll.u32 %v1505, 16
      %v1762 = vrot.slane %v1760, 5
      %v1763 = vsel %vm428, %v1758, %v1762
      %v1765 = vshrl.u32 %v1506, 16
      %v1767 = vrot.slane %v1765, 4
      %v1768 = vshll.u32 %v1506, 16
      %v1770 = vrot.slane %v1768, 5
      %v1771 = vor.u32 %v1767, %v1770
      %v1772 = vrot.slane %v1771, 4
      %v1774 = vshll.u32 %v1507, 16
      %v1776 = vrot.slane %v1774, 5
      %v1777 = vsel %vm428, %v1772, %v1776
      %v1778 = vshrl.u32 %v1507, 16
      %v1780 = vrot.slane %v1778, 4
      %v1781 = vor.u32 %v1780, %v1776
      %v1782 = vrot.slane %v1781, 4
      %v1784 = vshll.u32 %v1508, 16
      %v1786 = vrot.slane %v1784, 5
      %v1787 = vsel %vm428, %v1782, %v1786
      %v1789 = vshrl.u32 %v1509, 16
      %v1791 = vrot.slane %v1789, 4
      %v1792 = vshll.u32 %v1509, 16
      %v1794 = vrot.slane %v1792, 5
      %v1795 = vor.u32 %v1791, %v1794
      %v1796 = vrot.slane %v1795, 4
      %v1798 = vshll.u32 %v1510, 16
      %v1800 = vrot.slane %v1798, 5
      %v1801 = vsel %vm428, %v1796, %v1800
      %v1802 = vshrl.u32 %v1510, 16
      %v1804 = vrot.slane %v1802, 4
      %v1805 = vor.u32 %v1804, %v1800
      %v1806 = vrot.slane %v1805, 4
      %v1808 = vshll.u32 %v1511, 16
      %v1810 = vrot.slane %v1808, 5
      %v1811 = vsel %vm428, %v1806, %v1810
      %v1813 = vshrl.u32 %v1512, 16
      %v1815 = vrot.slane %v1813, 4
      %v1816 = vshll.u32 %v1512, 16
      %v1818 = vrot.slane %v1816, 5
      %v1819 = vor.u32 %v1815, %v1818
      %v1820 = vrot.slane %v1819, 4
      %v1822 = vshll.u32 %v1513, 16
      %v1824 = vrot.slane %v1822, 5
      %v1825 = vsel %vm428, %v1820, %v1824
      %v1826 = vshrl.u32 %v1513, 16
      %v1828 = vrot.slane %v1826, 4
      %v1829 = vor.u32 %v1828, %v1824
      %v1830 = vrot.slane %v1829, 4
      %v1832 = vshll.u32 %v1514, 16
      %v1834 = vrot.slane %v1832, 5
      %v1835 = vsel %vm428, %v1830, %v1834
      %v1837 = vshrl.u32 %v1515, 16
      %v1839 = vrot.slane %v1837, 4
      %v1840 = vshll.u32 %v1515, 16
      %v1842 = vrot.slane %v1840, 5
      %v1843 = vor.u32 %v1839, %v1842
      %v1844 = vrot.slane %v1843, 4
      %v1846 = vshll.u32 %v1516, 16
      %v1848 = vrot.slane %v1846, 5
      %v1849 = vsel %vm428, %v1844, %v1848
      %v1850 = vshrl.u32 %v1516, 16
      %v1852 = vrot.slane %v1850, 4
      %v1853 = vor.u32 %v1852, %v1848
      %v1854 = vrot.slane %v1853, 4
      %v1856 = vshll.u32 %v1517, 16
      %v1858 = vrot.slane %v1856, 5
      %v1859 = vsel %vm428, %v1854, %v1858
      %v1861 = vshrl.u32 %v1518, 16
      %v1863 = vrot.slane %v1861, 4
      %v1864 = vshll.u32 %v1518, 16
      %v1866 = vrot.slane %v1864, 5
      %v1867 = vor.u32 %v1863, %v1866
      %v1868 = vrot.slane %v1867, 4
      %v1870 = vshll.u32 %v1519, 16
      %v1872 = vrot.slane %v1870, 5
      %v1873 = vsel %vm428, %v1868, %v1872
      %v1874 = vshrl.u32 %v1519, 16
      %v1876 = vrot.slane %v1874, 4
      %v1877 = vor.u32 %v1876, %v1872
      %v1878 = vrot.slane %v1877, 4
      %v1880 = vshll.u32 %v1520, 16
      %v1882 = vrot.slane %v1880, 5
      %v1883 = vsel %vm428, %v1878, %v1882
      %v1885 = vshrl.u32 %v1521, 16
      %v1887 = vrot.slane %v1885, 4
      %v1888 = vshll.u32 %v1521, 16
      %v1890 = vrot.slane %v1888, 5
      %v1891 = vor.u32 %v1887, %v1890
      %v1892 = vrot.slane %v1891, 4
      %v1894 = vshll.u32 %v1522, 16
      %v1896 = vrot.slane %v1894, 5
      %v1897 = vsel %vm428, %v1892, %v1896
      %v1898 = vshrl.u32 %v1522, 16
      %v1900 = vrot.slane %v1898, 4
      %v1901 = vor.u32 %v1900, %v1896
      %v1902 = vrot.slane %v1901, 4
      %v1904 = vshll.u32 %v1523, 16
      %v1906 = vrot.slane %v1904, 5
      %v1907 = vsel %vm428, %v1902, %v1906
      %1908 = vrot.lane.b32.xlu0 %v1537, 64
      %v1909 = vpop.permute.xlu0 %1908
      %1910 = vrot.lane.b32.xlu0 %v1547, 64
      %v1911 = vpop.permute.xlu0 %1910
      %1912 = vrot.lane.b32.xlu0 %v1561, 64
      %v1913 = vpop.permute.xlu0 %1912
      %1914 = vrot.lane.b32.xlu0 %v1571, 64
      %v1915 = vpop.permute.xlu0 %1914
      %1916 = vrot.lane.b32.xlu0 %v1585, 64
      %v1917 = vpop.permute.xlu0 %1916
      %1918 = vrot.lane.b32.xlu0 %v1595, 64
      %v1919 = vpop.permute.xlu0 %1918
      %1920 = vrot.lane.b32.xlu0 %v1609, 64
      %v1921 = vpop.permute.xlu0 %1920
      %1922 = vrot.lane.b32.xlu0 %v1619, 64
      %v1923 = vpop.permute.xlu0 %1922
      %1924 = vrot.lane.b32.xlu0 %v1633, 64
      %v1925 = vpop.permute.xlu0 %1924
      %1926 = vrot.lane.b32.xlu0 %v1643, 64
      %v1927 = vpop.permute.xlu0 %1926
      %1928 = vrot.lane.b32.xlu0 %v1657, 64
      %v1929 = vpop.permute.xlu0 %1928
      %1930 = vrot.lane.b32.xlu0 %v1667, 64
      %v1931 = vpop.permute.xlu0 %1930
      %1932 = vrot.lane.b32.xlu0 %v1681, 64
      %v1933 = vpop.permute.xlu0 %1932
      %1934 = vrot.lane.b32.xlu0 %v1691, 64
      %v1935 = vpop.permute.xlu0 %1934
      %1936 = vrot.lane.b32.xlu0 %v1705, 64
      %v1937 = vpop.permute.xlu0 %1936
      %1938 = vrot.lane.b32.xlu0 %v1715, 64
      %v1939 = vpop.permute.xlu0 %1938
      %1940 = vrot.lane.b32.xlu0 %v1729, 64
      %v1941 = vpop.permute.xlu0 %1940
      %1942 = vrot.lane.b32.xlu0 %v1739, 64
      %v1943 = vpop.permute.xlu0 %1942
      %1944 = vrot.lane.b32.xlu0 %v1753, 64
      %v1945 = vpop.permute.xlu0 %1944
      %1946 = vrot.lane.b32.xlu0 %v1763, 64
      %v1947 = vpop.permute.xlu0 %1946
      %1948 = vrot.lane.b32.xlu0 %v1777, 64
      %v1949 = vpop.permute.xlu0 %1948
      %1950 = vrot.lane.b32.xlu0 %v1787, 64
      %v1951 = vpop.permute.xlu0 %1950
      %1952 = vrot.lane.b32.xlu0 %v1801, 64
      %v1953 = vpop.permute.xlu0 %1952
      %1954 = vrot.lane.b32.xlu0 %v1811, 64
      %v1955 = vpop.permute.xlu0 %1954
      %1956 = vrot.lane.b32.xlu0 %v1825, 64
      %v1957 = vpop.permute.xlu0 %1956
      %1958 = vrot.lane.b32.xlu0 %v1835, 64
      %v1959 = vpop.permute.xlu0 %1958
      %1960 = vrot.lane.b32.xlu0 %v1849, 64
      %v1961 = vpop.permute.xlu0 %1960
      %1962 = vrot.lane.b32.xlu0 %v1859, 64
      %v1963 = vpop.permute.xlu0 %1962
      %1964 = vrot.lane.b32.xlu0 %v1873, 64
      %v1965 = vpop.permute.xlu0 %1964
      %1966 = vrot.lane.b32.xlu0 %v1883, 64
      %v1967 = vpop.permute.xlu0 %1966
      %1968 = vrot.lane.b32.xlu0 %v1897, 64
      %v1969 = vpop.permute.xlu0 %1968
      %1970 = vrot.lane.b32.xlu0 %v1907, 64
      %v1971 = vpop.permute.xlu0 %1970
      %vm2004 = vcmask 650752
      %2005 = vst.msk [vmem:[#allocation2] sm:$0xf] %vm2004, %v1909
      %2006 = vst.msk [vmem:[#allocation2 + $0x8] sm:$0xf] %vm2004, %v1911
      %2007 = vst.msk [vmem:[#allocation2 + $0x10] sm:$0xf] %vm2004, %v1913
      %2008 = vst.msk [vmem:[#allocation2 + $0x18] sm:$0xf] %vm2004, %v1915
      %2009 = vst.msk [vmem:[#allocation2 + $0x20] sm:$0xf] %vm2004, %v1917
      %2010 = vst.msk [vmem:[#allocation2 + $0x28] sm:$0xf] %vm2004, %v1919
      %2011 = vst.msk [vmem:[#allocation2 + $0x30] sm:$0xf] %vm2004, %v1921
      %2012 = vst.msk [vmem:[#allocation2 + $0x38] sm:$0xf] %vm2004, %v1923
      %2013 = vst.msk [vmem:[#allocation2 + $0x40] sm:$0xf] %vm2004, %v1925
      %2014 = vst.msk [vmem:[#allocation2 + $0x48] sm:$0xf] %vm2004, %v1927
      %2015 = vst.msk [vmem:[#allocation2 + $0x50] sm:$0xf] %vm2004, %v1929
      %2016 = vst.msk [vmem:[#allocation2 + $0x58] sm:$0xf] %vm2004, %v1931
      %2017 = vst.msk [vmem:[#allocation2 + $0x60] sm:$0xf] %vm2004, %v1933
      %2018 = vst.msk [vmem:[#allocation2 + $0x68] sm:$0xf] %vm2004, %v1935
      %2019 = vst.msk [vmem:[#allocation2 + $0x70] sm:$0xf] %vm2004, %v1937
      %2020 = vst.msk [vmem:[#allocation2 + $0x78] sm:$0xf] %vm2004, %v1939
      %2021 = vst.msk [vmem:[#allocation2 + $0x80] sm:$0xf] %vm2004, %v1941
      %2022 = vst.msk [vmem:[#allocation2 + $0x88] sm:$0xf] %vm2004, %v1943
      %2023 = vst.msk [vmem:[#allocation2 + $0x90] sm:$0xf] %vm2004, %v1945
      %2024 = vst.msk [vmem:[#allocation2 + $0x98] sm:$0xf] %vm2004, %v1947
      %2025 = vst.msk [vmem:[#allocation2 + $0xa0] sm:$0xf] %vm2004, %v1949
      %2026 = vst.msk [vmem:[#allocation2 + $0xa8] sm:$0xf] %vm2004, %v1951
      %2027 = vst.msk [vmem:[#allocation2 + $0xb0] sm:$0xf] %vm2004, %v1953
      %2028 = vst.msk [vmem:[#allocation2 + $0xb8] sm:$0xf] %vm2004, %v1955
      %2029 = vst.msk [vmem:[#allocation2 + $0xc0] sm:$0xf] %vm2004, %v1957
      %2030 = vst.msk [vmem:[#allocation2 + $0xc8] sm:$0xf] %vm2004, %v1959
      %2031 = vst.msk [vmem:[#allocation2 + $0xd0] sm:$0xf] %vm2004, %v1961
      %2032 = vst.msk [vmem:[#allocation2 + $0xd8] sm:$0xf] %vm2004, %v1963
      %2033 = vst.msk [vmem:[#allocation2 + $0xe0] sm:$0xf] %vm2004, %v1965
      %2034 = vst.msk [vmem:[#allocation2 + $0xe8] sm:$0xf] %vm2004, %v1967
      %2035 = vst.msk [vmem:[#allocation2 + $0xf0] sm:$0xf] %vm2004, %v1969
      %2036 = vst.msk [vmem:[#allocation2 + $0xf8] sm:$0xf] %vm2004, %v1971
      %v2037 = vld [vmem:[%s1282] sm:$0xe]
      %v2038 = vld [vmem:[%s1282 + $0x4] sm:$0xf]
      %v2039 = vld [vmem:[%s1282 + $0x8] sm:$0x1]
      %v2040 = vld [vmem:[%s1282 + $0xc] sm:$0xe]
      %v2041 = vld [vmem:[%s1282 + $0x10] sm:$0xf]
      %v2042 = vld [vmem:[%s1282 + $0x14] sm:$0x1]
      %v2043 = vld [vmem:[%s1282 + $0x18] sm:$0xe]
      %v2044 = vld [vmem:[%s1282 + $0x1c] sm:$0xf]
      %v2045 = vld [vmem:[%s1282 + $0x20] sm:$0x1]
      %v2046 = vld [vmem:[%s1282 + $0x24] sm:$0xe]
      %v2047 = vld [vmem:[%s1282 + $0x28] sm:$0xf]
      %v2048 = vld [vmem:[%s1282 + $0x2c] sm:$0x1]
      %v2049 = vld [vmem:[%s1282 + $0x30] sm:$0xe]
      %v2050 = vld [vmem:[%s1282 + $0x34] sm:$0xf]
      %v2051 = vld [vmem:[%s1282 + $0x38] sm:$0x1]
      %v2052 = vld [vmem:[%s1282 + $0x3c] sm:$0xe]
      %v2053 = vld [vmem:[%s1282 + $0x40] sm:$0xf]
      %v2054 = vld [vmem:[%s1282 + $0x44] sm:$0x1]
      %v2055 = vld [vmem:[%s1282 + $0x48] sm:$0xe]
      %v2056 = vld [vmem:[%s1282 + $0x4c] sm:$0xf]
      %v2057 = vld [vmem:[%s1282 + $0x50] sm:$0x1]
      %v2058 = vld [vmem:[%s1282 + $0x54] sm:$0xe]
      %v2059 = vld [vmem:[%s1282 + $0x58] sm:$0xf]
      %v2060 = vld [vmem:[%s1282 + $0x5c] sm:$0x1]
      %v2061 = vld [vmem:[%s1282 + $0x60] sm:$0xe]
      %v2062 = vld [vmem:[%s1282 + $0x64] sm:$0xf]
      %v2063 = vld [vmem:[%s1282 + $0x68] sm:$0x1]
      %v2064 = vld [vmem:[%s1282 + $0x6c] sm:$0xe]
      %v2065 = vld [vmem:[%s1282 + $0x70] sm:$0xf]
      %v2066 = vld [vmem:[%s1282 + $0x74] sm:$0x1]
      %v2067 = vld [vmem:[%s1282 + $0x78] sm:$0xe]
      %v2068 = vld [vmem:[%s1282 + $0x7c] sm:$0xf]
      %v2069 = vld [vmem:[%s1282 + $0x80] sm:$0x1]
      %v2070 = vld [vmem:[%s1282 + $0x84] sm:$0xe]
      %v2071 = vld [vmem:[%s1282 + $0x88] sm:$0xf]
      %v2072 = vld [vmem:[%s1282 + $0x8c] sm:$0x1]
      %v2073 = vld [vmem:[%s1282 + $0x90] sm:$0xe]
      %v2074 = vld [vmem:[%s1282 + $0x94] sm:$0xf]
      %v2075 = vld [vmem:[%s1282 + $0x98] sm:$0x1]
      %v2076 = vld [vmem:[%s1282 + $0x9c] sm:$0xe]
      %v2077 = vld [vmem:[%s1282 + $0xa0] sm:$0xf]
      %v2078 = vld [vmem:[%s1282 + $0xa4] sm:$0x1]
      %v2079 = vld [vmem:[%s1282 + $0xa8] sm:$0xe]
      %v2080 = vld [vmem:[%s1282 + $0xac] sm:$0xf]
      %v2081 = vld [vmem:[%s1282 + $0xb0] sm:$0x1]
      %v2082 = vld [vmem:[%s1282 + $0xb4] sm:$0xe]
      %v2083 = vld [vmem:[%s1282 + $0xb8] sm:$0xf]
      %v2084 = vld [vmem:[%s1282 + $0xbc] sm:$0x1]
      %v2133 = vrot.slane %v2037, 5
      %v2134 = vrot.slane %v2133, 4
      %v2135 = vrot.slane %v2038, 5
      %v2136 = vsel %vm1040, %v2134, %v2135
      %v2137 = vrot.slane %v2135, 4
      %v2138 = vrot.slane %v2039, 5
      %v2139 = vsel %vm1040, %v2137, %v2138
      %v2140 = vrot.slane %v2040, 5
      %v2141 = vrot.slane %v2140, 4
      %v2142 = vrot.slane %v2041, 5
      %v2143 = vsel %vm1040, %v2141, %v2142
      %v2144 = vrot.slane %v2142, 4
      %v2145 = vrot.slane %v2042, 5
      %v2146 = vsel %vm1040, %v2144, %v2145
      %v2147 = vrot.slane %v2043, 5
      %v2148 = vrot.slane %v2147, 4
      %v2149 = vrot.slane %v2044, 5
      %v2150 = vsel %vm1040, %v2148, %v2149
      %v2151 = vrot.slane %v2149, 4
      %v2152 = vrot.slane %v2045, 5
      %v2153 = vsel %vm1040, %v2151, %v2152
      %v2154 = vrot.slane %v2046, 5
      %v2155 = vrot.slane %v2154, 4
      %v2156 = vrot.slane %v2047, 5
      %v2157 = vsel %vm1040, %v2155, %v2156
      %v2158 = vrot.slane %v2156, 4
      %v2159 = vrot.slane %v2048, 5
      %v2160 = vsel %vm1040, %v2158, %v2159
      %v2161 = vrot.slane %v2049, 5
      %v2162 = vrot.slane %v2161, 4
      %v2163 = vrot.slane %v2050, 5
      %v2164 = vsel %vm1040, %v2162, %v2163
      %v2165 = vrot.slane %v2163, 4
      %v2166 = vrot.slane %v2051, 5
      %v2167 = vsel %vm1040, %v2165, %v2166
      %v2168 = vrot.slane %v2052, 5
      %v2169 = vrot.slane %v2168, 4
      %v2170 = vrot.slane %v2053, 5
      %v2171 = vsel %vm1040, %v2169, %v2170
      %v2172 = vrot.slane %v2170, 4
      %v2173 = vrot.slane %v2054, 5
      %v2174 = vsel %vm1040, %v2172, %v2173
      %v2175 = vrot.slane %v2055, 5
      %v2176 = vrot.slane %v2175, 4
      %v2177 = vrot.slane %v2056, 5
      %v2178 = vsel %vm1040, %v2176, %v2177
      %v2179 = vrot.slane %v2177, 4
      %v2180 = vrot.slane %v2057, 5
      %v2181 = vsel %vm1040, %v2179, %v2180
      %v2182 = vrot.slane %v2058, 5
      %v2183 = vrot.slane %v2182, 4
      %v2184 = vrot.slane %v2059, 5
      %v2185 = vsel %vm1040, %v2183, %v2184
      %v2186 = vrot.slane %v2184, 4
      %v2187 = vrot.slane %v2060, 5
      %v2188 = vsel %vm1040, %v2186, %v2187
      %v2189 = vrot.slane %v2061, 5
      %v2190 = vrot.slane %v2189, 4
      %v2191 = vrot.slane %v2062, 5
      %v2192 = vsel %vm1040, %v2190, %v2191
      %v2193 = vrot.slane %v2191, 4
      %v2194 = vrot.slane %v2063, 5
      %v2195 = vsel %vm1040, %v2193, %v2194
      %v2196 = vrot.slane %v2064, 5
      %v2197 = vrot.slane %v2196, 4
      %v2198 = vrot.slane %v2065, 5
      %v2199 = vsel %vm1040, %v2197, %v2198
      %v2200 = vrot.slane %v2198, 4
      %v2201 = vrot.slane %v2066, 5
      %v2202 = vsel %vm1040, %v2200, %v2201
      %v2203 = vrot.slane %v2067, 5
      %v2204 = vrot.slane %v2203, 4
      %v2205 = vrot.slane %v2068, 5
      %v2206 = vsel %vm1040, %v2204, %v2205
      %v2207 = vrot.slane %v2205, 4
      %v2208 = vrot.slane %v2069, 5
      %v2209 = vsel %vm1040, %v2207, %v2208
      %v2210 = vrot.slane %v2070, 5
      %v2211 = vrot.slane %v2210, 4
      %v2212 = vrot.slane %v2071, 5
      %v2213 = vsel %vm1040, %v2211, %v2212
      %v2214 = vrot.slane %v2212, 4
      %v2215 = vrot.slane %v2072, 5
      %v2216 = vsel %vm1040, %v2214, %v2215
      %v2217 = vrot.slane %v2073, 5
      %v2218 = vrot.slane %v2217, 4
      %v2219 = vrot.slane %v2074, 5
      %v2220 = vsel %vm1040, %v2218, %v2219
      %v2221 = vrot.slane %v2219, 4
      %v2222 = vrot.slane %v2075, 5
      %v2223 = vsel %vm1040, %v2221, %v2222
      %v2224 = vrot.slane %v2076, 5
      %v2225 = vrot.slane %v2224, 4
      %v2226 = vrot.slane %v2077, 5
      %v2227 = vsel %vm1040, %v2225, %v2226
      %v2228 = vrot.slane %v2226, 4
      %v2229 = vrot.slane %v2078, 5
      %v2230 = vsel %vm1040, %v2228, %v2229
      %v2231 = vrot.slane %v2079, 5
      %v2232 = vrot.slane %v2231, 4
      %v2233 = vrot.slane %v2080, 5
      %v2234 = vsel %vm1040, %v2232, %v2233
      %v2235 = vrot.slane %v2233, 4
      %v2236 = vrot.slane %v2081, 5
      %v2237 = vsel %vm1040, %v2235, %v2236
      %v2238 = vrot.slane %v2082, 5
      %v2239 = vrot.slane %v2238, 4
      %v2240 = vrot.slane %v2083, 5
      %v2241 = vsel %vm1040, %v2239, %v2240
      %v2242 = vrot.slane %v2240, 4
      %v2243 = vrot.slane %v2084, 5
      %v2244 = vsel %vm1040, %v2242, %v2243
      %2245 = vrot.lane.b32.xlu0 %v2136, 80
      %v2246 = vpop.permute.xlu0 %2245
      %2247 = vrot.lane.b32.xlu0 %v2139, 80
      %v2248 = vpop.permute.xlu0 %2247
      %2249 = vrot.lane.b32.xlu0 %v2143, 80
      %v2250 = vpop.permute.xlu0 %2249
      %2251 = vrot.lane.b32.xlu0 %v2146, 80
      %v2252 = vpop.permute.xlu0 %2251
      %2253 = vrot.lane.b32.xlu0 %v2150, 80
      %v2254 = vpop.permute.xlu0 %2253
      %2255 = vrot.lane.b32.xlu0 %v2153, 80
      %v2256 = vpop.permute.xlu0 %2255
      %2257 = vrot.lane.b32.xlu0 %v2157, 80
      %v2258 = vpop.permute.xlu0 %2257
      %2259 = vrot.lane.b32.xlu0 %v2160, 80
      %v2260 = vpop.permute.xlu0 %2259
      %2261 = vrot.lane.b32.xlu0 %v2164, 80
      %v2262 = vpop.permute.xlu0 %2261
      %2263 = vrot.lane.b32.xlu0 %v2167, 80
      %v2264 = vpop.permute.xlu0 %2263
      %2265 = vrot.lane.b32.xlu0 %v2171, 80
      %v2266 = vpop.permute.xlu0 %2265
      %2267 = vrot.lane.b32.xlu0 %v2174, 80
      %v2268 = vpop.permute.xlu0 %2267
      %2269 = vrot.lane.b32.xlu0 %v2178, 80
      %v2270 = vpop.permute.xlu0 %2269
      %2271 = vrot.lane.b32.xlu0 %v2181, 80
      %v2272 = vpop.permute.xlu0 %2271
      %2273 = vrot.lane.b32.xlu0 %v2185, 80
      %v2274 = vpop.permute.xlu0 %2273
      %2275 = vrot.lane.b32.xlu0 %v2188, 80
      %v2276 = vpop.permute.xlu0 %2275
      %2277 = vrot.lane.b32.xlu0 %v2192, 80
      %v2278 = vpop.permute.xlu0 %2277
      %2279 = vrot.lane.b32.xlu0 %v2195, 80
      %v2280 = vpop.permute.xlu0 %2279
      %2281 = vrot.lane.b32.xlu0 %v2199, 80
      %v2282 = vpop.permute.xlu0 %2281
      %2283 = vrot.lane.b32.xlu0 %v2202, 80
      %v2284 = vpop.permute.xlu0 %2283
      %2285 = vrot.lane.b32.xlu0 %v2206, 80
      %v2286 = vpop.permute.xlu0 %2285
      %2287 = vrot.lane.b32.xlu0 %v2209, 80
      %v2288 = vpop.permute.xlu0 %2287
      %2289 = vrot.lane.b32.xlu0 %v2213, 80
      %v2290 = vpop.permute.xlu0 %2289
      %2291 = vrot.lane.b32.xlu0 %v2216, 80
      %v2292 = vpop.permute.xlu0 %2291
      %2293 = vrot.lane.b32.xlu0 %v2220, 80
      %v2294 = vpop.permute.xlu0 %2293
      %2295 = vrot.lane.b32.xlu0 %v2223, 80
      %v2296 = vpop.permute.xlu0 %2295
      %2297 = vrot.lane.b32.xlu0 %v2227, 80
      %v2298 = vpop.permute.xlu0 %2297
      %2299 = vrot.lane.b32.xlu0 %v2230, 80
      %v2300 = vpop.permute.xlu0 %2299
      %2301 = vrot.lane.b32.xlu0 %v2234, 80
      %v2302 = vpop.permute.xlu0 %2301
      %2303 = vrot.lane.b32.xlu0 %v2237, 80
      %v2304 = vpop.permute.xlu0 %2303
      %2305 = vrot.lane.b32.xlu0 %v2241, 80
      %v2306 = vpop.permute.xlu0 %2305
      %2307 = vrot.lane.b32.xlu0 %v2244, 80
      %v2308 = vpop.permute.xlu0 %2307
      %vm2341 = vcmask 781952
      %2342 = vst.msk [vmem:[#allocation2] sm:$0xf] %vm2341, %v2246
      %2343 = vst.msk [vmem:[#allocation2 + $0x8] sm:$0xf] %vm2341, %v2248
      %2344 = vst.msk [vmem:[#allocation2 + $0x10] sm:$0xf] %vm2341, %v2250
      %2345 = vst.msk [vmem:[#allocation2 + $0x18] sm:$0xf] %vm2341, %v2252
      %2346 = vst.msk [vmem:[#allocation2 + $0x20] sm:$0xf] %vm2341, %v2254
      %2347 = vst.msk [vmem:[#allocation2 + $0x28] sm:$0xf] %vm2341, %v2256
      %2348 = vst.msk [vmem:[#allocation2 + $0x30] sm:$0xf] %vm2341, %v2258
      %2349 = vst.msk [vmem:[#allocation2 + $0x38] sm:$0xf] %vm2341, %v2260
      %2350 = vst.msk [vmem:[#allocation2 + $0x40] sm:$0xf] %vm2341, %v2262
      %2351 = vst.msk [vmem:[#allocation2 + $0x48] sm:$0xf] %vm2341, %v2264
      %2352 = vst.msk [vmem:[#allocation2 + $0x50] sm:$0xf] %vm2341, %v2266
      %2353 = vst.msk [vmem:[#allocation2 + $0x58] sm:$0xf] %vm2341, %v2268
      %2354 = vst.msk [vmem:[#allocation2 + $0x60] sm:$0xf] %vm2341, %v2270
      %2355 = vst.msk [vmem:[#allocation2 + $0x68] sm:$0xf] %vm2341, %v2272
      %2356 = vst.msk [vmem:[#allocation2 + $0x70] sm:$0xf] %vm2341, %v2274
      %2357 = vst.msk [vmem:[#allocation2 + $0x78] sm:$0xf] %vm2341, %v2276
      %2358 = vst.msk [vmem:[#allocation2 + $0x80] sm:$0xf] %vm2341, %v2278
      %2359 = vst.msk [vmem:[#allocation2 + $0x88] sm:$0xf] %vm2341, %v2280
      %2360 = vst.msk [vmem:[#allocation2 + $0x90] sm:$0xf] %vm2341, %v2282
      %2361 = vst.msk [vmem:[#allocation2 + $0x98] sm:$0xf] %vm2341, %v2284
      %2362 = vst.msk [vmem:[#allocation2 + $0xa0] sm:$0xf] %vm2341, %v2286
      %2363 = vst.msk [vmem:[#allocation2 + $0xa8] sm:$0xf] %vm2341, %v2288
      %2364 = vst.msk [vmem:[#allocation2 + $0xb0] sm:$0xf] %vm2341, %v2290
      %2365 = vst.msk [vmem:[#allocation2 + $0xb8] sm:$0xf] %vm2341, %v2292
      %2366 = vst.msk [vmem:[#allocation2 + $0xc0] sm:$0xf] %vm2341, %v2294
      %2367 = vst.msk [vmem:[#allocation2 + $0xc8] sm:$0xf] %vm2341, %v2296
      %2368 = vst.msk [vmem:[#allocation2 + $0xd0] sm:$0xf] %vm2341, %v2298
      %2369 = vst.msk [vmem:[#allocation2 + $0xd8] sm:$0xf] %vm2341, %v2300
      %2370 = vst.msk [vmem:[#allocation2 + $0xe0] sm:$0xf] %vm2341, %v2302
      %2371 = vst.msk [vmem:[#allocation2 + $0xe8] sm:$0xf] %vm2341, %v2304
      %2372 = vst.msk [vmem:[#allocation2 + $0xf0] sm:$0xf] %vm2341, %v2306
      %2373 = vst.msk [vmem:[#allocation2 + $0xf8] sm:$0xf] %vm2341, %v2308
      %s2374 = scalar_lea.vmem %s284, 24
      %v2375 = vld [vmem:[%s2374] sm:$0xf]
      %v2376 = vld [vmem:[%s2374 + $0x4] sm:$0xf]
      %v2377 = vld [vmem:[%s2374 + $0xc] sm:$0xf]
      %v2378 = vld [vmem:[%s2374 + $0x10] sm:$0xf]
      %v2379 = vld [vmem:[%s2374 + $0x18] sm:$0xf]
      %v2380 = vld [vmem:[%s2374 + $0x1c] sm:$0xf]
      %v2381 = vld [vmem:[%s2374 + $0x24] sm:$0xf]
      %v2382 = vld [vmem:[%s2374 + $0x28] sm:$0xf]
      %v2383 = vld [vmem:[%s2374 + $0x30] sm:$0xf]
      %v2384 = vld [vmem:[%s2374 + $0x34] sm:$0xf]
      %v2385 = vld [vmem:[%s2374 + $0x3c] sm:$0xf]
      %v2386 = vld [vmem:[%s2374 + $0x40] sm:$0xf]
      %v2387 = vld [vmem:[%s2374 + $0x48] sm:$0xf]
      %v2388 = vld [vmem:[%s2374 + $0x4c] sm:$0xf]
      %v2389 = vld [vmem:[%s2374 + $0x54] sm:$0xf]
      %v2390 = vld [vmem:[%s2374 + $0x58] sm:$0xf]
      %v2391 = vld [vmem:[%s2374 + $0x60] sm:$0xf]
      %v2392 = vld [vmem:[%s2374 + $0x64] sm:$0xf]
      %v2393 = vld [vmem:[%s2374 + $0x6c] sm:$0xf]
      %v2394 = vld [vmem:[%s2374 + $0x70] sm:$0xf]
      %v2395 = vld [vmem:[%s2374 + $0x78] sm:$0xf]
      %v2396 = vld [vmem:[%s2374 + $0x7c] sm:$0xf]
      %v2397 = vld [vmem:[%s2374 + $0x84] sm:$0xf]
      %v2398 = vld [vmem:[%s2374 + $0x88] sm:$0xf]
      %v2399 = vld [vmem:[%s2374 + $0x90] sm:$0xf]
      %v2400 = vld [vmem:[%s2374 + $0x94] sm:$0xf]
      %v2401 = vld [vmem:[%s2374 + $0x9c] sm:$0xf]
      %v2402 = vld [vmem:[%s2374 + $0xa0] sm:$0xf]
      %v2403 = vld [vmem:[%s2374 + $0xa8] sm:$0xf]
      %v2404 = vld [vmem:[%s2374 + $0xac] sm:$0xf]
      %v2405 = vld [vmem:[%s2374 + $0xb4] sm:$0xf]
      %v2406 = vld [vmem:[%s2374 + $0xb8] sm:$0xf]
      %2439 = vrot.lane.b32.xlu0 %v2375, 96
      %v2440 = vpop.permute.xlu0 %2439
      %2441 = vrot.lane.b32.xlu0 %v2376, 96
      %v2442 = vpop.permute.xlu0 %2441
      %2443 = vrot.lane.b32.xlu0 %v2377, 96
      %v2444 = vpop.permute.xlu0 %2443
      %2445 = vrot.lane.b32.xlu0 %v2378, 96
      %v2446 = vpop.permute.xlu0 %2445
      %2447 = vrot.lane.b32.xlu0 %v2379, 96
      %v2448 = vpop.permute.xlu0 %2447
      %2449 = vrot.lane.b32.xlu0 %v2380, 96
      %v2450 = vpop.permute.xlu0 %2449
      %2451 = vrot.lane.b32.xlu0 %v2381, 96
      %v2452 = vpop.permute.xlu0 %2451
      %2453 = vrot.lane.b32.xlu0 %v2382, 96
      %v2454 = vpop.permute.xlu0 %2453
      %2455 = vrot.lane.b32.xlu0 %v2383, 96
      %v2456 = vpop.permute.xlu0 %2455
      %2457 = vrot.lane.b32.xlu0 %v2384, 96
      %v2458 = vpop.permute.xlu0 %2457
      %2459 = vrot.lane.b32.xlu0 %v2385, 96
      %v2460 = vpop.permute.xlu0 %2459
      %2461 = vrot.lane.b32.xlu0 %v2386, 96
      %v2462 = vpop.permute.xlu0 %2461
      %2463 = vrot.lane.b32.xlu0 %v2387, 96
      %v2464 = vpop.permute.xlu0 %2463
      %2465 = vrot.lane.b32.xlu0 %v2388, 96
      %v2466 = vpop.permute.xlu0 %2465
      %2467 = vrot.lane.b32.xlu0 %v2389, 96
      %v2468 = vpop.permute.xlu0 %2467
      %2469 = vrot.lane.b32.xlu0 %v2390, 96
      %v2470 = vpop.permute.xlu0 %2469
      %2471 = vrot.lane.b32.xlu0 %v2391, 96
      %v2472 = vpop.permute.xlu0 %2471
      %2473 = vrot.lane.b32.xlu0 %v2392, 96
      %v2474 = vpop.permute.xlu0 %2473
      %2475 = vrot.lane.b32.xlu0 %v2393, 96
      %v2476 = vpop.permute.xlu0 %2475
      %2477 = vrot.lane.b32.xlu0 %v2394, 96
      %v2478 = vpop.permute.xlu0 %2477
      %2479 = vrot.lane.b32.xlu0 %v2395, 96
      %v2480 = vpop.permute.xlu0 %2479
      %2481 = vrot.lane.b32.xlu0 %v2396, 96
      %v2482 = vpop.permute.xlu0 %2481
      %2483 = vrot.lane.b32.xlu0 %v2397, 96
      %v2484 = vpop.permute.xlu0 %2483
      %2485 = vrot.lane.b32.xlu0 %v2398, 96
      %v2486 = vpop.permute.xlu0 %2485
      %2487 = vrot.lane.b32.xlu0 %v2399, 96
      %v2488 = vpop.permute.xlu0 %2487
      %2489 = vrot.lane.b32.xlu0 %v2400, 96
      %v2490 = vpop.permute.xlu0 %2489
      %2491 = vrot.lane.b32.xlu0 %v2401, 96
      %v2492 = vpop.permute.xlu0 %2491
      %2493 = vrot.lane.b32.xlu0 %v2402, 96
      %v2494 = vpop.permute.xlu0 %2493
      %2495 = vrot.lane.b32.xlu0 %v2403, 96
      %v2496 = vpop.permute.xlu0 %2495
      %2497 = vrot.lane.b32.xlu0 %v2404, 96
      %v2498 = vpop.permute.xlu0 %2497
      %2499 = vrot.lane.b32.xlu0 %v2405, 96
      %v2500 = vpop.permute.xlu0 %2499
      %2501 = vrot.lane.b32.xlu0 %v2406, 96
      %v2502 = vpop.permute.xlu0 %2501
      %vm2535 = vcmask 913152
      %2536 = vst.msk [vmem:[#allocation2] sm:$0xf] %vm2535, %v2440
      %2537 = vst.msk [vmem:[#allocation2 + $0x8] sm:$0xf] %vm2535, %v2442
      %2538 = vst.msk [vmem:[#allocation2 + $0x10] sm:$0xf] %vm2535, %v2444
      %2539 = vst.msk [vmem:[#allocation2 + $0x18] sm:$0xf] %vm2535, %v2446
      %2540 = vst.msk [vmem:[#allocation2 + $0x20] sm:$0xf] %vm2535, %v2448
      %2541 = vst.msk [vmem:[#allocation2 + $0x28] sm:$0xf] %vm2535, %v2450
      %2542 = vst.msk [vmem:[#allocation2 + $0x30] sm:$0xf] %vm2535, %v2452
      %2543 = vst.msk [vmem:[#allocation2 + $0x38] sm:$0xf] %vm2535, %v2454
      %2544 = vst.msk [vmem:[#allocation2 + $0x40] sm:$0xf] %vm2535, %v2456
      %2545 = vst.msk [vmem:[#allocation2 + $0x48] sm:$0xf] %vm2535, %v2458
      %2546 = vst.msk [vmem:[#allocation2 + $0x50] sm:$0xf] %vm2535, %v2460
      %2547 = vst.msk [vmem:[#allocation2 + $0x58] sm:$0xf] %vm2535, %v2462
      %2548 = vst.msk [vmem:[#allocation2 + $0x60] sm:$0xf] %vm2535, %v2464
      %2549 = vst.msk [vmem:[#allocation2 + $0x68] sm:$0xf] %vm2535, %v2466
      %2550 = vst.msk [vmem:[#allocation2 + $0x70] sm:$0xf] %vm2535, %v2468
      %2551 = vst.msk [vmem:[#allocation2 + $0x78] sm:$0xf] %vm2535, %v2470
      %2552 = vst.msk [vmem:[#allocation2 + $0x80] sm:$0xf] %vm2535, %v2472
      %2553 = vst.msk [vmem:[#allocation2 + $0x88] sm:$0xf] %vm2535, %v2474
      %2554 = vst.msk [vmem:[#allocation2 + $0x90] sm:$0xf] %vm2535, %v2476
      %2555 = vst.msk [vmem:[#allocation2 + $0x98] sm:$0xf] %vm2535, %v2478
      %2556 = vst.msk [vmem:[#allocation2 + $0xa0] sm:$0xf] %vm2535, %v2480
      %2557 = vst.msk [vmem:[#allocation2 + $0xa8] sm:$0xf] %vm2535, %v2482
      %2558 = vst.msk [vmem:[#allocation2 + $0xb0] sm:$0xf] %vm2535, %v2484
      %2559 = vst.msk [vmem:[#allocation2 + $0xb8] sm:$0xf] %vm2535, %v2486
      %2560 = vst.msk [vmem:[#allocation2 + $0xc0] sm:$0xf] %vm2535, %v2488
      %2561 = vst.msk [vmem:[#allocation2 + $0xc8] sm:$0xf] %vm2535, %v2490
      %2562 = vst.msk [vmem:[#allocation2 + $0xd0] sm:$0xf] %vm2535, %v2492
      %2563 = vst.msk [vmem:[#allocation2 + $0xd8] sm:$0xf] %vm2535, %v2494
      %2564 = vst.msk [vmem:[#allocation2 + $0xe0] sm:$0xf] %vm2535, %v2496
      %2565 = vst.msk [vmem:[#allocation2 + $0xe8] sm:$0xf] %vm2535, %v2498
      %2566 = vst.msk [vmem:[#allocation2 + $0xf0] sm:$0xf] %vm2535, %v2500
      %2567 = vst.msk [vmem:[#allocation2 + $0xf8] sm:$0xf] %vm2535, %v2502
      %v2568 = vld [vmem:[%s2374] sm:$0xf]
      %v2569 = vld [vmem:[%s2374 + $0x4] sm:$0xf]
      %v2570 = vld [vmem:[%s2374 + $0x8] sm:$0x1]
      %v2571 = vld [vmem:[%s2374 + $0xc] sm:$0xf]
      %v2572 = vld [vmem:[%s2374 + $0x10] sm:$0xf]
      %v2573 = vld [vmem:[%s2374 + $0x14] sm:$0x1]
      %v2574 = vld [vmem:[%s2374 + $0x18] sm:$0xf]
      %v2575 = vld [vmem:[%s2374 + $0x1c] sm:$0xf]
      %v2576 = vld [vmem:[%s2374 + $0x20] sm:$0x1]
      %v2577 = vld [vmem:[%s2374 + $0x24] sm:$0xf]
      %v2578 = vld [vmem:[%s2374 + $0x28] sm:$0xf]
      %v2579 = vld [vmem:[%s2374 + $0x2c] sm:$0x1]
      %v2580 = vld [vmem:[%s2374 + $0x30] sm:$0xf]
      %v2581 = vld [vmem:[%s2374 + $0x34] sm:$0xf]
      %v2582 = vld [vmem:[%s2374 + $0x38] sm:$0x1]
      %v2583 = vld [vmem:[%s2374 + $0x3c] sm:$0xf]
      %v2584 = vld [vmem:[%s2374 + $0x40] sm:$0xf]
      %v2585 = vld [vmem:[%s2374 + $0x44] sm:$0x1]
      %v2586 = vld [vmem:[%s2374 + $0x48] sm:$0xf]
      %v2587 = vld [vmem:[%s2374 + $0x4c] sm:$0xf]
      %v2588 = vld [vmem:[%s2374 + $0x50] sm:$0x1]
      %v2589 = vld [vmem:[%s2374 + $0x54] sm:$0xf]
      %v2590 = vld [vmem:[%s2374 + $0x58] sm:$0xf]
      %v2591 = vld [vmem:[%s2374 + $0x5c] sm:$0x1]
      %v2592 = vld [vmem:[%s2374 + $0x60] sm:$0xf]
      %v2593 = vld [vmem:[%s2374 + $0x64] sm:$0xf]
      %v2594 = vld [vmem:[%s2374 + $0x68] sm:$0x1]
      %v2595 = vld [vmem:[%s2374 + $0x6c] sm:$0xf]
      %v2596 = vld [vmem:[%s2374 + $0x70] sm:$0xf]
      %v2597 = vld [vmem:[%s2374 + $0x74] sm:$0x1]
      %v2598 = vld [vmem:[%s2374 + $0x78] sm:$0xf]
      %v2599 = vld [vmem:[%s2374 + $0x7c] sm:$0xf]
      %v2600 = vld [vmem:[%s2374 + $0x80] sm:$0x1]
      %v2601 = vld [vmem:[%s2374 + $0x84] sm:$0xf]
      %v2602 = vld [vmem:[%s2374 + $0x88] sm:$0xf]
      %v2603 = vld [vmem:[%s2374 + $0x8c] sm:$0x1]
      %v2604 = vld [vmem:[%s2374 + $0x90] sm:$0xf]
      %v2605 = vld [vmem:[%s2374 + $0x94] sm:$0xf]
      %v2606 = vld [vmem:[%s2374 + $0x98] sm:$0x1]
      %v2607 = vld [vmem:[%s2374 + $0x9c] sm:$0xf]
      %v2608 = vld [vmem:[%s2374 + $0xa0] sm:$0xf]
      %v2609 = vld [vmem:[%s2374 + $0xa4] sm:$0x1]
      %v2610 = vld [vmem:[%s2374 + $0xa8] sm:$0xf]
      %v2611 = vld [vmem:[%s2374 + $0xac] sm:$0xf]
      %v2612 = vld [vmem:[%s2374 + $0xb0] sm:$0x1]
      %v2613 = vld [vmem:[%s2374 + $0xb4] sm:$0xf]
      %v2614 = vld [vmem:[%s2374 + $0xb8] sm:$0xf]
      %v2615 = vld [vmem:[%s2374 + $0xbc] sm:$0x1]
      %v2617 = vshrl.u32 %v2568, 16
      %v2619 = vrot.slane %v2617, 4
      %v2620 = vshll.u32 %v2568, 16
      %v2622 = vrot.slane %v2620, 5
      %v2623 = vor.u32 %v2619, %v2622
      %v2624 = vrot.slane %v2623, 4
      %v2626 = vshll.u32 %v2569, 16
      %v2628 = vrot.slane %v2626, 5
      %v2629 = vsel %vm428, %v2624, %v2628
      %v2630 = vshrl.u32 %v2569, 16
      %v2632 = vrot.slane %v2630, 4
      %v2633 = vor.u32 %v2632, %v2628
      %v2634 = vrot.slane %v2633, 4
      %v2636 = vshll.u32 %v2570, 16
      %v2638 = vrot.slane %v2636, 5
      %v2639 = vsel %vm428, %v2634, %v2638
      %v2641 = vshrl.u32 %v2571, 16
      %v2643 = vrot.slane %v2641, 4
      %v2644 = vshll.u32 %v2571, 16
      %v2646 = vrot.slane %v2644, 5
      %v2647 = vor.u32 %v2643, %v2646
      %v2648 = vrot.slane %v2647, 4
      %v2650 = vshll.u32 %v2572, 16
      %v2652 = vrot.slane %v2650, 5
      %v2653 = vsel %vm428, %v2648, %v2652
      %v2654 = vshrl.u32 %v2572, 16
      %v2656 = vrot.slane %v2654, 4
      %v2657 = vor.u32 %v2656, %v2652
      %v2658 = vrot.slane %v2657, 4
      %v2660 = vshll.u32 %v2573, 16
      %v2662 = vrot.slane %v2660, 5
      %v2663 = vsel %vm428, %v2658, %v2662
      %v2665 = vshrl.u32 %v2574, 16
      %v2667 = vrot.slane %v2665, 4
      %v2668 = vshll.u32 %v2574, 16
      %v2670 = vrot.slane %v2668, 5
      %v2671 = vor.u32 %v2667, %v2670
      %v2672 = vrot.slane %v2671, 4
      %v2674 = vshll.u32 %v2575, 16
      %v2676 = vrot.slane %v2674, 5
      %v2677 = vsel %vm428, %v2672, %v2676
      %v2678 = vshrl.u32 %v2575, 16
      %v2680 = vrot.slane %v2678, 4
      %v2681 = vor.u32 %v2680, %v2676
      %v2682 = vrot.slane %v2681, 4
      %v2684 = vshll.u32 %v2576, 16
      %v2686 = vrot.slane %v2684, 5
      %v2687 = vsel %vm428, %v2682, %v2686
      %v2689 = vshrl.u32 %v2577, 16
      %v2691 = vrot.slane %v2689, 4
      %v2692 = vshll.u32 %v2577, 16
      %v2694 = vrot.slane %v2692, 5
      %v2695 = vor.u32 %v2691, %v2694
      %v2696 = vrot.slane %v2695, 4
      %v2698 = vshll.u32 %v2578, 16
      %v2700 = vrot.slane %v2698, 5
      %v2701 = vsel %vm428, %v2696, %v2700
      %v2702 = vshrl.u32 %v2578, 16
      %v2704 = vrot.slane %v2702, 4
      %v2705 = vor.u32 %v2704, %v2700
      %v2706 = vrot.slane %v2705, 4
      %v2708 = vshll.u32 %v2579, 16
      %v2710 = vrot.slane %v2708, 5
      %v2711 = vsel %vm428, %v2706, %v2710
      %v2713 = vshrl.u32 %v2580, 16
      %v2715 = vrot.slane %v2713, 4
      %v2716 = vshll.u32 %v2580, 16
      %v2718 = vrot.slane %v2716, 5
      %v2719 = vor.u32 %v2715, %v2718
      %v2720 = vrot.slane %v2719, 4
      %v2722 = vshll.u32 %v2581, 16
      %v2724 = vrot.slane %v2722, 5
      %v2725 = vsel %vm428, %v2720, %v2724
      %v2726 = vshrl.u32 %v2581, 16
      %v2728 = vrot.slane %v2726, 4
      %v2729 = vor.u32 %v2728, %v2724
      %v2730 = vrot.slane %v2729, 4
      %v2732 = vshll.u32 %v2582, 16
      %v2734 = vrot.slane %v2732, 5
      %v2735 = vsel %vm428, %v2730, %v2734
      %v2737 = vshrl.u32 %v2583, 16
      %v2739 = vrot.slane %v2737, 4
      %v2740 = vshll.u32 %v2583, 16
      %v2742 = vrot.slane %v2740, 5
      %v2743 = vor.u32 %v2739, %v2742
      %v2744 = vrot.slane %v2743, 4
      %v2746 = vshll.u32 %v2584, 16
      %v2748 = vrot.slane %v2746, 5
      %v2749 = vsel %vm428, %v2744, %v2748
      %v2750 = vshrl.u32 %v2584, 16
      %v2752 = vrot.slane %v2750, 4
      %v2753 = vor.u32 %v2752, %v2748
      %v2754 = vrot.slane %v2753, 4
      %v2756 = vshll.u32 %v2585, 16
      %v2758 = vrot.slane %v2756, 5
      %v2759 = vsel %vm428, %v2754, %v2758
      %v2761 = vshrl.u32 %v2586, 16
      %v2763 = vrot.slane %v2761, 4
      %v2764 = vshll.u32 %v2586, 16
      %v2766 = vrot.slane %v2764, 5
      %v2767 = vor.u32 %v2763, %v2766
      %v2768 = vrot.slane %v2767, 4
      %v2770 = vshll.u32 %v2587, 16
      %v2772 = vrot.slane %v2770, 5
      %v2773 = vsel %vm428, %v2768, %v2772
      %v2774 = vshrl.u32 %v2587, 16
      %v2776 = vrot.slane %v2774, 4
      %v2777 = vor.u32 %v2776, %v2772
      %v2778 = vrot.slane %v2777, 4
      %v2780 = vshll.u32 %v2588, 16
      %v2782 = vrot.slane %v2780, 5
      %v2783 = vsel %vm428, %v2778, %v2782
      %v2785 = vshrl.u32 %v2589, 16
      %v2787 = vrot.slane %v2785, 4
      %v2788 = vshll.u32 %v2589, 16
      %v2790 = vrot.slane %v2788, 5
      %v2791 = vor.u32 %v2787, %v2790
      %v2792 = vrot.slane %v2791, 4
      %v2794 = vshll.u32 %v2590, 16
      %v2796 = vrot.slane %v2794, 5
      %v2797 = vsel %vm428, %v2792, %v2796
      %v2798 = vshrl.u32 %v2590, 16
      %v2800 = vrot.slane %v2798, 4
      %v2801 = vor.u32 %v2800, %v2796
      %v2802 = vrot.slane %v2801, 4
      %v2804 = vshll.u32 %v2591, 16
      %v2806 = vrot.slane %v2804, 5
      %v2807 = vsel %vm428, %v2802, %v2806
      %v2809 = vshrl.u32 %v2592, 16
      %v2811 = vrot.slane %v2809, 4
      %v2812 = vshll.u32 %v2592, 16
      %v2814 = vrot.slane %v2812, 5
      %v2815 = vor.u32 %v2811, %v2814
      %v2816 = vrot.slane %v2815, 4
      %v2818 = vshll.u32 %v2593, 16
      %v2820 = vrot.slane %v2818, 5
      %v2821 = vsel %vm428, %v2816, %v2820
      %v2822 = vshrl.u32 %v2593, 16
      %v2824 = vrot.slane %v2822, 4
      %v2825 = vor.u32 %v2824, %v2820
      %v2826 = vrot.slane %v2825, 4
      %v2828 = vshll.u32 %v2594, 16
      %v2830 = vrot.slane %v2828, 5
      %v2831 = vsel %vm428, %v2826, %v2830
      %v2833 = vshrl.u32 %v2595, 16
      %v2835 = vrot.slane %v2833, 4
      %v2836 = vshll.u32 %v2595, 16
      %v2838 = vrot.slane %v2836, 5
      %v2839 = vor.u32 %v2835, %v2838
      %v2840 = vrot.slane %v2839, 4
      %v2842 = vshll.u32 %v2596, 16
      %v2844 = vrot.slane %v2842, 5
      %v2845 = vsel %vm428, %v2840, %v2844
      %v2846 = vshrl.u32 %v2596, 16
      %v2848 = vrot.slane %v2846, 4
      %v2849 = vor.u32 %v2848, %v2844
      %v2850 = vrot.slane %v2849, 4
      %v2852 = vshll.u32 %v2597, 16
      %v2854 = vrot.slane %v2852, 5
      %v2855 = vsel %vm428, %v2850, %v2854
      %v2857 = vshrl.u32 %v2598, 16
      %v2859 = vrot.slane %v2857, 4
      %v2860 = vshll.u32 %v2598, 16
      %v2862 = vrot.slane %v2860, 5
      %v2863 = vor.u32 %v2859, %v2862
      %v2864 = vrot.slane %v2863, 4
      %v2866 = vshll.u32 %v2599, 16
      %v2868 = vrot.slane %v2866, 5
      %v2869 = vsel %vm428, %v2864, %v2868
      %v2870 = vshrl.u32 %v2599, 16
      %v2872 = vrot.slane %v2870, 4
      %v2873 = vor.u32 %v2872, %v2868
      %v2874 = vrot.slane %v2873, 4
      %v2876 = vshll.u32 %v2600, 16
      %v2878 = vrot.slane %v2876, 5
      %v2879 = vsel %vm428, %v2874, %v2878
      %v2881 = vshrl.u32 %v2601, 16
      %v2883 = vrot.slane %v2881, 4
      %v2884 = vshll.u32 %v2601, 16
      %v2886 = vrot.slane %v2884, 5
      %v2887 = vor.u32 %v2883, %v2886
      %v2888 = vrot.slane %v2887, 4
      %v2890 = vshll.u32 %v2602, 16
      %v2892 = vrot.slane %v2890, 5
      %v2893 = vsel %vm428, %v2888, %v2892
      %v2894 = vshrl.u32 %v2602, 16
      %v2896 = vrot.slane %v2894, 4
      %v2897 = vor.u32 %v2896, %v2892
      %v2898 = vrot.slane %v2897, 4
      %v2900 = vshll.u32 %v2603, 16
      %v2902 = vrot.slane %v2900, 5
      %v2903 = vsel %vm428, %v2898, %v2902
      %v2905 = vshrl.u32 %v2604, 16
      %v2907 = vrot.slane %v2905, 4
      %v2908 = vshll.u32 %v2604, 16
      %v2910 = vrot.slane %v2908, 5
      %v2911 = vor.u32 %v2907, %v2910
      %v2912 = vrot.slane %v2911, 4
      %v2914 = vshll.u32 %v2605, 16
      %v2916 = vrot.slane %v2914, 5
      %v2917 = vsel %vm428, %v2912, %v2916
      %v2918 = vshrl.u32 %v2605, 16
      %v2920 = vrot.slane %v2918, 4
      %v2921 = vor.u32 %v2920, %v2916
      %v2922 = vrot.slane %v2921, 4
      %v2924 = vshll.u32 %v2606, 16
      %v2926 = vrot.slane %v2924, 5
      %v2927 = vsel %vm428, %v2922, %v2926
      %v2929 = vshrl.u32 %v2607, 16
      %v2931 = vrot.slane %v2929, 4
      %v2932 = vshll.u32 %v2607, 16
      %v2934 = vrot.slane %v2932, 5
      %v2935 = vor.u32 %v2931, %v2934
      %v2936 = vrot.slane %v2935, 4
      %v2938 = vshll.u32 %v2608, 16
      %v2940 = vrot.slane %v2938, 5
      %v2941 = vsel %vm428, %v2936, %v2940
      %v2942 = vshrl.u32 %v2608, 16
      %v2944 = vrot.slane %v2942, 4
      %v2945 = vor.u32 %v2944, %v2940
      %v2946 = vrot.slane %v2945, 4
      %v2948 = vshll.u32 %v2609, 16
      %v2950 = vrot.slane %v2948, 5
      %v2951 = vsel %vm428, %v2946, %v2950
      %v2953 = vshrl.u32 %v2610, 16
      %v2955 = vrot.slane %v2953, 4
      %v2956 = vshll.u32 %v2610, 16
      %v2958 = vrot.slane %v2956, 5
      %v2959 = vor.u32 %v2955, %v2958
      %v2960 = vrot.slane %v2959, 4
      %v2962 = vshll.u32 %v2611, 16
      %v2964 = vrot.slane %v2962, 5
      %v2965 = vsel %vm428, %v2960, %v2964
      %v2966 = vshrl.u32 %v2611, 16
      %v2968 = vrot.slane %v2966, 4
      %v2969 = vor.u32 %v2968, %v2964
      %v2970 = vrot.slane %v2969, 4
      %v2972 = vshll.u32 %v2612, 16
      %v2974 = vrot.slane %v2972, 5
      %v2975 = vsel %vm428, %v2970, %v2974
      %v2977 = vshrl.u32 %v2613, 16
      %v2979 = vrot.slane %v2977, 4
      %v2980 = vshll.u32 %v2613, 16
      %v2982 = vrot.slane %v2980, 5
      %v2983 = vor.u32 %v2979, %v2982
      %v2984 = vrot.slane %v2983, 4
      %v2986 = vshll.u32 %v2614, 16
      %v2988 = vrot.slane %v2986, 5
      %v2989 = vsel %vm428, %v2984, %v2988
      %v2990 = vshrl.u32 %v2614, 16
      %v2992 = vrot.slane %v2990, 4
      %v2993 = vor.u32 %v2992, %v2988
      %v2994 = vrot.slane %v2993, 4
      %v2996 = vshll.u32 %v2615, 16
      %v2998 = vrot.slane %v2996, 5
      %v2999 = vsel %vm428, %v2994, %v2998
      %3000 = vrot.lane.b32.xlu0 %v2629, 112
      %v3001 = vpop.permute.xlu0 %3000
      %3002 = vrot.lane.b32.xlu0 %v2639, 112
      %v3003 = vpop.permute.xlu0 %3002
      %3004 = vrot.lane.b32.xlu0 %v2653, 112
      %v3005 = vpop.permute.xlu0 %3004
      %3006 = vrot.lane.b32.xlu0 %v2663, 112
      %v3007 = vpop.permute.xlu0 %3006
      %3008 = vrot.lane.b32.xlu0 %v2677, 112
      %v3009 = vpop.permute.xlu0 %3008
      %3010 = vrot.lane.b32.xlu0 %v2687, 112
      %v3011 = vpop.permute.xlu0 %3010
      %3012 = vrot.lane.b32.xlu0 %v2701, 112
      %v3013 = vpop.permute.xlu0 %3012
      %3014 = vrot.lane.b32.xlu0 %v2711, 112
      %v3015 = vpop.permute.xlu0 %3014
      %3016 = vrot.lane.b32.xlu0 %v2725, 112
      %v3017 = vpop.permute.xlu0 %3016
      %3018 = vrot.lane.b32.xlu0 %v2735, 112
      %v3019 = vpop.permute.xlu0 %3018
      %3020 = vrot.lane.b32.xlu0 %v2749, 112
      %v3021 = vpop.permute.xlu0 %3020
      %3022 = vrot.lane.b32.xlu0 %v2759, 112
      %v3023 = vpop.permute.xlu0 %3022
      %3024 = vrot.lane.b32.xlu0 %v2773, 112
      %v3025 = vpop.permute.xlu0 %3024
      %3026 = vrot.lane.b32.xlu0 %v2783, 112
      %v3027 = vpop.permute.xlu0 %3026
      %3028 = vrot.lane.b32.xlu0 %v2797, 112
      %v3029 = vpop.permute.xlu0 %3028
      %3030 = vrot.lane.b32.xlu0 %v2807, 112
      %v3031 = vpop.permute.xlu0 %3030
      %3032 = vrot.lane.b32.xlu0 %v2821, 112
      %v3033 = vpop.permute.xlu0 %3032
      %3034 = vrot.lane.b32.xlu0 %v2831, 112
      %v3035 = vpop.permute.xlu0 %3034
      %3036 = vrot.lane.b32.xlu0 %v2845, 112
      %v3037 = vpop.permute.xlu0 %3036
      %3038 = vrot.lane.b32.xlu0 %v2855, 112
      %v3039 = vpop.permute.xlu0 %3038
      %3040 = vrot.lane.b32.xlu0 %v2869, 112
      %v3041 = vpop.permute.xlu0 %3040
      %3042 = vrot.lane.b32.xlu0 %v2879, 112
      %v3043 = vpop.permute.xlu0 %3042
      %3044 = vrot.lane.b32.xlu0 %v2893, 112
      %v3045 = vpop.permute.xlu0 %3044
      %3046 = vrot.lane.b32.xlu0 %v2903, 112
      %v3047 = vpop.permute.xlu0 %3046
      %3048 = vrot.lane.b32.xlu0 %v2917, 112
      %v3049 = vpop.permute.xlu0 %3048
      %3050 = vrot.lane.b32.xlu0 %v2927, 112
      %v3051 = vpop.permute.xlu0 %3050
      %3052 = vrot.lane.b32.xlu0 %v2941, 112
      %v3053 = vpop.permute.xlu0 %3052
      %3054 = vrot.lane.b32.xlu0 %v2951, 112
      %v3055 = vpop.permute.xlu0 %3054
      %3056 = vrot.lane.b32.xlu0 %v2965, 112
      %v3057 = vpop.permute.xlu0 %3056
      %3058 = vrot.lane.b32.xlu0 %v2975, 112
      %v3059 = vpop.permute.xlu0 %3058
      %3060 = vrot.lane.b32.xlu0 %v2989, 112
      %v3061 = vpop.permute.xlu0 %3060
      %3062 = vrot.lane.b32.xlu0 %v2999, 112
      %v3063 = vpop.permute.xlu0 %3062
      %vm3096 = vcmask 1044352
      %3097 = vst.msk [vmem:[#allocation2] sm:$0xf] %vm3096, %v3001
      %3098 = vst.msk [vmem:[#allocation2 + $0x8] sm:$0xf] %vm3096, %v3003
      %3099 = vst.msk [vmem:[#allocation2 + $0x10] sm:$0xf] %vm3096, %v3005
      %3100 = vst.msk [vmem:[#allocation2 + $0x18] sm:$0xf] %vm3096, %v3007
      %3101 = vst.msk [vmem:[#allocation2 + $0x20] sm:$0xf] %vm3096, %v3009
      %3102 = vst.msk [vmem:[#allocation2 + $0x28] sm:$0xf] %vm3096, %v3011
      %3103 = vst.msk [vmem:[#allocation2 + $0x30] sm:$0xf] %vm3096, %v3013
      %3104 = vst.msk [vmem:[#allocation2 + $0x38] sm:$0xf] %vm3096, %v3015
      %3105 = vst.msk [vmem:[#allocation2 + $0x40] sm:$0xf] %vm3096, %v3017
      %3106 = vst.msk [vmem:[#allocation2 + $0x48] sm:$0xf] %vm3096, %v3019
      %3107 = vst.msk [vmem:[#allocation2 + $0x50] sm:$0xf] %vm3096, %v3021
      %3108 = vst.msk [vmem:[#allocation2 + $0x58] sm:$0xf] %vm3096, %v3023
      %3109 = vst.msk [vmem:[#allocation2 + $0x60] sm:$0xf] %vm3096, %v3025
      %3110 = vst.msk [vmem:[#allocation2 + $0x68] sm:$0xf] %vm3096, %v3027
      %3111 = vst.msk [vmem:[#allocation2 + $0x70] sm:$0xf] %vm3096, %v3029
      %3112 = vst.msk [vmem:[#allocation2 + $0x78] sm:$0xf] %vm3096, %v3031
      %3113 = vst.msk [vmem:[#allocation2 + $0x80] sm:$0xf] %vm3096, %v3033
      %3114 = vst.msk [vmem:[#allocation2 + $0x88] sm:$0xf] %vm3096, %v3035
      %3115 = vst.msk [vmem:[#allocation2 + $0x90] sm:$0xf] %vm3096, %v3037
      %3116 = vst.msk [vmem:[#allocation2 + $0x98] sm:$0xf] %vm3096, %v3039
      %3117 = vst.msk [vmem:[#allocation2 + $0xa0] sm:$0xf] %vm3096, %v3041
      %3118 = vst.msk [vmem:[#allocation2 + $0xa8] sm:$0xf] %vm3096, %v3043
      %3119 = vst.msk [vmem:[#allocation2 + $0xb0] sm:$0xf] %vm3096, %v3045
      %3120 = vst.msk [vmem:[#allocation2 + $0xb8] sm:$0xf] %vm3096, %v3047
      %3121 = vst.msk [vmem:[#allocation2 + $0xc0] sm:$0xf] %vm3096, %v3049
      %3122 = vst.msk [vmem:[#allocation2 + $0xc8] sm:$0xf] %vm3096, %v3051
      %3123 = vst.msk [vmem:[#allocation2 + $0xd0] sm:$0xf] %vm3096, %v3053
      %3124 = vst.msk [vmem:[#allocation2 + $0xd8] sm:$0xf] %vm3096, %v3055
      %3125 = vst.msk [vmem:[#allocation2 + $0xe0] sm:$0xf] %vm3096, %v3057
      %3126 = vst.msk [vmem:[#allocation2 + $0xe8] sm:$0xf] %vm3096, %v3059
      %3127 = vst.msk [vmem:[#allocation2 + $0xf0] sm:$0xf] %vm3096, %v3061
      %3128 = vst.msk [vmem:[#allocation2 + $0xf8] sm:$0xf] %vm3096, %v3063
      %v3129 = vld [vmem:[%s2374] sm:$0xe]
      %v3130 = vld [vmem:[%s2374 + $0x4] sm:$0xf]
      %v3131 = vld [vmem:[%s2374 + $0x8] sm:$0x1]
      %v3132 = vld [vmem:[%s2374 + $0xc] sm:$0xe]
      %v3133 = vld [vmem:[%s2374 + $0x10] sm:$0xf]
      %v3134 = vld [vmem:[%s2374 + $0x14] sm:$0x1]
      %v3135 = vld [vmem:[%s2374 + $0x18] sm:$0xe]
      %v3136 = vld [vmem:[%s2374 + $0x1c] sm:$0xf]
      %v3137 = vld [vmem:[%s2374 + $0x20] sm:$0x1]
      %v3138 = vld [vmem:[%s2374 + $0x24] sm:$0xe]
      %v3139 = vld [vmem:[%s2374 + $0x28] sm:$0xf]
      %v3140 = vld [vmem:[%s2374 + $0x2c] sm:$0x1]
      %v3141 = vld [vmem:[%s2374 + $0x30] sm:$0xe]
      %v3142 = vld [vmem:[%s2374 + $0x34] sm:$0xf]
      %v3143 = vld [vmem:[%s2374 + $0x38] sm:$0x1]
      %v3144 = vld [vmem:[%s2374 + $0x3c] sm:$0xe]
      %v3145 = vld [vmem:[%s2374 + $0x40] sm:$0xf]
      %v3146 = vld [vmem:[%s2374 + $0x44] sm:$0x1]
      %v3147 = vld [vmem:[%s2374 + $0x48] sm:$0xe]
      %v3148 = vld [vmem:[%s2374 + $0x4c] sm:$0xf]
      %v3149 = vld [vmem:[%s2374 + $0x50] sm:$0x1]
      %v3150 = vld [vmem:[%s2374 + $0x54] sm:$0xe]
      %v3151 = vld [vmem:[%s2374 + $0x58] sm:$0xf]
      %v3152 = vld [vmem:[%s2374 + $0x5c] sm:$0x1]
      %v3153 = vld [vmem:[%s2374 + $0x60] sm:$0xe]
      %v3154 = vld [vmem:[%s2374 + $0x64] sm:$0xf]
      %v3155 = vld [vmem:[%s2374 + $0x68] sm:$0x1]
      %v3156 = vld [vmem:[%s2374 + $0x6c] sm:$0xe]
      %v3157 = vld [vmem:[%s2374 + $0x70] sm:$0xf]
      %v3158 = vld [vmem:[%s2374 + $0x74] sm:$0x1]
      %v3159 = vld [vmem:[%s2374 + $0x78] sm:$0xe]
      %v3160 = vld [vmem:[%s2374 + $0x7c] sm:$0xf]
      %v3161 = vld [vmem:[%s2374 + $0x80] sm:$0x1]
      %v3162 = vld [vmem:[%s2374 + $0x84] sm:$0xe]
      %v3163 = vld [vmem:[%s2374 + $0x88] sm:$0xf]
      %v3164 = vld [vmem:[%s2374 + $0x8c] sm:$0x1]
      %v3165 = vld [vmem:[%s2374 + $0x90] sm:$0xe]
      %v3166 = vld [vmem:[%s2374 + $0x94] sm:$0xf]
      %v3167 = vld [vmem:[%s2374 + $0x98] sm:$0x1]
      %v3168 = vld [vmem:[%s2374 + $0x9c] sm:$0xe]
      %v3169 = vld [vmem:[%s2374 + $0xa0] sm:$0xf]
      %v3170 = vld [vmem:[%s2374 + $0xa4] sm:$0x1]
      %v3171 = vld [vmem:[%s2374 + $0xa8] sm:$0xe]
      %v3172 = vld [vmem:[%s2374 + $0xac] sm:$0xf]
      %v3173 = vld [vmem:[%s2374 + $0xb0] sm:$0x1]
      %v3174 = vld [vmem:[%s2374 + $0xb4] sm:$0xe]
      %v3175 = vld [vmem:[%s2374 + $0xb8] sm:$0xf]
      %v3176 = vld [vmem:[%s2374 + $0xbc] sm:$0x1]
      %v3225 = vrot.slane %v3129, 5
      %v3226 = vrot.slane %v3225, 4
      %v3227 = vrot.slane %v3130, 5
      %v3228 = vsel %vm1040, %v3226, %v3227
      %v3229 = vrot.slane %v3227, 4
      %v3230 = vrot.slane %v3131, 5
      %v3231 = vsel %vm1040, %v3229, %v3230
      %v3232 = vrot.slane %v3132, 5
      %v3233 = vrot.slane %v3232, 4
      %v3234 = vrot.slane %v3133, 5
      %v3235 = vsel %vm1040, %v3233, %v3234
      %v3236 = vrot.slane %v3234, 4
      %v3237 = vrot.slane %v3134, 5
      %v3238 = vsel %vm1040, %v3236, %v3237
      %v3239 = vrot.slane %v3135, 5
      %v3240 = vrot.slane %v3239, 4
      %v3241 = vrot.slane %v3136, 5
      %v3242 = vsel %vm1040, %v3240, %v3241
      %v3243 = vrot.slane %v3241, 4
      %v3244 = vrot.slane %v3137, 5
      %v3245 = vsel %vm1040, %v3243, %v3244
      %v3246 = vrot.slane %v3138, 5
      %v3247 = vrot.slane %v3246, 4
      %v3248 = vrot.slane %v3139, 5
      %v3249 = vsel %vm1040, %v3247, %v3248
      %v3250 = vrot.slane %v3248, 4
      %v3251 = vrot.slane %v3140, 5
      %v3252 = vsel %vm1040, %v3250, %v3251
      %v3253 = vrot.slane %v3141, 5
      %v3254 = vrot.slane %v3253, 4
      %v3255 = vrot.slane %v3142, 5
      %v3256 = vsel %vm1040, %v3254, %v3255
      %v3257 = vrot.slane %v3255, 4
      %v3258 = vrot.slane %v3143, 5
      %v3259 = vsel %vm1040, %v3257, %v3258
      %v3260 = vrot.slane %v3144, 5
      %v3261 = vrot.slane %v3260, 4
      %v3262 = vrot.slane %v3145, 5
      %v3263 = vsel %vm1040, %v3261, %v3262
      %v3264 = vrot.slane %v3262, 4
      %v3265 = vrot.slane %v3146, 5
      %v3266 = vsel %vm1040, %v3264, %v3265
      %v3267 = vrot.slane %v3147, 5
      %v3268 = vrot.slane %v3267, 4
      %v3269 = vrot.slane %v3148, 5
      %v3270 = vsel %vm1040, %v3268, %v3269
      %v3271 = vrot.slane %v3269, 4
      %v3272 = vrot.slane %v3149, 5
      %v3273 = vsel %vm1040, %v3271, %v3272
      %v3274 = vrot.slane %v3150, 5
      %v3275 = vrot.slane %v3274, 4
      %v3276 = vrot.slane %v3151, 5
      %v3277 = vsel %vm1040, %v3275, %v3276
      %v3278 = vrot.slane %v3276, 4
      %v3279 = vrot.slane %v3152, 5
      %v3280 = vsel %vm1040, %v3278, %v3279
      %v3281 = vrot.slane %v3153, 5
      %v3282 = vrot.slane %v3281, 4
      %v3283 = vrot.slane %v3154, 5
      %v3284 = vsel %vm1040, %v3282, %v3283
      %v3285 = vrot.slane %v3283, 4
      %v3286 = vrot.slane %v3155, 5
      %v3287 = vsel %vm1040, %v3285, %v3286
      %v3288 = vrot.slane %v3156, 5
      %v3289 = vrot.slane %v3288, 4
      %v3290 = vrot.slane %v3157, 5
      %v3291 = vsel %vm1040, %v3289, %v3290
      %v3292 = vrot.slane %v3290, 4
      %v3293 = vrot.slane %v3158, 5
      %v3294 = vsel %vm1040, %v3292, %v3293
      %v3295 = vrot.slane %v3159, 5
      %v3296 = vrot.slane %v3295, 4
      %v3297 = vrot.slane %v3160, 5
      %v3298 = vsel %vm1040, %v3296, %v3297
      %v3299 = vrot.slane %v3297, 4
      %v3300 = vrot.slane %v3161, 5
      %v3301 = vsel %vm1040, %v3299, %v3300
      %v3302 = vrot.slane %v3162, 5
      %v3303 = vrot.slane %v3302, 4
      %v3304 = vrot.slane %v3163, 5
      %v3305 = vsel %vm1040, %v3303, %v3304
      %v3306 = vrot.slane %v3304, 4
      %v3307 = vrot.slane %v3164, 5
      %v3308 = vsel %vm1040, %v3306, %v3307
      %v3309 = vrot.slane %v3165, 5
      %v3310 = vrot.slane %v3309, 4
      %v3311 = vrot.slane %v3166, 5
      %v3312 = vsel %vm1040, %v3310, %v3311
      %v3313 = vrot.slane %v3311, 4
      %v3314 = vrot.slane %v3167, 5
      %v3315 = vsel %vm1040, %v3313, %v3314
      %v3316 = vrot.slane %v3168, 5
      %v3317 = vrot.slane %v3316, 4
      %v3318 = vrot.slane %v3169, 5
      %v3319 = vsel %vm1040, %v3317, %v3318
      %v3320 = vrot.slane %v3318, 4
      %v3321 = vrot.slane %v3170, 5
      %v3322 = vsel %vm1040, %v3320, %v3321
      %v3323 = vrot.slane %v3171, 5
      %v3324 = vrot.slane %v3323, 4
      %v3325 = vrot.slane %v3172, 5
      %v3326 = vsel %vm1040, %v3324, %v3325
      %v3327 = vrot.slane %v3325, 4
      %v3328 = vrot.slane %v3173, 5
      %v3329 = vsel %vm1040, %v3327, %v3328
      %v3330 = vrot.slane %v3174, 5
      %v3331 = vrot.slane %v3330, 4
      %v3332 = vrot.slane %v3175, 5
      %v3333 = vsel %vm1040, %v3331, %v3332
      %v3334 = vrot.slane %v3332, 4
      %v3335 = vrot.slane %v3176, 5
      %v3336 = vsel %vm1040, %v3334, %v3335
      %3369 = vst.msk [vmem:[#allocation2 + $0x4] sm:$0xf] %vm345, %v3228
      %3370 = vst.msk [vmem:[#allocation2 + $0xc] sm:$0xf] %vm345, %v3231
      %3371 = vst.msk [vmem:[#allocation2 + $0x14] sm:$0xf] %vm345, %v3235
      %3372 = vst.msk [vmem:[#allocation2 + $0x1c] sm:$0xf] %vm345, %v3238
      %3373 = vst.msk [vmem:[#allocation2 + $0x24] sm:$0xf] %vm345, %v3242
      %3374 = vst.msk [vmem:[#allocation2 + $0x2c] sm:$0xf] %vm345, %v3245
      %3375 = vst.msk [vmem:[#allocation2 + $0x34] sm:$0xf] %vm345, %v3249
      %3376 = vst.msk [vmem:[#allocation2 + $0x3c] sm:$0xf] %vm345, %v3252
      %3377 = vst.msk [vmem:[#allocation2 + $0x44] sm:$0xf] %vm345, %v3256
      %3378 = vst.msk [vmem:[#allocation2 + $0x4c] sm:$0xf] %vm345, %v3259
      %3379 = vst.msk [vmem:[#allocation2 + $0x54] sm:$0xf] %vm345, %v3263
      %3380 = vst.msk [vmem:[#allocation2 + $0x5c] sm:$0xf] %vm345, %v3266
      %3381 = vst.msk [vmem:[#allocation2 + $0x64] sm:$0xf] %vm345, %v3270
      %3382 = vst.msk [vmem:[#allocation2 + $0x6c] sm:$0xf] %vm345, %v3273
      %3383 = vst.msk [vmem:[#allocation2 + $0x74] sm:$0xf] %vm345, %v3277
      %3384 = vst.msk [vmem:[#allocation2 + $0x7c] sm:$0xf] %vm345, %v3280
      %3385 = vst.msk [vmem:[#allocation2 + $0x84] sm:$0xf] %vm345, %v3284
      %3386 = vst.msk [vmem:[#allocation2 + $0x8c] sm:$0xf] %vm345, %v3287
      %3387 = vst.msk [vmem:[#allocation2 + $0x94] sm:$0xf] %vm345, %v3291
      %3388 = vst.msk [vmem:[#allocation2 + $0x9c] sm:$0xf] %vm345, %v3294
      %3389 = vst.msk [vmem:[#allocation2 + $0xa4] sm:$0xf] %vm345, %v3298
      %3390 = vst.msk [vmem:[#allocation2 + $0xac] sm:$0xf] %vm345, %v3301
      %3391 = vst.msk [vmem:[#allocation2 + $0xb4] sm:$0xf] %vm345, %v3305
      %3392 = vst.msk [vmem:[#allocation2 + $0xbc] sm:$0xf] %vm345, %v3308
      %3393 = vst.msk [vmem:[#allocation2 + $0xc4] sm:$0xf] %vm345, %v3312
      %3394 = vst.msk [vmem:[#allocation2 + $0xcc] sm:$0xf] %vm345, %v3315
      %3395 = vst.msk [vmem:[#allocation2 + $0xd4] sm:$0xf] %vm345, %v3319
      %3396 = vst.msk [vmem:[#allocation2 + $0xdc] sm:$0xf] %vm345, %v3322
      %3397 = vst.msk [vmem:[#allocation2 + $0xe4] sm:$0xf] %vm345, %v3326
      %3398 = vst.msk [vmem:[#allocation2 + $0xec] sm:$0xf] %vm345, %v3329
      %3399 = vst.msk [vmem:[#allocation2 + $0xf4] sm:$0xf] %vm345, %v3333
      %3400 = vst.msk [vmem:[#allocation2 + $0xfc] sm:$0xf] %vm345, %v3336
      %v3401 = vld [vmem:[#allocation2] sm:$0xff]
      %v3402 = vld [vmem:[#allocation2 + $0x8] sm:$0xff]
      %v3403 = vld [vmem:[#allocation2 + $0x10] sm:$0xff]
      %v3404 = vld [vmem:[#allocation2 + $0x18] sm:$0xff]
      %v3405 = vld [vmem:[#allocation2 + $0x20] sm:$0xff]
      %v3406 = vld [vmem:[#allocation2 + $0x28] sm:$0xff]
      %v3407 = vld [vmem:[#allocation2 + $0x30] sm:$0xff]
      %v3408 = vld [vmem:[#allocation2 + $0x38] sm:$0xff]
      %v3409 = vld [vmem:[#allocation2 + $0x40] sm:$0xff]
      %v3410 = vld [vmem:[#allocation2 + $0x48] sm:$0xff]
      %v3411 = vld [vmem:[#allocation2 + $0x50] sm:$0xff]
      %v3412 = vld [vmem:[#allocation2 + $0x58] sm:$0xff]
      %v3413 = vld [vmem:[#allocation2 + $0x60] sm:$0xff]
      %v3414 = vld [vmem:[#allocation2 + $0x68] sm:$0xff]
      %v3415 = vld [vmem:[#allocation2 + $0x70] sm:$0xff]
      %v3416 = vld [vmem:[#allocation2 + $0x78] sm:$0xff]
      %v3417 = vld [vmem:[#allocation2 + $0x80] sm:$0xff]
      %v3418 = vld [vmem:[#allocation2 + $0x88] sm:$0xff]
      %v3419 = vld [vmem:[#allocation2 + $0x90] sm:$0xff]
      %v3420 = vld [vmem:[#allocation2 + $0x98] sm:$0xff]
      %v3421 = vld [vmem:[#allocation2 + $0xa0] sm:$0xff]
      %v3422 = vld [vmem:[#allocation2 + $0xa8] sm:$0xff]
      %v3423 = vld [vmem:[#allocation2 + $0xb0] sm:$0xff]
      %v3424 = vld [vmem:[#allocation2 + $0xb8] sm:$0xff]
      %v3425 = vld [vmem:[#allocation2 + $0xc0] sm:$0xff]
      %v3426 = vld [vmem:[#allocation2 + $0xc8] sm:$0xff]
      %v3427 = vld [vmem:[#allocation2 + $0xd0] sm:$0xff]
      %v3428 = vld [vmem:[#allocation2 + $0xd8] sm:$0xff]
      %v3429 = vld [vmem:[#allocation2 + $0xe0] sm:$0xff]
      %v3430 = vld [vmem:[#allocation2 + $0xe8] sm:$0xff]
      %v3431 = vld [vmem:[#allocation2 + $0xf0] sm:$0xff]
      %v3432 = vld [vmem:[#allocation2 + $0xf8] sm:$0xff]
      %v3433 = vld [vmem:[%s292] sm:$0xf]
      %v3434 = vld [vmem:[%s292 + $0x4] sm:$0xf]
      %v3435 = vld [vmem:[%s292 + $0x8] sm:$0xf]
      %v3436 = vld [vmem:[%s292 + $0xc] sm:$0xf]
      %v3437 = vld [vmem:[%s292 + $0x10] sm:$0xf]
      %v3438 = vld [vmem:[%s292 + $0x14] sm:$0xf]
      %v3439 = vld [vmem:[%s292 + $0x18] sm:$0xf]
      %v3440 = vld [vmem:[%s292 + $0x1c] sm:$0xf]
      %v3441 = vld [vmem:[%s292 + $0x20] sm:$0xf]
      %v3442 = vld [vmem:[%s292 + $0x24] sm:$0xf]
      %v3443 = vld [vmem:[%s292 + $0x28] sm:$0xf]
      %v3444 = vld [vmem:[%s292 + $0x2c] sm:$0xf]
      %v3445 = vld [vmem:[%s292 + $0x30] sm:$0xf]
      %v3446 = vld [vmem:[%s292 + $0x34] sm:$0xf]
      %v3447 = vld [vmem:[%s292 + $0x38] sm:$0xf]
      %v3448 = vld [vmem:[%s292 + $0x3c] sm:$0xf]
      %v3449 = vld [vmem:[%s292 + $0x40] sm:$0xf]
      %v3450 = vld [vmem:[%s292 + $0x44] sm:$0xf]
      %p3451 = scmp.eq.s32.totalorder %s22, 0
      // Predicated region
      $region37: #{conv2d_bn_relu.1} parent=35 // pred_check
        %p3452 = pneg %p3451
      $region38: #{conv2d_bn_relu.1} parent=35 // pred_check_branch
        %3454 = sbr.rel (%p3452) target = $region40
      $region39: #{conv2d_bn_relu.1} parent=35 // pred_region
        %v3455 = vld [vmem:[%s295] sm:$0x1]
        %v3457 = vperm.slane %v3455, 0
        %v3491 = vunpack.c.l.b16 %v3401
        %v3492 = vunpack.c.h.b16 %v3401
        %v3493 = vunpack.c.l.b16 %v3402
        %v3494 = vunpack.c.h.b16 %v3402
        %v3495 = vunpack.c.l.b16 %v3403
        %v3496 = vunpack.c.h.b16 %v3403
        %v3497 = vunpack.c.l.b16 %v3404
        %v3498 = vunpack.c.h.b16 %v3404
        %v3499 = vunpack.c.l.b16 %v3405
        %v3500 = vunpack.c.h.b16 %v3405
        %v3501 = vunpack.c.l.b16 %v3406
        %v3502 = vunpack.c.h.b16 %v3406
        %v3503 = vunpack.c.l.b16 %v3407
        %v3504 = vunpack.c.h.b16 %v3407
        %v3505 = vunpack.c.l.b16 %v3408
        %v3506 = vunpack.c.h.b16 %v3408
        %v3507 = vunpack.c.l.b16 %v3409
        %v3508 = vunpack.c.h.b16 %v3409
        %v3509 = vunpack.c.l.b16 %v3410
        %v3510 = vunpack.c.h.b16 %v3410
        %v3511 = vunpack.c.l.b16 %v3411
        %v3512 = vunpack.c.h.b16 %v3411
        %v3513 = vunpack.c.l.b16 %v3412
        %v3514 = vunpack.c.h.b16 %v3412
        %v3515 = vunpack.c.l.b16 %v3413
        %v3516 = vunpack.c.h.b16 %v3413
        %v3517 = vunpack.c.l.b16 %v3414
        %v3518 = vunpack.c.h.b16 %v3414
        %v3519 = vunpack.c.l.b16 %v3415
        %v3520 = vunpack.c.h.b16 %v3415
        %v3521 = vunpack.c.l.b16 %v3416
        %v3522 = vunpack.c.h.b16 %v3416
        %v3523 = vunpack.c.l.b16 %v3417
        %v3524 = vunpack.c.h.b16 %v3417
        %v3525 = vunpack.c.l.b16 %v3418
        %v3526 = vunpack.c.h.b16 %v3418
        %v3527 = vunpack.c.l.b16 %v3419
        %v3528 = vunpack.c.h.b16 %v3419
        %v3529 = vunpack.c.l.b16 %v3420
        %v3530 = vunpack.c.h.b16 %v3420
        %v3531 = vunpack.c.l.b16 %v3421
        %v3532 = vunpack.c.h.b16 %v3421
        %v3533 = vunpack.c.l.b16 %v3422
        %v3534 = vunpack.c.h.b16 %v3422
        %v3535 = vunpack.c.l.b16 %v3423
        %v3536 = vunpack.c.h.b16 %v3423
        %v3537 = vunpack.c.l.b16 %v3424
        %v3538 = vunpack.c.h.b16 %v3424
        %v3539 = vunpack.c.l.b16 %v3425
        %v3540 = vunpack.c.h.b16 %v3425
        %v3541 = vunpack.c.l.b16 %v3426
        %v3542 = vunpack.c.h.b16 %v3426
        %v3543 = vunpack.c.l.b16 %v3427
        %v3544 = vunpack.c.h.b16 %v3427
        %v3545 = vunpack.c.l.b16 %v3428
        %v3546 = vunpack.c.h.b16 %v3428
        %v3547 = vunpack.c.l.b16 %v3429
        %v3548 = vunpack.c.h.b16 %v3429
        %v3549 = vunpack.c.l.b16 %v3430
        %v3550 = vunpack.c.h.b16 %v3430
        %v3551 = vunpack.c.l.b16 %v3431
        %v3552 = vunpack.c.h.b16 %v3431
        %v3553 = vunpack.c.l.b16 %v3432
        %v3554 = vunpack.c.h.b16 %v3432
        %v3555 = vpack.c.b16 %v3493, %v3491
        %v3556 = vpack.c.b16 %v3494, %v3492
        %v3557 = vpack.c.b16 %v3497, %v3495
        %v3558 = vpack.c.b16 %v3498, %v3496
        %v3559 = vpack.c.b16 %v3501, %v3499
        %v3560 = vpack.c.b16 %v3502, %v3500
        %v3561 = vpack.c.b16 %v3505, %v3503
        %v3562 = vpack.c.b16 %v3506, %v3504
        %v3563 = vpack.c.b16 %v3509, %v3507
        %v3564 = vpack.c.b16 %v3510, %v3508
        %v3565 = vpack.c.b16 %v3513, %v3511
        %v3566 = vpack.c.b16 %v3514, %v3512
        %v3567 = vpack.c.b16 %v3517, %v3515
        %v3568 = vpack.c.b16 %v3518, %v3516
        %v3569 = vpack.c.b16 %v3521, %v3519
        %v3570 = vpack.c.b16 %v3522, %v3520
        %v3571 = vpack.c.b16 %v3525, %v3523
        %v3572 = vpack.c.b16 %v3526, %v3524
        %v3573 = vpack.c.b16 %v3529, %v3527
        %v3574 = vpack.c.b16 %v3530, %v3528
        %v3575 = vpack.c.b16 %v3533, %v3531
        %v3576 = vpack.c.b16 %v3534, %v3532
        %v3577 = vpack.c.b16 %v3537, %v3535
        %v3578 = vpack.c.b16 %v3538, %v3536
        %v3579 = vpack.c.b16 %v3541, %v3539
        %v3580 = vpack.c.b16 %v3542, %v3540
        %v3581 = vpack.c.b16 %v3545, %v3543
        %v3582 = vpack.c.b16 %v3546, %v3544
        %v3583 = vpack.c.b16 %v3549, %v3547
        %v3584 = vpack.c.b16 %v3550, %v3548
        %v3585 = vpack.c.b16 %v3553, %v3551
        %v3586 = vpack.c.b16 %v3554, %v3552
        %v3621 = vunpack.c.l.b16 %v3433
        %v3622 = vunpack.c.l.b16 %v3434
        %v3623 = vunpack.c.l.b16 %v3435
        %v3624 = vunpack.c.l.b16 %v3436
        %v3625 = vunpack.c.l.b16 %v3437
        %v3626 = vunpack.c.l.b16 %v3438
        %v3627 = vunpack.c.l.b16 %v3439
        %v3628 = vunpack.c.l.b16 %v3440
        %v3629 = vunpack.c.l.b16 %v3441
        %v3630 = vunpack.c.l.b16 %v3442
        %v3631 = vunpack.c.l.b16 %v3443
        %v3632 = vunpack.c.l.b16 %v3444
        %v3633 = vunpack.c.l.b16 %v3445
        %v3634 = vunpack.c.l.b16 %v3446
        %v3635 = vunpack.c.l.b16 %v3447
        %v3636 = vunpack.c.l.b16 %v3448
        %v3637 = vunpack.c.l.b16 %v3449
        %v3638 = vunpack.c.l.b16 %v3450
        %v3639 = vpack.c.b16 %v3622, %v3621
        %v3640 = vpack.c.b16 %v3624, %v3623
        %v3641 = vpack.c.b16 %v3626, %v3625
        %v3642 = vpack.c.b16 %v3628, %v3627
        %v3643 = vpack.c.b16 %v3630, %v3629
        %v3644 = vpack.c.b16 %v3632, %v3631
        %v3645 = vpack.c.b16 %v3634, %v3633
        %v3646 = vpack.c.b16 %v3636, %v3635
        %v3647 = vpack.c.b16 %v3638, %v3637
        %vm3657 = vcmask 130048
        %v3659 = vsel %vm3657, %v3556, 0
        %v3662 = vsel %vm3657, %v3558, 0
        %v3665 = vsel %vm3657, %v3560, 0
        %v3668 = vsel %vm3657, %v3562, 0
        %v3671 = vsel %vm3657, %v3564, 0
        %v3674 = vsel %vm3657, %v3566, 0
        %v3677 = vsel %vm3657, %v3568, 0
        %v3680 = vsel %vm3657, %v3570, 0
        %v3683 = vsel %vm3657, %v3572, 0
        %v3686 = vsel %vm3657, %v3574, 0
        %v3689 = vsel %vm3657, %v3576, 0
        %v3692 = vsel %vm3657, %v3578, 0
        %v3695 = vsel %vm3657, %v3580, 0
        %v3698 = vsel %vm3657, %v3582, 0
        %v3701 = vsel %vm3657, %v3584, 0
        %v3704 = vsel %vm3657, %v3586, 0
        %3706 = vmatpush.bf16.msra.mxu0 %v3646
        %3707 = vmatpush.bf16.msra.mxu0 %v3645
        %3708 = vmatpush.bf16.msra.mxu0 %v3644
        %3709 = vmatpush.bf16.msra.mxu0 %v3643
        %3710 = vmatpush.bf16.msra.mxu0 %v3642
        %3711 = vmatpush.bf16.msra.mxu0 %v3641
        %3712 = vmatpush.bf16.msra.mxu0 %v3640
        %3713 = vmatpush.bf16.msra.mxu0 %v3639
        %3714 = vmatmul.bf16.gmra.mxu0 %v3555
        %v3715 = vpop.f32.mrf.mxu0
        %v3716 = vadd.f32 %v3457, %v3715
        %v3717 = vpop.f32.mrf.mxu0
        %v3718 = vadd.f32 %v3457, %v3717
        %3719 = vmatmul.bf16.gmra.mxu0 %v3557
        %v3720 = vpop.f32.mrf.mxu0
        %v3721 = vadd.f32 %v3457, %v3720
        %v3722 = vpop.f32.mrf.mxu0
        %v3723 = vadd.f32 %v3457, %v3722
        %3724 = vmatmul.bf16.gmra.mxu0 %v3559
        %v3725 = vpop.f32.mrf.mxu0
        %v3726 = vadd.f32 %v3457, %v3725
        %v3727 = vpop.f32.mrf.mxu0
        %v3728 = vadd.f32 %v3457, %v3727
        %3729 = vmatmul.bf16.gmra.mxu0 %v3561
        %v3730 = vpop.f32.mrf.mxu0
        %v3731 = vadd.f32 %v3457, %v3730
        %v3732 = vpop.f32.mrf.mxu0
        %v3733 = vadd.f32 %v3457, %v3732
        %3734 = vmatmul.bf16.gmra.mxu0 %v3563
        %v3735 = vpop.f32.mrf.mxu0
        %v3736 = vadd.f32 %v3457, %v3735
        %v3737 = vpop.f32.mrf.mxu0
        %v3738 = vadd.f32 %v3457, %v3737
        %3739 = vmatmul.bf16.gmra.mxu0 %v3565
        %v3740 = vpop.f32.mrf.mxu0
        %v3741 = vadd.f32 %v3457, %v3740
        %v3742 = vpop.f32.mrf.mxu0
        %v3743 = vadd.f32 %v3457, %v3742
        %3744 = vmatmul.bf16.gmra.mxu0 %v3567
        %v3745 = vpop.f32.mrf.mxu0
        %v3746 = vadd.f32 %v3457, %v3745
        %v3747 = vpop.f32.mrf.mxu0
        %v3748 = vadd.f32 %v3457, %v3747
        %3749 = vmatmul.bf16.gmra.mxu0 %v3569
        %v3750 = vpop.f32.mrf.mxu0
        %v3751 = vadd.f32 %v3457, %v3750
        %v3752 = vpop.f32.mrf.mxu0
        %v3753 = vadd.f32 %v3457, %v3752
        %3754 = vmatmul.bf16.gmra.mxu0 %v3571
        %v3755 = vpop.f32.mrf.mxu0
        %v3756 = vadd.f32 %v3457, %v3755
        %v3757 = vpop.f32.mrf.mxu0
        %v3758 = vadd.f32 %v3457, %v3757
        %3759 = vmatmul.bf16.gmra.mxu0 %v3573
        %v3760 = vpop.f32.mrf.mxu0
        %v3761 = vadd.f32 %v3457, %v3760
        %v3762 = vpop.f32.mrf.mxu0
        %v3763 = vadd.f32 %v3457, %v3762
        %3764 = vmatmul.bf16.gmra.mxu0 %v3575
        %v3765 = vpop.f32.mrf.mxu0
        %v3766 = vadd.f32 %v3457, %v3765
        %v3767 = vpop.f32.mrf.mxu0
        %v3768 = vadd.f32 %v3457, %v3767
        %3769 = vmatmul.bf16.gmra.mxu0 %v3577
        %v3770 = vpop.f32.mrf.mxu0
        %v3771 = vadd.f32 %v3457, %v3770
        %v3772 = vpop.f32.mrf.mxu0
        %v3773 = vadd.f32 %v3457, %v3772
        %3774 = vmatmul.bf16.gmra.mxu0 %v3579
        %v3775 = vpop.f32.mrf.mxu0
        %v3776 = vadd.f32 %v3457, %v3775
        %v3777 = vpop.f32.mrf.mxu0
        %v3778 = vadd.f32 %v3457, %v3777
        %3779 = vmatmul.bf16.gmra.mxu0 %v3581
        %v3780 = vpop.f32.mrf.mxu0
        %v3781 = vadd.f32 %v3457, %v3780
        %v3782 = vpop.f32.mrf.mxu0
        %v3783 = vadd.f32 %v3457, %v3782
        %3784 = vmatmul.bf16.gmra.mxu0 %v3583
        %v3785 = vpop.f32.mrf.mxu0
        %v3786 = vadd.f32 %v3457, %v3785
        %v3787 = vpop.f32.mrf.mxu0
        %v3788 = vadd.f32 %v3457, %v3787
        %3789 = vmatmul.bf16.gmra.mxu0 %v3585
        %v3790 = vpop.f32.mrf.mxu0
        %v3791 = vadd.f32 %v3457, %v3790
        %v3792 = vpop.f32.mrf.mxu0
        %v3793 = vadd.f32 %v3457, %v3792
        %3794 = vdwg.mxu0
        %3795 = vmatpush.bf16.msra.mxu0 0
        %3796 = vmatpush.bf16.msra.mxu0 0
        %3797 = vmatpush.bf16.msra.mxu0 0
        %3798 = vmatpush.bf16.msra.mxu0 0
        %3799 = vmatpush.bf16.msra.mxu0 0
        %3800 = vmatpush.bf16.msra.mxu0 0
        %3801 = vmatpush.bf16.msra.mxu0 0
        %3802 = vmatpush.bf16.msra.mxu0 %v3647
        %3803 = vmatmul.bf16.gmra.mxu0 %v3659
        %v3804 = vpop.f32.mrf.mxu0
        %v3805 = vadd.f32 %v3716, %v3804
        %v3806 = vpop.f32.mrf.mxu0
        %v3807 = vadd.f32 %v3718, %v3806
        %3808 = vmatmul.bf16.gmra.mxu0 %v3662
        %v3809 = vpop.f32.mrf.mxu0
        %v3810 = vadd.f32 %v3721, %v3809
        %v3811 = vpop.f32.mrf.mxu0
        %v3812 = vadd.f32 %v3723, %v3811
        %3813 = vmatmul.bf16.gmra.mxu0 %v3665
        %v3814 = vpop.f32.mrf.mxu0
        %v3815 = vadd.f32 %v3726, %v3814
        %v3816 = vpop.f32.mrf.mxu0
        %v3817 = vadd.f32 %v3728, %v3816
        %3818 = vmatmul.bf16.gmra.mxu0 %v3668
        %v3819 = vpop.f32.mrf.mxu0
        %v3820 = vadd.f32 %v3731, %v3819
        %v3821 = vpop.f32.mrf.mxu0
        %v3822 = vadd.f32 %v3733, %v3821
        %3823 = vmatmul.bf16.gmra.mxu0 %v3671
        %v3824 = vpop.f32.mrf.mxu0
        %v3825 = vadd.f32 %v3736, %v3824
        %v3826 = vpop.f32.mrf.mxu0
        %v3827 = vadd.f32 %v3738, %v3826
        %3828 = vmatmul.bf16.gmra.mxu0 %v3674
        %v3829 = vpop.f32.mrf.mxu0
        %v3830 = vadd.f32 %v3741, %v3829
        %v3831 = vpop.f32.mrf.mxu0
        %v3832 = vadd.f32 %v3743, %v3831
        %3833 = vmatmul.bf16.gmra.mxu0 %v3677
        %v3834 = vpop.f32.mrf.mxu0
        %v3835 = vadd.f32 %v3746, %v3834
        %v3836 = vpop.f32.mrf.mxu0
        %v3837 = vadd.f32 %v3748, %v3836
        %3838 = vmatmul.bf16.gmra.mxu0 %v3680
        %v3839 = vpop.f32.mrf.mxu0
        %v3840 = vadd.f32 %v3751, %v3839
        %v3841 = vpop.f32.mrf.mxu0
        %v3842 = vadd.f32 %v3753, %v3841
        %3843 = vmatmul.bf16.gmra.mxu0 %v3683
        %v3844 = vpop.f32.mrf.mxu0
        %v3845 = vadd.f32 %v3756, %v3844
        %v3846 = vpop.f32.mrf.mxu0
        %v3847 = vadd.f32 %v3758, %v3846
        %3848 = vmatmul.bf16.gmra.mxu0 %v3686
        %v3849 = vpop.f32.mrf.mxu0
        %v3850 = vadd.f32 %v3761, %v3849
        %v3851 = vpop.f32.mrf.mxu0
        %v3852 = vadd.f32 %v3763, %v3851
        %3853 = vmatmul.bf16.gmra.mxu0 %v3689
        %v3854 = vpop.f32.mrf.mxu0
        %v3855 = vadd.f32 %v3766, %v3854
        %v3856 = vpop.f32.mrf.mxu0
        %v3857 = vadd.f32 %v3768, %v3856
        %3858 = vmatmul.bf16.gmra.mxu0 %v3692
        %v3859 = vpop.f32.mrf.mxu0
        %v3860 = vadd.f32 %v3771, %v3859
        %v3861 = vpop.f32.mrf.mxu0
        %v3862 = vadd.f32 %v3773, %v3861
        %3863 = vmatmul.bf16.gmra.mxu0 %v3695
        %v3864 = vpop.f32.mrf.mxu0
        %v3865 = vadd.f32 %v3776, %v3864
        %v3866 = vpop.f32.mrf.mxu0
        %v3867 = vadd.f32 %v3778, %v3866
        %3868 = vmatmul.bf16.gmra.mxu0 %v3698
        %v3869 = vpop.f32.mrf.mxu0
        %v3870 = vadd.f32 %v3781, %v3869
        %v3871 = vpop.f32.mrf.mxu0
        %v3872 = vadd.f32 %v3783, %v3871
        %3873 = vmatmul.bf16.gmra.mxu0 %v3701
        %v3874 = vpop.f32.mrf.mxu0
        %v3875 = vadd.f32 %v3786, %v3874
        %v3876 = vpop.f32.mrf.mxu0
        %v3877 = vadd.f32 %v3788, %v3876
        %3878 = vmatmul.bf16.gmra.mxu0 %v3704
        %v3879 = vpop.f32.mrf.mxu0
        %v3880 = vadd.f32 %v3791, %v3879
        %v3881 = vpop.f32.mrf.mxu0
        %v3882 = vadd.f32 %v3793, %v3881
        %3883 = vdwg.mxu0
        %v3884 = vld [vmem:[%s303] sm:$0xf]
        %v3885 = vld [vmem:[%s303 + $0x4] sm:$0xf]
        %v3886 = vld [vmem:[%s303 + $0x8] sm:$0xf]
        %v3887 = vld [vmem:[%s303 + $0xc] sm:$0xf]
        %v3888 = vld [vmem:[%s303 + $0x10] sm:$0xf]
        %v3889 = vld [vmem:[%s303 + $0x14] sm:$0xf]
        %v3890 = vld [vmem:[%s303 + $0x18] sm:$0xf]
        %v3891 = vld [vmem:[%s303 + $0x1c] sm:$0xf]
        %v3892 = vld [vmem:[%s303 + $0x20] sm:$0xf]
        %v3893 = vld [vmem:[%s303 + $0x24] sm:$0xf]
        %v3894 = vld [vmem:[%s303 + $0x28] sm:$0xf]
        %v3895 = vld [vmem:[%s303 + $0x2c] sm:$0xf]
        %v3896 = vld [vmem:[%s303 + $0x30] sm:$0xf]
        %v3897 = vld [vmem:[%s303 + $0x34] sm:$0xf]
        %v3898 = vld [vmem:[%s303 + $0x38] sm:$0xf]
        %v3899 = vld [vmem:[%s303 + $0x3c] sm:$0xf]
        %v3900 = vld [vmem:[%s303 + $0x40] sm:$0xf]
        %v3901 = vld [vmem:[%s303 + $0x44] sm:$0xf]
        %v3902 = vld [vmem:[%s303 + $0x48] sm:$0xf]
        %v3903 = vld [vmem:[%s303 + $0x4c] sm:$0xf]
        %v3904 = vld [vmem:[%s303 + $0x50] sm:$0xf]
        %v3905 = vld [vmem:[%s303 + $0x54] sm:$0xf]
        %v3906 = vld [vmem:[%s303 + $0x58] sm:$0xf]
        %v3907 = vld [vmem:[%s303 + $0x5c] sm:$0xf]
        %v3908 = vld [vmem:[%s303 + $0x60] sm:$0xf]
        %v3909 = vld [vmem:[%s303 + $0x64] sm:$0xf]
        %v3910 = vld [vmem:[%s303 + $0x68] sm:$0xf]
        %v3911 = vld [vmem:[%s303 + $0x6c] sm:$0xf]
        %v3912 = vld [vmem:[%s303 + $0x70] sm:$0xf]
        %v3913 = vld [vmem:[%s303 + $0x74] sm:$0xf]
        %v3914 = vld [vmem:[%s303 + $0x78] sm:$0xf]
        %v3915 = vld [vmem:[%s303 + $0x7c] sm:$0xf]
        %v3916 = vunpack.c.l.bf16 %v3884
        %v3917 = vunpack.c.l.bf16 %v3885
        %v3918 = vunpack.c.l.bf16 %v3886
        %v3919 = vunpack.c.l.bf16 %v3887
        %v3920 = vunpack.c.l.bf16 %v3888
        %v3921 = vunpack.c.l.bf16 %v3889
        %v3922 = vunpack.c.l.bf16 %v3890
        %v3923 = vunpack.c.l.bf16 %v3891
        %v3924 = vunpack.c.l.bf16 %v3892
        %v3925 = vunpack.c.l.bf16 %v3893
        %v3926 = vunpack.c.l.bf16 %v3894
        %v3927 = vunpack.c.l.bf16 %v3895
        %v3928 = vunpack.c.l.bf16 %v3896
        %v3929 = vunpack.c.l.bf16 %v3897
        %v3930 = vunpack.c.l.bf16 %v3898
        %v3931 = vunpack.c.l.bf16 %v3899
        %v3932 = vunpack.c.l.bf16 %v3900
        %v3933 = vunpack.c.l.bf16 %v3901
        %v3934 = vunpack.c.l.bf16 %v3902
        %v3935 = vunpack.c.l.bf16 %v3903
        %v3936 = vunpack.c.l.bf16 %v3904
        %v3937 = vunpack.c.l.bf16 %v3905
        %v3938 = vunpack.c.l.bf16 %v3906
        %v3939 = vunpack.c.l.bf16 %v3907
        %v3940 = vunpack.c.l.bf16 %v3908
        %v3941 = vunpack.c.l.bf16 %v3909
        %v3942 = vunpack.c.l.bf16 %v3910
        %v3943 = vunpack.c.l.bf16 %v3911
        %v3944 = vunpack.c.l.bf16 %v3912
        %v3945 = vunpack.c.l.bf16 %v3913
        %v3946 = vunpack.c.l.bf16 %v3914
        %v3947 = vunpack.c.l.bf16 %v3915
        %v3948 = vadd.f32 %v3805, %v3916
        %v3949 = vadd.f32 %v3807, %v3917
        %v3950 = vadd.f32 %v3810, %v3918
        %v3951 = vadd.f32 %v3812, %v3919
        %v3952 = vadd.f32 %v3815, %v3920
        %v3953 = vadd.f32 %v3817, %v3921
        %v3954 = vadd.f32 %v3820, %v3922
        %v3955 = vadd.f32 %v3822, %v3923
        %v3956 = vadd.f32 %v3825, %v3924
        %v3957 = vadd.f32 %v3827, %v3925
        %v3958 = vadd.f32 %v3830, %v3926
        %v3959 = vadd.f32 %v3832, %v3927
        %v3960 = vadd.f32 %v3835, %v3928
        %v3961 = vadd.f32 %v3837, %v3929
        %v3962 = vadd.f32 %v3840, %v3930
        %v3963 = vadd.f32 %v3842, %v3931
        %v3964 = vadd.f32 %v3845, %v3932
        %v3965 = vadd.f32 %v3847, %v3933
        %v3966 = vadd.f32 %v3850, %v3934
        %v3967 = vadd.f32 %v3852, %v3935
        %v3968 = vadd.f32 %v3855, %v3936
        %v3969 = vadd.f32 %v3857, %v3937
        %v3970 = vadd.f32 %v3860, %v3938
        %v3971 = vadd.f32 %v3862, %v3939
        %v3972 = vadd.f32 %v3865, %v3940
        %v3973 = vadd.f32 %v3867, %v3941
        %v3974 = vadd.f32 %v3870, %v3942
        %v3975 = vadd.f32 %v3872, %v3943
        %v3976 = vadd.f32 %v3875, %v3944
        %v3977 = vadd.f32 %v3877, %v3945
        %v3978 = vadd.f32 %v3880, %v3946
        %v3979 = vadd.f32 %v3882, %v3947
        %v3980 = vmax.f32 %v3948, 0.0
        %v3981 = vmax.f32 %v3949, 0.0
        %v3982 = vmax.f32 %v3950, 0.0
        %v3983 = vmax.f32 %v3951, 0.0
        %v3984 = vmax.f32 %v3952, 0.0
        %v3985 = vmax.f32 %v3953, 0.0
        %v3986 = vmax.f32 %v3954, 0.0
        %v3987 = vmax.f32 %v3955, 0.0
        %v3988 = vmax.f32 %v3956, 0.0
        %v3989 = vmax.f32 %v3957, 0.0
        %v3990 = vmax.f32 %v3958, 0.0
        %v3991 = vmax.f32 %v3959, 0.0
        %v3992 = vmax.f32 %v3960, 0.0
        %v3993 = vmax.f32 %v3961, 0.0
        %v3994 = vmax.f32 %v3962, 0.0
        %v3995 = vmax.f32 %v3963, 0.0
        %v3996 = vmax.f32 %v3964, 0.0
        %v3997 = vmax.f32 %v3965, 0.0
        %v3998 = vmax.f32 %v3966, 0.0
        %v3999 = vmax.f32 %v3967, 0.0
        %v4000 = vmax.f32 %v3968, 0.0
        %v4001 = vmax.f32 %v3969, 0.0
        %v4002 = vmax.f32 %v3970, 0.0
        %v4003 = vmax.f32 %v3971, 0.0
        %v4004 = vmax.f32 %v3972, 0.0
        %v4005 = vmax.f32 %v3973, 0.0
        %v4006 = vmax.f32 %v3974, 0.0
        %v4007 = vmax.f32 %v3975, 0.0
        %v4008 = vmax.f32 %v3976, 0.0
        %v4009 = vmax.f32 %v3977, 0.0
        %v4010 = vmax.f32 %v3978, 0.0
        %v4011 = vmax.f32 %v3979, 0.0
        %4012 = vst [vmem:[%s311] sm:$0xff] %v3980
        %4013 = vst [vmem:[%s311 + $0x8] sm:$0xff] %v3981
        %4014 = vst [vmem:[%s311 + $0x10] sm:$0xff] %v3982
        %4015 = vst [vmem:[%s311 + $0x18] sm:$0xff] %v3983
        %4016 = vst [vmem:[%s311 + $0x20] sm:$0xff] %v3984
        %4017 = vst [vmem:[%s311 + $0x28] sm:$0xff] %v3985
        %4018 = vst [vmem:[%s311 + $0x30] sm:$0xff] %v3986
        %4019 = vst [vmem:[%s311 + $0x38] sm:$0xff] %v3987
        %4020 = vst [vmem:[%s311 + $0x40] sm:$0xff] %v3988
        %4021 = vst [vmem:[%s311 + $0x48] sm:$0xff] %v3989
        %4022 = vst [vmem:[%s311 + $0x50] sm:$0xff] %v3990
        %4023 = vst [vmem:[%s311 + $0x58] sm:$0xff] %v3991
        %4024 = vst [vmem:[%s311 + $0x60] sm:$0xff] %v3992
        %4025 = vst [vmem:[%s311 + $0x68] sm:$0xff] %v3993
        %4026 = vst [vmem:[%s311 + $0x70] sm:$0xff] %v3994
        %4027 = vst [vmem:[%s311 + $0x78] sm:$0xff] %v3995
        %4028 = vst [vmem:[%s311 + $0x80] sm:$0xff] %v3996
        %4029 = vst [vmem:[%s311 + $0x88] sm:$0xff] %v3997
        %4030 = vst [vmem:[%s311 + $0x90] sm:$0xff] %v3998
        %4031 = vst [vmem:[%s311 + $0x98] sm:$0xff] %v3999
        %4032 = vst [vmem:[%s311 + $0xa0] sm:$0xff] %v4000
        %4033 = vst [vmem:[%s311 + $0xa8] sm:$0xff] %v4001
        %4034 = vst [vmem:[%s311 + $0xb0] sm:$0xff] %v4002
        %4035 = vst [vmem:[%s311 + $0xb8] sm:$0xff] %v4003
        %4036 = vst [vmem:[%s311 + $0xc0] sm:$0xff] %v4004
        %4037 = vst [vmem:[%s311 + $0xc8] sm:$0xff] %v4005
        %4038 = vst [vmem:[%s311 + $0xd0] sm:$0xff] %v4006
        %4039 = vst [vmem:[%s311 + $0xd8] sm:$0xff] %v4007
        %4040 = vst [vmem:[%s311 + $0xe0] sm:$0xff] %v4008
        %4041 = vst [vmem:[%s311 + $0xe8] sm:$0xff] %v4009
        %4042 = vst [vmem:[%s311 + $0xf0] sm:$0xff] %v4010
        %4043 = vst [vmem:[%s311 + $0xf8] sm:$0xff] %v4011
      $region40: #{conv2d_bn_relu.1} parent=35 // pred_fallthru
        _
      %p4044 = scmp.lt.s32.totalorder %s21, 1
      %s4045 = scalar_select %p4044, %s21, 1
      %p4046 = scmp.lt.s32.totalorder %s20, 0
      %s4047 = scalar_select %p4046, %s20, 0
      %s4048 = smul.addr %s4045, 32
      %s4049 = sadd.s32 %s4047, %s4048
      %s4050 = smul.addr %s4049, 8
      %s4051 = scalar_lea.vmem %s4, %s4050
      // Predicated region
      $region41: #{conv2d_bn_relu.1} parent=35 // pred_check
        %p4052 = pneg %p164
      $region42: #{conv2d_bn_relu.1} parent=35 // pred_check_branch
        %4054 = sbr.rel (%p4052) target = $region44
      $region43: #{conv2d_bn_relu.1} parent=35 // pred_region
        _
      $region44: #{conv2d_bn_relu.1} parent=35 // pred_fallthru
        _
    $region36: #{conv2d_bn_relu.1} parent=5 // pred_fallthru
      _
    %p4055 = scmp.le.s32.totalorder 2, %s10
    // Predicated region
    $region45: #{conv2d_bn_relu.1} parent=5 // pred_check
      %p4056 = pneg %p4055
    $region46: #{conv2d_bn_relu.1} parent=5 // pred_check_branch
      %4058 = sbr.rel (%p4056) target = $region48
    $region47: #{conv2d_bn_relu.1} parent=5 // pred_region
      %s4059 = ssub.s32 %s10, 2
      // Predicated region
      $region49: #{conv2d_bn_relu.1} parent=47 // pred_check
        %p4060 = pneg %p170
      $region50: #{conv2d_bn_relu.1} parent=47 // pred_check_branch
        %4062 = sbr.rel (%p4060) target = $region52
      $region51: #{conv2d_bn_relu.1} parent=47 // pred_region
        %p4063 = scmp.lt.s32.totalorder %s24, 1
        %s4064 = scalar_select %p4063, %s24, 1
        %p4065 = scmp.lt.s32.totalorder %s23, 0
        %s4066 = scalar_select %p4065, %s23, 0
        %s4067 = smul.addr %s4064, 32
        %s4068 = sadd.s32 %s4066, %s4067
        %s4069 = smul.addr %s4068, 8
        %s4070 = scalar_lea.vmem %s4, %s4069
      $region52: #{conv2d_bn_relu.1} parent=47 // pred_fallthru
        _
    $region48: #{conv2d_bn_relu.1} parent=5 // pred_fallthru
      _
  $region6: #{conv2d_bn_relu.1} parent=0 // loop_footer
    %s14 = sadd.s32 1, %s10
  $region7: #{conv2d_bn_relu.1} parent=0 // loop_footer_branch
    %9 = sbr.rel target = $region3
  $region8: #{conv2d_bn_relu.1} parent=0 // loop_exit
    _

</llo_original>
